<compile_context>
chip_gen: v7x
topology: tpu7x:2x2x1
jax: 0.10.0
libtpu: 0.0.40
codegen_flags: <defaults>
</compile_context>

<pallas_src>
import jax
import jax.numpy as jnp
from jax.experimental import pallas as pl
from jax.experimental.pallas import tpu as pltpu


# ----------------------------------------------------------------------------
# Packed-parameter row indices
# ----------------------------------------------------------------------------
# vec_pack: f32 (24, 384); each row holds one bias/gamma/beta vector, zero-padded.
_VP_V_B1, _VP_V_G, _VP_V_BE = 0, 1, 2        # width 240 (vol branch, hidden=240)
_VP_P_B1, _VP_P_G, _VP_P_BE = 3, 4, 5        # width 192 (pt branch,  hidden=192)
_VP_F_B1, _VP_F_G, _VP_F_BE = 6, 7, 8        # width 384 (fusion,     hidden=384)
_VP_O_B1, _VP_O_G, _VP_O_BE = 9, 10, 11      # width 192 (out head,   hidden=192)
_VP_D_B, _VP_F_B2, _VP_O_B2 = 12, 13, 14     # width 192
_VP_V_B2, _VP_T_B2, _VP_P_B2 = 15, 16, 17    # width 128
_VP_T_B1, _VP_T_G, _VP_T_BE = 18, 19, 20     # width 5   (turn branch, hidden=5)
_VP_ROWS = 24

# t_wpack: f32 (24, 128); rows 0-4 = turn layer1 weight (5,5) in lanes 0:5,
# rows 8-17 = turn layer2 weight (10,128): rows 0-4 multiply relu(LN(h)),
# rows 5-9 multiply x (torch.cat([out, x], -1) ordering).
_TW_ROWS = 24


# ----------------------------------------------------------------------------
# In-kernel helpers (traced once inside the single fused kernel)
# ----------------------------------------------------------------------------
def _ln_relu(h, gamma, beta):
    # nn.LayerNorm (biased variance, eps=1e-5) followed by ReLU; dropout p=0.
    mu = jnp.mean(h, axis=-1, keepdims=True)
    var = jnp.mean((h - mu) * (h - mu), axis=-1, keepdims=True)
    hn = (h - mu) * jax.lax.rsqrt(var + 1e-5) * gamma + beta
    return jnp.maximum(hn, 0.0)


def _mxu(x_f32, w_bf16):
    # bf16 MXU matmul, f32 accumulation.
    return jnp.dot(x_f32.astype(jnp.bfloat16), w_bf16,
                   preferred_element_type=jnp.float32)


def _vpu_dot(x, w):
    # K is tiny (5): K broadcast-FMAs on the VPU beat a heavily padded MXU pass.
    acc = x[:, 0:1] * w[0:1, :]
    for k in range(1, w.shape[0]):
        acc = acc + x[:, k:k + 1] * w[k:k + 1, :]
    return acc


# ----------------------------------------------------------------------------
# Single fused forward kernel
# ----------------------------------------------------------------------------
def _fused_forward_kernel(hp_ref, vol_ref, turn_ref, fut_ref,
                          d_w, vw, v_w2h, pw, p_w2h, f_w1, f_w2, o_w1, o_w2,
                          vec, twp,
                          pt_ref, loss_ref):
    hp = hp_ref[...]      # (B, 240)
    vol = vol_ref[...]    # (B, 240)
    turn = turn_ref[...]  # (B, 5)
    fut = fut_ref[...]    # (B, 192)

    def vrow(i, width):   # static ref slice of one packed vector -> (1, width)
        return vec[i:i + 1, 0:width]

    # Stand-in for diffusion.get_loss(future_price, history_price) -> (B, 192).
    # TODO(synk): TransformerConcatLinear / DiffusionTraj / VarianceSchedule were
    # not provided; this is a deterministic linear proxy.
    pt_his = _mxu(hp, d_w[...]) + vrow(_VP_D_B, 192)

    # --- vol branch (in=240, hidden=240, out=128), residual=True ---------------
    # vol @ [w2x | w1] in one MXU dot; slice points are 128-lane aligned.
    mixed_v = _mxu(vol, vw[...])                       # (B, 368)
    x2x_v = mixed_v[:, 0:128]                          # vol @ w2x
    h_v = mixed_v[:, 128:368] + vrow(_VP_V_B1, 240)    # vol @ w1 + b1
    hr_v = _ln_relu(h_v, vrow(_VP_V_G, 240), vrow(_VP_V_BE, 240))
    v_out = _mxu(hr_v, v_w2h[...]) + x2x_v + vrow(_VP_V_B2, 128)

    # --- turn branch (in=5, hidden=5, out=128), residual=True -----------------
    # All contractions here have K=5 -> VPU broadcast-FMAs (f32), no MXU needed.
    t_w1 = twp[0:5, 0:5]
    h_t = _vpu_dot(turn, t_w1) + vrow(_VP_T_B1, 5)
    hr_t = _ln_relu(h_t, vrow(_VP_T_G, 5), vrow(_VP_T_BE, 5))
    t_w2 = twp[8:18, 0:128]                            # rows 0-4: w2h, 5-9: w2x
    acc_t = hr_t[:, 0:1] * t_w2[0:1, :]
    for k in range(1, 5):
        acc_t = acc_t + hr_t[:, k:k + 1] * t_w2[k:k + 1, :]
    for k in range(5):
        acc_t = acc_t + turn[:, k:k + 1] * t_w2[5 + k:6 + k, :]
    t_out = acc_t + vrow(_VP_T_B2, 128)

    # --- pt branch (in=192, hidden=192, out=128), residual=True ---------------
    mixed_p = _mxu(pt_his, pw[...])                    # (B, 320)
    x2x_p = mixed_p[:, 0:128]
    h_p = mixed_p[:, 128:320] + vrow(_VP_P_B1, 192)
    hr_p = _ln_relu(h_p, vrow(_VP_P_G, 192), vrow(_VP_P_BE, 192))
    p_out = _mxu(hr_p, p_w2h[...]) + x2x_p + vrow(_VP_P_B2, 128)

    # --- fusion block: cat([v, t, p], 1) @ W1 via split row blocks of W1 -------
    h_f = (_mxu(v_out, f_w1[0:128, :]) + _mxu(t_out, f_w1[128:256, :])
           + _mxu(p_out, f_w1[256:384, :]) + vrow(_VP_F_B1, 384))
    hr_f = _ln_relu(h_f, vrow(_VP_F_G, 384), vrow(_VP_F_BE, 384))
    prompt = _mxu(hr_f, f_w2[...]) + vrow(_VP_F_B2, 192)

    # --- output head ------------------------------------------------------------
    x_o = pt_his + prompt
    h_o = _mxu(x_o, o_w1[...]) + vrow(_VP_O_B1, 192)
    hr_o = _ln_relu(h_o, vrow(_VP_O_G, 192), vrow(_VP_O_BE, 192))
    pt = _mxu(hr_o, o_w2[...]) + vrow(_VP_O_B2, 192)
    pt_ref[...] = pt

    # --- fused MSE epilogue: scalar written straight to SMEM --------------------
    d = fut - pt
    loss_ref[0, 0] = jnp.sum(d * d) * (1.0 / float(d.shape[0] * d.shape[1]))


# ----------------------------------------------------------------------------
# Parameter construction (deterministic, PyTorch-default-style uniform init),
# packed host-side once so the kernel sees only 11 parameter arrays.
# ----------------------------------------------------------------------------
def _dense_params(key, din, dout):
    k1, k2 = jax.random.split(key)
    bound = 1.0 / float(din) ** 0.5
    w = jax.random.uniform(k1, (din, dout), jnp.float32, -bound, bound)
    b = jax.random.uniform(k2, (dout,), jnp.float32, -bound, bound)
    return w, b


def _linear_block_params(key, input_dim, output_dim, residual=False):
    # Mirrors the PyTorch `Linear` block: hidden_dim = input_dim,
    # layer2 input dim = hidden_dim (+ input_dim if residual).
    hidden_dim = input_dim
    layer2_dim = hidden_dim + input_dim if residual else hidden_dim
    k1, k2 = jax.random.split(key)
    w1, b1 = _dense_params(k1, input_dim, hidden_dim)
    w2, b2 = _dense_params(k2, layer2_dim, output_dim)
    return dict(w1=w1, b1=b1,
                gamma=jnp.ones((hidden_dim,), jnp.float32),
                beta=jnp.zeros((hidden_dim,), jnp.float32),
                w2=w2, b2=b2)


def _pack_rows(rows, n_rows, width):
    out = jnp.zeros((n_rows, width), jnp.float32)
    for i, r in rows:
        r = jnp.asarray(r, jnp.float32).reshape(-1)
        out = out.at[i, :r.shape[0]].set(r)
    return out


def make_model_params(key):
    ks = jax.random.split(key, 6)
    v = _linear_block_params(ks[0], 240, 128, residual=True)   # hidden 240
    t = _linear_block_params(ks[1], 5, 128, residual=True)     # hidden 5
    p = _linear_block_params(ks[2], 192, 128, residual=True)   # hidden 192
    f = _linear_block_params(ks[3], 3 * 128, 192)              # hidden 384
    o = _linear_block_params(ks[4], 192, 192)                  # hidden 192
    d_w, d_b = _dense_params(ks[5], 240, 192)                  # diffusion proxy

    # Residual layer2 split: rows [:hidden] multiply relu(LN(.)), rows [hidden:]
    # multiply x (torch.cat([out, x], -1) ordering).
    v_w2h, v_w2x = v["w2"][:240], v["w2"][240:]
    p_w2h, p_w2x = p["w2"][:192], p["w2"][192:]

    vec_pack = _pack_rows([
        (_VP_V_B1, v["b1"]), (_VP_V_G, v["gamma"]), (_VP_V_BE, v["beta"]),
        (_VP_P_B1, p["b1"]), (_VP_P_G, p["gamma"]), (_VP_P_BE, p["beta"]),
        (_VP_F_B1, f["b1"]), (_VP_F_G, f["gamma"]), (_VP_F_BE, f["beta"]),
        (_VP_O_B1, o["b1"]), (_VP_O_G, o["gamma"]), (_VP_O_BE, o["beta"]),
        (_VP_D_B, d_b), (_VP_F_B2, f["b2"]), (_VP_O_B2, o["b2"]),
        (_VP_V_B2, v["b2"]), (_VP_T_B2, t["b2"]), (_VP_P_B2, p["b2"]),
        (_VP_T_B1, t["b1"]), (_VP_T_G, t["gamma"]), (_VP_T_BE, t["beta"]),
    ], _VP_ROWS, 384)

    twp = jnp.zeros((_TW_ROWS, 128), jnp.float32)
    twp = twp.at[0:5, 0:5].set(t["w1"])
    twp = twp.at[8:18, :].set(t["w2"])

    bf = jnp.bfloat16
    return {
        "d_w": d_w.astype(bf),                                             # (240,192)
        "vw": jnp.concatenate([v_w2x, v["w1"]], axis=1).astype(bf),        # (240,368)
        "v_w2h": v_w2h.astype(bf),                                         # (240,128)
        "pw": jnp.concatenate([p_w2x, p["w1"]], axis=1).astype(bf),        # (192,320)
        "p_w2h": p_w2h.astype(bf),                                         # (192,128)
        "f_w1": f["w1"].astype(bf),                                        # (384,384)
        "f_w2": f["w2"].astype(bf),                                        # (384,192)
        "o_w1": o["w1"].astype(bf),                                        # (192,192)
        "o_w2": o["w2"].astype(bf),                                        # (192,192)
        "vec_pack": vec_pack,                                              # (24,384) f32
        "t_wpack": twp,                                                    # (24,128) f32
    }


_PARAM_ORDER = ("d_w", "vw", "v_w2h", "pw", "p_w2h", "f_w1", "f_w2",
                "o_w1", "o_w2", "vec_pack", "t_wpack")


# ----------------------------------------------------------------------------
# Model forward: one fused, grid-less pallas_call
# ----------------------------------------------------------------------------
def model_forward(params, history_price, history_vol, history_turn, future_price,
                  val=False):
    bs = history_price.shape[0]
    hp = history_price.reshape(bs, -1).astype(jnp.float32)     # (bs, 240)
    vol = history_vol.reshape(bs, -1).astype(jnp.float32)      # (bs, 240)
    turn = history_turn.reshape(bs, -1).astype(jnp.float32)    # (bs, 5)
    fut = future_price.reshape(bs, -1).astype(jnp.float32)     # (bs, 192)

    args = (hp, vol, turn, fut) + tuple(params[k] for k in _PARAM_ORDER)
    vmem = pl.BlockSpec(memory_space=pltpu.MemorySpace.VMEM)
    smem = pl.BlockSpec(memory_space=pltpu.MemorySpace.SMEM)

    pt, loss = pl.pallas_call(
        _fused_forward_kernel,
        out_shape=(jax.ShapeDtypeStruct((bs, 192), jnp.float32),
                   jax.ShapeDtypeStruct((1, 1), jnp.float32)),
        in_specs=[vmem] * len(args),
        out_specs=(vmem, smem),
    )(*args)

    # TODO(synk): val=True DDIM sampling path requires the undefined diffusion
    # sampler (TransformerConcatLinear / DiffusionTraj); pt_is_ stays None.
    pt_is_ = None
    return pt, pt_is_, loss[0, 0]


# ----------------------------------------------------------------------------
if __name__ == "__main__":
    key = jax.random.PRNGKey(0)
    pkey, k1, k2, k3, k4 = jax.random.split(key, 5)
    params = make_model_params(pkey)

    bs = 2
    history_price = jax.random.normal(k1, (bs, 48, 5), jnp.float32)   # -> (bs, 240)
    history_vol = jax.random.normal(k2, (bs, 48, 5), jnp.float32)     # -> (bs, 240)
    history_turn = jax.random.normal(k3, (bs, 5), jnp.float32)        # -> (bs, 5)
    future_price = jax.random.normal(k4, (bs, 192), jnp.float32)      # -> (bs, 192)

    fwd = jax.jit(model_forward)
    pt, pt_is_, loss = fwd(params, history_price, history_vol,
                           history_turn, future_price)
    jax.block_until_ready((pt, loss))
    assert pt.shape == (bs, 192)
    assert pt_is_ is None
    assert loss.shape == ()
    assert bool(jnp.isfinite(loss))
    print("KERNEL_OK")
</pallas_src>

<mosaic_0001>
module attributes {stable_mosaic.version = 11 : i64} {
  func.func @_fused_forward_kernel(%arg0: memref<2x240xf32, #tpu.memory_space<vmem>>, %arg1: memref<2x240xf32, #tpu.memory_space<vmem>>, %arg2: memref<2x5xf32, #tpu.memory_space<vmem>>, %arg3: memref<2x192xf32, #tpu.memory_space<vmem>>, %arg4: memref<240x192xbf16, #tpu.memory_space<vmem>>, %arg5: memref<240x368xbf16, #tpu.memory_space<vmem>>, %arg6: memref<240x128xbf16, #tpu.memory_space<vmem>>, %arg7: memref<192x320xbf16, #tpu.memory_space<vmem>>, %arg8: memref<192x128xbf16, #tpu.memory_space<vmem>>, %arg9: memref<384x384xbf16, #tpu.memory_space<vmem>>, %arg10: memref<384x192xbf16, #tpu.memory_space<vmem>>, %arg11: memref<192x192xbf16, #tpu.memory_space<vmem>>, %arg12: memref<192x192xbf16, #tpu.memory_space<vmem>>, %arg13: memref<24x384xf32, #tpu.memory_space<vmem>>, %arg14: memref<24x128xf32, #tpu.memory_space<vmem>>, %arg15: memref<2x192xf32, #tpu.memory_space<vmem>>, %arg16: memref<1x1xf32, #tpu.memory_space<smem>>) attributes {dimension_semantics = [], scalar_prefetch = 0 : i64, scratch_operands = 0 : i64, tpu.core_type = #tpu.core_type<tc>} {
    %c0 = arith.constant 0 : index
    %c0_0 = arith.constant 0 : index
    %0 = vector.load %arg0[%c0, %c0_0] : memref<2x240xf32, #tpu.memory_space<vmem>>, vector<2x240xf32>
    %c0_1 = arith.constant 0 : index
    %c0_2 = arith.constant 0 : index
    %1 = vector.load %arg1[%c0_1, %c0_2] : memref<2x240xf32, #tpu.memory_space<vmem>>, vector<2x240xf32>
    %c0_3 = arith.constant 0 : index
    %c0_4 = arith.constant 0 : index
    %2 = vector.load %arg2[%c0_3, %c0_4] : memref<2x5xf32, #tpu.memory_space<vmem>>, vector<2x5xf32>
    %c0_5 = arith.constant 0 : index
    %c0_6 = arith.constant 0 : index
    %3 = vector.load %arg3[%c0_5, %c0_6] : memref<2x192xf32, #tpu.memory_space<vmem>>, vector<2x192xf32>
    %c0_7 = arith.constant 0 : index
    %c0_8 = arith.constant 0 : index
    %4 = vector.load %arg4[%c0_7, %c0_8] : memref<240x192xbf16, #tpu.memory_space<vmem>>, vector<240x192xbf16>
    %5 = arith.truncf %0 : vector<2x240xf32> to vector<2x240xbf16>
    %cst = arith.constant dense<0.000000e+00> : vector<2x192xf32>
    %6 = tpu.matmul %5, %4, %cst {dimension_numbers = #tpu.dot_dimension_numbers<[1], [0], [0], [1], [0, 0, 1, 1], [], []>} : vector<2x240xbf16>, vector<240x192xbf16>, vector<2x192xf32> -> vector<2x192xf32>
    %c12 = arith.constant 12 : index
    %c0_9 = arith.constant 0 : index
    %7 = vector.load %arg13[%c12, %c0_9] : memref<24x384xf32, #tpu.memory_space<vmem>>, vector<1x192xf32>
    %8 = vector.broadcast %7 : vector<1x192xf32> to vector<2x192xf32>
    %9 = arith.addf %6, %8 : vector<2x192xf32>
    %c0_10 = arith.constant 0 : index
    %c0_11 = arith.constant 0 : index
    %10 = vector.load %arg5[%c0_10, %c0_11] : memref<240x368xbf16, #tpu.memory_space<vmem>>, vector<240x368xbf16>
    %11 = arith.truncf %1 : vector<2x240xf32> to vector<2x240xbf16>
    %cst_12 = arith.constant dense<0.000000e+00> : vector<2x368xf32>
    %12 = tpu.matmul %11, %10, %cst_12 {dimension_numbers = #tpu.dot_dimension_numbers<[1], [0], [0], [1], [0, 0, 1, 1], [], []>} : vector<2x240xbf16>, vector<240x368xbf16>, vector<2x368xf32> -> vector<2x368xf32>
    %13 = vector.extract_strided_slice %12 {offsets = [0, 0], sizes = [2, 128], strides = [1, 1]} : vector<2x368xf32> to vector<2x128xf32>
    %14 = vector.extract_strided_slice %12 {offsets = [0, 128], sizes = [2, 240], strides = [1, 1]} : vector<2x368xf32> to vector<2x240xf32>
    %c0_13 = arith.constant 0 : index
    %c0_14 = arith.constant 0 : index
    %15 = vector.load %arg13[%c0_13, %c0_14] : memref<24x384xf32, #tpu.memory_space<vmem>>, vector<1x240xf32>
    %16 = vector.broadcast %15 : vector<1x240xf32> to vector<2x240xf32>
    %17 = arith.addf %14, %16 : vector<2x240xf32>
    %c1 = arith.constant 1 : index
    %c0_15 = arith.constant 0 : index
    %18 = vector.load %arg13[%c1, %c0_15] : memref<24x384xf32, #tpu.memory_space<vmem>>, vector<1x240xf32>
    %c2 = arith.constant 2 : index
    %c0_16 = arith.constant 0 : index
    %19 = vector.load %arg13[%c2, %c0_16] : memref<24x384xf32, #tpu.memory_space<vmem>>, vector<1x240xf32>
    %cst_17 = arith.constant dense<0.000000e+00> : vector<2xf32>
    %20 = vector.multi_reduction <add>, %17, %cst_17 [1] : vector<2x240xf32> to vector<2xf32>
    %21 = vector.shape_cast %20 : vector<2xf32> to vector<2x1xf32>
    %cst_18 = arith.constant 2.400000e+02 : f32
    %22 = vector.broadcast %cst_18 : f32 to vector<2x1xf32>
    %23 = arith.divf %21, %22 : vector<2x1xf32>
    %24 = vector.broadcast %23 : vector<2x1xf32> to vector<2x240xf32>
    %25 = arith.subf %17, %24 : vector<2x240xf32>
    %26 = vector.broadcast %23 : vector<2x1xf32> to vector<2x240xf32>
    %27 = arith.subf %17, %26 : vector<2x240xf32>
    %28 = arith.mulf %25, %27 : vector<2x240xf32>
    %cst_19 = arith.constant dense<0.000000e+00> : vector<2xf32>
    %29 = vector.multi_reduction <add>, %28, %cst_19 [1] : vector<2x240xf32> to vector<2xf32>
    %30 = vector.shape_cast %29 : vector<2xf32> to vector<2x1xf32>
    %cst_20 = arith.constant 2.400000e+02 : f32
    %31 = vector.broadcast %cst_20 : f32 to vector<2x1xf32>
    %32 = arith.divf %30, %31 : vector<2x1xf32>
    %33 = vector.broadcast %23 : vector<2x1xf32> to vector<2x240xf32>
    %34 = arith.subf %17, %33 : vector<2x240xf32>
    %cst_21 = arith.constant 9.99999974E-6 : f32
    %35 = vector.broadcast %cst_21 : f32 to vector<2x1xf32>
    %36 = arith.addf %32, %35 : vector<2x1xf32>
    %37 = math.rsqrt %36 : vector<2x1xf32>
    %38 = vector.broadcast %37 : vector<2x1xf32> to vector<2x240xf32>
    %39 = arith.mulf %34, %38 : vector<2x240xf32>
    %40 = vector.broadcast %18 : vector<1x240xf32> to vector<2x240xf32>
    %41 = arith.mulf %39, %40 : vector<2x240xf32>
    %42 = vector.broadcast %19 : vector<1x240xf32> to vector<2x240xf32>
    %43 = arith.addf %41, %42 : vector<2x240xf32>
    %cst_22 = arith.constant 0.000000e+00 : f32
    %44 = vector.broadcast %cst_22 : f32 to vector<2x240xf32>
    %45 = arith.maximumf %43, %44 : vector<2x240xf32>
    %c0_23 = arith.constant 0 : index
    %c0_24 = arith.constant 0 : index
    %46 = vector.load %arg6[%c0_23, %c0_24] : memref<240x128xbf16, #tpu.memory_space<vmem>>, vector<240x128xbf16>
    %47 = arith.truncf %45 : vector<2x240xf32> to vector<2x240xbf16>
    %cst_25 = arith.constant dense<0.000000e+00> : vector<2x128xf32>
    %48 = tpu.matmul %47, %46, %cst_25 {dimension_numbers = #tpu.dot_dimension_numbers<[1], [0], [0], [1], [0, 0, 1, 1], [], []>} : vector<2x240xbf16>, vector<240x128xbf16>, vector<2x128xf32> -> vector<2x128xf32>
    %49 = arith.addf %48, %13 : vector<2x128xf32>
    %c15 = arith.constant 15 : index
    %c0_26 = arith.constant 0 : index
    %50 = vector.load %arg13[%c15, %c0_26] : memref<24x384xf32, #tpu.memory_space<vmem>>, vector<1x128xf32>
    %51 = vector.broadcast %50 : vector<1x128xf32> to vector<2x128xf32>
    %52 = arith.addf %49, %51 : vector<2x128xf32>
    %c0_27 = arith.constant 0 : index
    %c0_28 = arith.constant 0 : index
    %53 = vector.load %arg14[%c0_27, %c0_28] : memref<24x128xf32, #tpu.memory_space<vmem>>, vector<5x5xf32>
    %54 = vector.extract_strided_slice %2 {offsets = [0, 0], sizes = [2, 1], strides = [1, 1]} : vector<2x5xf32> to vector<2x1xf32>
    %55 = vector.extract_strided_slice %53 {offsets = [0, 0], sizes = [1, 5], strides = [1, 1]} : vector<5x5xf32> to vector<1x5xf32>
    %56 = vector.broadcast %54 : vector<2x1xf32> to vector<2x5xf32>
    %57 = vector.broadcast %55 : vector<1x5xf32> to vector<2x5xf32>
    %58 = arith.mulf %56, %57 : vector<2x5xf32>
    %59 = vector.extract_strided_slice %2 {offsets = [0, 1], sizes = [2, 1], strides = [1, 1]} : vector<2x5xf32> to vector<2x1xf32>
    %60 = vector.extract_strided_slice %53 {offsets = [1, 0], sizes = [1, 5], strides = [1, 1]} : vector<5x5xf32> to vector<1x5xf32>
    %61 = vector.broadcast %59 : vector<2x1xf32> to vector<2x5xf32>
    %62 = vector.broadcast %60 : vector<1x5xf32> to vector<2x5xf32>
    %63 = arith.mulf %61, %62 : vector<2x5xf32>
    %64 = arith.addf %58, %63 : vector<2x5xf32>
    %65 = vector.extract_strided_slice %2 {offsets = [0, 2], sizes = [2, 1], strides = [1, 1]} : vector<2x5xf32> to vector<2x1xf32>
    %66 = vector.extract_strided_slice %53 {offsets = [2, 0], sizes = [1, 5], strides = [1, 1]} : vector<5x5xf32> to vector<1x5xf32>
    %67 = vector.broadcast %65 : vector<2x1xf32> to vector<2x5xf32>
    %68 = vector.broadcast %66 : vector<1x5xf32> to vector<2x5xf32>
    %69 = arith.mulf %67, %68 : vector<2x5xf32>
    %70 = arith.addf %64, %69 : vector<2x5xf32>
    %71 = vector.extract_strided_slice %2 {offsets = [0, 3], sizes = [2, 1], strides = [1, 1]} : vector<2x5xf32> to vector<2x1xf32>
    %72 = vector.extract_strided_slice %53 {offsets = [3, 0], sizes = [1, 5], strides = [1, 1]} : vector<5x5xf32> to vector<1x5xf32>
    %73 = vector.broadcast %71 : vector<2x1xf32> to vector<2x5xf32>
    %74 = vector.broadcast %72 : vector<1x5xf32> to vector<2x5xf32>
    %75 = arith.mulf %73, %74 : vector<2x5xf32>
    %76 = arith.addf %70, %75 : vector<2x5xf32>
    %77 = vector.extract_strided_slice %2 {offsets = [0, 4], sizes = [2, 1], strides = [1, 1]} : vector<2x5xf32> to vector<2x1xf32>
    %78 = vector.extract_strided_slice %53 {offsets = [4, 0], sizes = [1, 5], strides = [1, 1]} : vector<5x5xf32> to vector<1x5xf32>
    %79 = vector.broadcast %77 : vector<2x1xf32> to vector<2x5xf32>
    %80 = vector.broadcast %78 : vector<1x5xf32> to vector<2x5xf32>
    %81 = arith.mulf %79, %80 : vector<2x5xf32>
    %82 = arith.addf %76, %81 : vector<2x5xf32>
    %c18 = arith.constant 18 : index
    %c0_29 = arith.constant 0 : index
    %83 = vector.load %arg13[%c18, %c0_29] : memref<24x384xf32, #tpu.memory_space<vmem>>, vector<1x5xf32>
    %84 = vector.broadcast %83 : vector<1x5xf32> to vector<2x5xf32>
    %85 = arith.addf %82, %84 : vector<2x5xf32>
    %c19 = arith.constant 19 : index
    %c0_30 = arith.constant 0 : index
    %86 = vector.load %arg13[%c19, %c0_30] : memref<24x384xf32, #tpu.memory_space<vmem>>, vector<1x5xf32>
    %c20 = arith.constant 20 : index
    %c0_31 = arith.constant 0 : index
    %87 = vector.load %arg13[%c20, %c0_31] : memref<24x384xf32, #tpu.memory_space<vmem>>, vector<1x5xf32>
    %cst_32 = arith.constant dense<0.000000e+00> : vector<2xf32>
    %88 = vector.multi_reduction <add>, %85, %cst_32 [1] : vector<2x5xf32> to vector<2xf32>
    %89 = vector.shape_cast %88 : vector<2xf32> to vector<2x1xf32>
    %cst_33 = arith.constant 5.000000e+00 : f32
    %90 = vector.broadcast %cst_33 : f32 to vector<2x1xf32>
    %91 = arith.divf %89, %90 : vector<2x1xf32>
    %92 = vector.broadcast %91 : vector<2x1xf32> to vector<2x5xf32>
    %93 = arith.subf %85, %92 : vector<2x5xf32>
    %94 = vector.broadcast %91 : vector<2x1xf32> to vector<2x5xf32>
    %95 = arith.subf %85, %94 : vector<2x5xf32>
    %96 = arith.mulf %93, %95 : vector<2x5xf32>
    %cst_34 = arith.constant dense<0.000000e+00> : vector<2xf32>
    %97 = vector.multi_reduction <add>, %96, %cst_34 [1] : vector<2x5xf32> to vector<2xf32>
    %98 = vector.shape_cast %97 : vector<2xf32> to vector<2x1xf32>
    %cst_35 = arith.constant 5.000000e+00 : f32
    %99 = vector.broadcast %cst_35 : f32 to vector<2x1xf32>
    %100 = arith.divf %98, %99 : vector<2x1xf32>
    %101 = vector.broadcast %91 : vector<2x1xf32> to vector<2x5xf32>
    %102 = arith.subf %85, %101 : vector<2x5xf32>
    %cst_36 = arith.constant 9.99999974E-6 : f32
    %103 = vector.broadcast %cst_36 : f32 to vector<2x1xf32>
    %104 = arith.addf %100, %103 : vector<2x1xf32>
    %105 = math.rsqrt %104 : vector<2x1xf32>
    %106 = vector.broadcast %105 : vector<2x1xf32> to vector<2x5xf32>
    %107 = arith.mulf %102, %106 : vector<2x5xf32>
    %108 = vector.broadcast %86 : vector<1x5xf32> to vector<2x5xf32>
    %109 = arith.mulf %107, %108 : vector<2x5xf32>
    %110 = vector.broadcast %87 : vector<1x5xf32> to vector<2x5xf32>
    %111 = arith.addf %109, %110 : vector<2x5xf32>
    %cst_37 = arith.constant 0.000000e+00 : f32
    %112 = vector.broadcast %cst_37 : f32 to vector<2x5xf32>
    %113 = arith.maximumf %111, %112 : vector<2x5xf32>
    %c8 = arith.constant 8 : index
    %c0_38 = arith.constant 0 : index
    %114 = vector.load %arg14[%c8, %c0_38] : memref<24x128xf32, #tpu.memory_space<vmem>>, vector<10x128xf32>
    %115 = vector.extract_strided_slice %113 {offsets = [0, 0], sizes = [2, 1], strides = [1, 1]} : vector<2x5xf32> to vector<2x1xf32>
    %116 = vector.extract_strided_slice %114 {offsets = [0, 0], sizes = [1, 128], strides = [1, 1]} : vector<10x128xf32> to vector<1x128xf32>
    %117 = vector.broadcast %115 : vector<2x1xf32> to vector<2x128xf32>
    %118 = vector.broadcast %116 : vector<1x128xf32> to vector<2x128xf32>
    %119 = arith.mulf %117, %118 : vector<2x128xf32>
    %120 = vector.extract_strided_slice %113 {offsets = [0, 1], sizes = [2, 1], strides = [1, 1]} : vector<2x5xf32> to vector<2x1xf32>
    %121 = vector.extract_strided_slice %114 {offsets = [1, 0], sizes = [1, 128], strides = [1, 1]} : vector<10x128xf32> to vector<1x128xf32>
    %122 = vector.broadcast %120 : vector<2x1xf32> to vector<2x128xf32>
    %123 = vector.broadcast %121 : vector<1x128xf32> to vector<2x128xf32>
    %124 = arith.mulf %122, %123 : vector<2x128xf32>
    %125 = arith.addf %119, %124 : vector<2x128xf32>
    %126 = vector.extract_strided_slice %113 {offsets = [0, 2], sizes = [2, 1], strides = [1, 1]} : vector<2x5xf32> to vector<2x1xf32>
    %127 = vector.extract_strided_slice %114 {offsets = [2, 0], sizes = [1, 128], strides = [1, 1]} : vector<10x128xf32> to vector<1x128xf32>
    %128 = vector.broadcast %126 : vector<2x1xf32> to vector<2x128xf32>
    %129 = vector.broadcast %127 : vector<1x128xf32> to vector<2x128xf32>
    %130 = arith.mulf %128, %129 : vector<2x128xf32>
    %131 = arith.addf %125, %130 : vector<2x128xf32>
    %132 = vector.extract_strided_slice %113 {offsets = [0, 3], sizes = [2, 1], strides = [1, 1]} : vector<2x5xf32> to vector<2x1xf32>
    %133 = vector.extract_strided_slice %114 {offsets = [3, 0], sizes = [1, 128], strides = [1, 1]} : vector<10x128xf32> to vector<1x128xf32>
    %134 = vector.broadcast %132 : vector<2x1xf32> to vector<2x128xf32>
    %135 = vector.broadcast %133 : vector<1x128xf32> to vector<2x128xf32>
    %136 = arith.mulf %134, %135 : vector<2x128xf32>
    %137 = arith.addf %131, %136 : vector<2x128xf32>
    %138 = vector.extract_strided_slice %113 {offsets = [0, 4], sizes = [2, 1], strides = [1, 1]} : vector<2x5xf32> to vector<2x1xf32>
    %139 = vector.extract_strided_slice %114 {offsets = [4, 0], sizes = [1, 128], strides = [1, 1]} : vector<10x128xf32> to vector<1x128xf32>
    %140 = vector.broadcast %138 : vector<2x1xf32> to vector<2x128xf32>
    %141 = vector.broadcast %139 : vector<1x128xf32> to vector<2x128xf32>
    %142 = arith.mulf %140, %141 : vector<2x128xf32>
    %143 = arith.addf %137, %142 : vector<2x128xf32>
    %144 = vector.extract_strided_slice %2 {offsets = [0, 0], sizes = [2, 1], strides = [1, 1]} : vector<2x5xf32> to vector<2x1xf32>
    %145 = vector.extract_strided_slice %114 {offsets = [5, 0], sizes = [1, 128], strides = [1, 1]} : vector<10x128xf32> to vector<1x128xf32>
    %146 = vector.broadcast %144 : vector<2x1xf32> to vector<2x128xf32>
    %147 = vector.broadcast %145 : vector<1x128xf32> to vector<2x128xf32>
    %148 = arith.mulf %146, %147 : vector<2x128xf32>
    %149 = arith.addf %143, %148 : vector<2x128xf32>
    %150 = vector.extract_strided_slice %2 {offsets = [0, 1], sizes = [2, 1], strides = [1, 1]} : vector<2x5xf32> to vector<2x1xf32>
    %151 = vector.extract_strided_slice %114 {offsets = [6, 0], sizes = [1, 128], strides = [1, 1]} : vector<10x128xf32> to vector<1x128xf32>
    %152 = vector.broadcast %150 : vector<2x1xf32> to vector<2x128xf32>
    %153 = vector.broadcast %151 : vector<1x128xf32> to vector<2x128xf32>
    %154 = arith.mulf %152, %153 : vector<2x128xf32>
    %155 = arith.addf %149, %154 : vector<2x128xf32>
    %156 = vector.extract_strided_slice %2 {offsets = [0, 2], sizes = [2, 1], strides = [1, 1]} : vector<2x5xf32> to vector<2x1xf32>
    %157 = vector.extract_strided_slice %114 {offsets = [7, 0], sizes = [1, 128], strides = [1, 1]} : vector<10x128xf32> to vector<1x128xf32>
    %158 = vector.broadcast %156 : vector<2x1xf32> to vector<2x128xf32>
    %159 = vector.broadcast %157 : vector<1x128xf32> to vector<2x128xf32>
    %160 = arith.mulf %158, %159 : vector<2x128xf32>
    %161 = arith.addf %155, %160 : vector<2x128xf32>
    %162 = vector.extract_strided_slice %2 {offsets = [0, 3], sizes = [2, 1], strides = [1, 1]} : vector<2x5xf32> to vector<2x1xf32>
    %163 = vector.extract_strided_slice %114 {offsets = [8, 0], sizes = [1, 128], strides = [1, 1]} : vector<10x128xf32> to vector<1x128xf32>
    %164 = vector.broadcast %162 : vector<2x1xf32> to vector<2x128xf32>
    %165 = vector.broadcast %163 : vector<1x128xf32> to vector<2x128xf32>
    %166 = arith.mulf %164, %165 : vector<2x128xf32>
    %167 = arith.addf %161, %166 : vector<2x128xf32>
    %168 = vector.extract_strided_slice %2 {offsets = [0, 4], sizes = [2, 1], strides = [1, 1]} : vector<2x5xf32> to vector<2x1xf32>
    %169 = vector.extract_strided_slice %114 {offsets = [9, 0], sizes = [1, 128], strides = [1, 1]} : vector<10x128xf32> to vector<1x128xf32>
    %170 = vector.broadcast %168 : vector<2x1xf32> to vector<2x128xf32>
    %171 = vector.broadcast %169 : vector<1x128xf32> to vector<2x128xf32>
    %172 = arith.mulf %170, %171 : vector<2x128xf32>
    %173 = arith.addf %167, %172 : vector<2x128xf32>
    %c16 = arith.constant 16 : index
    %c0_39 = arith.constant 0 : index
    %174 = vector.load %arg13[%c16, %c0_39] : memref<24x384xf32, #tpu.memory_space<vmem>>, vector<1x128xf32>
    %175 = vector.broadcast %174 : vector<1x128xf32> to vector<2x128xf32>
    %176 = arith.addf %173, %175 : vector<2x128xf32>
    %c0_40 = arith.constant 0 : index
    %c0_41 = arith.constant 0 : index
    %177 = vector.load %arg7[%c0_40, %c0_41] : memref<192x320xbf16, #tpu.memory_space<vmem>>, vector<192x320xbf16>
    %178 = arith.truncf %9 : vector<2x192xf32> to vector<2x192xbf16>
    %cst_42 = arith.constant dense<0.000000e+00> : vector<2x320xf32>
    %179 = tpu.matmul %178, %177, %cst_42 {dimension_numbers = #tpu.dot_dimension_numbers<[1], [0], [0], [1], [0, 0, 1, 1], [], []>} : vector<2x192xbf16>, vector<192x320xbf16>, vector<2x320xf32> -> vector<2x320xf32>
    %180 = vector.extract_strided_slice %179 {offsets = [0, 0], sizes = [2, 128], strides = [1, 1]} : vector<2x320xf32> to vector<2x128xf32>
    %181 = vector.extract_strided_slice %179 {offsets = [0, 128], sizes = [2, 192], strides = [1, 1]} : vector<2x320xf32> to vector<2x192xf32>
    %c3 = arith.constant 3 : index
    %c0_43 = arith.constant 0 : index
    %182 = vector.load %arg13[%c3, %c0_43] : memref<24x384xf32, #tpu.memory_space<vmem>>, vector<1x192xf32>
    %183 = vector.broadcast %182 : vector<1x192xf32> to vector<2x192xf32>
    %184 = arith.addf %181, %183 : vector<2x192xf32>
    %c4 = arith.constant 4 : index
    %c0_44 = arith.constant 0 : index
    %185 = vector.load %arg13[%c4, %c0_44] : memref<24x384xf32, #tpu.memory_space<vmem>>, vector<1x192xf32>
    %c5 = arith.constant 5 : index
    %c0_45 = arith.constant 0 : index
    %186 = vector.load %arg13[%c5, %c0_45] : memref<24x384xf32, #tpu.memory_space<vmem>>, vector<1x192xf32>
    %cst_46 = arith.constant dense<0.000000e+00> : vector<2xf32>
    %187 = vector.multi_reduction <add>, %184, %cst_46 [1] : vector<2x192xf32> to vector<2xf32>
    %188 = vector.shape_cast %187 : vector<2xf32> to vector<2x1xf32>
    %cst_47 = arith.constant 1.920000e+02 : f32
    %189 = vector.broadcast %cst_47 : f32 to vector<2x1xf32>
    %190 = arith.divf %188, %189 : vector<2x1xf32>
    %191 = vector.broadcast %190 : vector<2x1xf32> to vector<2x192xf32>
    %192 = arith.subf %184, %191 : vector<2x192xf32>
    %193 = vector.broadcast %190 : vector<2x1xf32> to vector<2x192xf32>
    %194 = arith.subf %184, %193 : vector<2x192xf32>
    %195 = arith.mulf %192, %194 : vector<2x192xf32>
    %cst_48 = arith.constant dense<0.000000e+00> : vector<2xf32>
    %196 = vector.multi_reduction <add>, %195, %cst_48 [1] : vector<2x192xf32> to vector<2xf32>
    %197 = vector.shape_cast %196 : vector<2xf32> to vector<2x1xf32>
    %cst_49 = arith.constant 1.920000e+02 : f32
    %198 = vector.broadcast %cst_49 : f32 to vector<2x1xf32>
    %199 = arith.divf %197, %198 : vector<2x1xf32>
    %200 = vector.broadcast %190 : vector<2x1xf32> to vector<2x192xf32>
    %201 = arith.subf %184, %200 : vector<2x192xf32>
    %cst_50 = arith.constant 9.99999974E-6 : f32
    %202 = vector.broadcast %cst_50 : f32 to vector<2x1xf32>
    %203 = arith.addf %199, %202 : vector<2x1xf32>
    %204 = math.rsqrt %203 : vector<2x1xf32>
    %205 = vector.broadcast %204 : vector<2x1xf32> to vector<2x192xf32>
    %206 = arith.mulf %201, %205 : vector<2x192xf32>
    %207 = vector.broadcast %185 : vector<1x192xf32> to vector<2x192xf32>
    %208 = arith.mulf %206, %207 : vector<2x192xf32>
    %209 = vector.broadcast %186 : vector<1x192xf32> to vector<2x192xf32>
    %210 = arith.addf %208, %209 : vector<2x192xf32>
    %cst_51 = arith.constant 0.000000e+00 : f32
    %211 = vector.broadcast %cst_51 : f32 to vector<2x192xf32>
    %212 = arith.maximumf %210, %211 : vector<2x192xf32>
    %c0_52 = arith.constant 0 : index
    %c0_53 = arith.constant 0 : index
    %213 = vector.load %arg8[%c0_52, %c0_53] : memref<192x128xbf16, #tpu.memory_space<vmem>>, vector<192x128xbf16>
    %214 = arith.truncf %212 : vector<2x192xf32> to vector<2x192xbf16>
    %cst_54 = arith.constant dense<0.000000e+00> : vector<2x128xf32>
    %215 = tpu.matmul %214, %213, %cst_54 {dimension_numbers = #tpu.dot_dimension_numbers<[1], [0], [0], [1], [0, 0, 1, 1], [], []>} : vector<2x192xbf16>, vector<192x128xbf16>, vector<2x128xf32> -> vector<2x128xf32>
    %216 = arith.addf %215, %180 : vector<2x128xf32>
    %c17 = arith.constant 17 : index
    %c0_55 = arith.constant 0 : index
    %217 = vector.load %arg13[%c17, %c0_55] : memref<24x384xf32, #tpu.memory_space<vmem>>, vector<1x128xf32>
    %218 = vector.broadcast %217 : vector<1x128xf32> to vector<2x128xf32>
    %219 = arith.addf %216, %218 : vector<2x128xf32>
    %c0_56 = arith.constant 0 : index
    %c0_57 = arith.constant 0 : index
    %220 = vector.load %arg9[%c0_56, %c0_57] : memref<384x384xbf16, #tpu.memory_space<vmem>>, vector<128x384xbf16>
    %221 = arith.truncf %52 : vector<2x128xf32> to vector<2x128xbf16>
    %cst_58 = arith.constant dense<0.000000e+00> : vector<2x384xf32>
    %222 = tpu.matmul %221, %220, %cst_58 {dimension_numbers = #tpu.dot_dimension_numbers<[1], [0], [0], [1], [0, 0, 1, 1], [], []>} : vector<2x128xbf16>, vector<128x384xbf16>, vector<2x384xf32> -> vector<2x384xf32>
    %c128 = arith.constant 128 : index
    %c0_59 = arith.constant 0 : index
    %223 = vector.load %arg9[%c128, %c0_59] : memref<384x384xbf16, #tpu.memory_space<vmem>>, vector<128x384xbf16>
    %224 = arith.truncf %176 : vector<2x128xf32> to vector<2x128xbf16>
    %cst_60 = arith.constant dense<0.000000e+00> : vector<2x384xf32>
    %225 = tpu.matmul %224, %223, %cst_60 {dimension_numbers = #tpu.dot_dimension_numbers<[1], [0], [0], [1], [0, 0, 1, 1], [], []>} : vector<2x128xbf16>, vector<128x384xbf16>, vector<2x384xf32> -> vector<2x384xf32>
    %226 = arith.addf %222, %225 : vector<2x384xf32>
    %c256 = arith.constant 256 : index
    %c0_61 = arith.constant 0 : index
    %227 = vector.load %arg9[%c256, %c0_61] : memref<384x384xbf16, #tpu.memory_space<vmem>>, vector<128x384xbf16>
    %228 = arith.truncf %219 : vector<2x128xf32> to vector<2x128xbf16>
    %cst_62 = arith.constant dense<0.000000e+00> : vector<2x384xf32>
    %229 = tpu.matmul %228, %227, %cst_62 {dimension_numbers = #tpu.dot_dimension_numbers<[1], [0], [0], [1], [0, 0, 1, 1], [], []>} : vector<2x128xbf16>, vector<128x384xbf16>, vector<2x384xf32> -> vector<2x384xf32>
    %230 = arith.addf %226, %229 : vector<2x384xf32>
    %c6 = arith.constant 6 : index
    %c0_63 = arith.constant 0 : index
    %231 = vector.load %arg13[%c6, %c0_63] : memref<24x384xf32, #tpu.memory_space<vmem>>, vector<1x384xf32>
    %232 = vector.broadcast %231 : vector<1x384xf32> to vector<2x384xf32>
    %233 = arith.addf %230, %232 : vector<2x384xf32>
    %c7 = arith.constant 7 : index
    %c0_64 = arith.constant 0 : index
    %234 = vector.load %arg13[%c7, %c0_64] : memref<24x384xf32, #tpu.memory_space<vmem>>, vector<1x384xf32>
    %c8_65 = arith.constant 8 : index
    %c0_66 = arith.constant 0 : index
    %235 = vector.load %arg13[%c8_65, %c0_66] : memref<24x384xf32, #tpu.memory_space<vmem>>, vector<1x384xf32>
    %cst_67 = arith.constant dense<0.000000e+00> : vector<2xf32>
    %236 = vector.multi_reduction <add>, %233, %cst_67 [1] : vector<2x384xf32> to vector<2xf32>
    %237 = vector.shape_cast %236 : vector<2xf32> to vector<2x1xf32>
    %cst_68 = arith.constant 3.840000e+02 : f32
    %238 = vector.broadcast %cst_68 : f32 to vector<2x1xf32>
    %239 = arith.divf %237, %238 : vector<2x1xf32>
    %240 = vector.broadcast %239 : vector<2x1xf32> to vector<2x384xf32>
    %241 = arith.subf %233, %240 : vector<2x384xf32>
    %242 = vector.broadcast %239 : vector<2x1xf32> to vector<2x384xf32>
    %243 = arith.subf %233, %242 : vector<2x384xf32>
    %244 = arith.mulf %241, %243 : vector<2x384xf32>
    %cst_69 = arith.constant dense<0.000000e+00> : vector<2xf32>
    %245 = vector.multi_reduction <add>, %244, %cst_69 [1] : vector<2x384xf32> to vector<2xf32>
    %246 = vector.shape_cast %245 : vector<2xf32> to vector<2x1xf32>
    %cst_70 = arith.constant 3.840000e+02 : f32
    %247 = vector.broadcast %cst_70 : f32 to vector<2x1xf32>
    %248 = arith.divf %246, %247 : vector<2x1xf32>
    %249 = vector.broadcast %239 : vector<2x1xf32> to vector<2x384xf32>
    %250 = arith.subf %233, %249 : vector<2x384xf32>
    %cst_71 = arith.constant 9.99999974E-6 : f32
    %251 = vector.broadcast %cst_71 : f32 to vector<2x1xf32>
    %252 = arith.addf %248, %251 : vector<2x1xf32>
    %253 = math.rsqrt %252 : vector<2x1xf32>
    %254 = vector.broadcast %253 : vector<2x1xf32> to vector<2x384xf32>
    %255 = arith.mulf %250, %254 : vector<2x384xf32>
    %256 = vector.broadcast %234 : vector<1x384xf32> to vector<2x384xf32>
    %257 = arith.mulf %255, %256 : vector<2x384xf32>
    %258 = vector.broadcast %235 : vector<1x384xf32> to vector<2x384xf32>
    %259 = arith.addf %257, %258 : vector<2x384xf32>
    %cst_72 = arith.constant 0.000000e+00 : f32
    %260 = vector.broadcast %cst_72 : f32 to vector<2x384xf32>
    %261 = arith.maximumf %259, %260 : vector<2x384xf32>
    %c0_73 = arith.constant 0 : index
    %c0_74 = arith.constant 0 : index
    %262 = vector.load %arg10[%c0_73, %c0_74] : memref<384x192xbf16, #tpu.memory_space<vmem>>, vector<384x192xbf16>
    %263 = arith.truncf %261 : vector<2x384xf32> to vector<2x384xbf16>
    %cst_75 = arith.constant dense<0.000000e+00> : vector<2x192xf32>
    %264 = tpu.matmul %263, %262, %cst_75 {dimension_numbers = #tpu.dot_dimension_numbers<[1], [0], [0], [1], [0, 0, 1, 1], [], []>} : vector<2x384xbf16>, vector<384x192xbf16>, vector<2x192xf32> -> vector<2x192xf32>
    %c13 = arith.constant 13 : index
    %c0_76 = arith.constant 0 : index
    %265 = vector.load %arg13[%c13, %c0_76] : memref<24x384xf32, #tpu.memory_space<vmem>>, vector<1x192xf32>
    %266 = vector.broadcast %265 : vector<1x192xf32> to vector<2x192xf32>
    %267 = arith.addf %264, %266 : vector<2x192xf32>
    %268 = arith.addf %9, %267 : vector<2x192xf32>
    %c0_77 = arith.constant 0 : index
    %c0_78 = arith.constant 0 : index
    %269 = vector.load %arg11[%c0_77, %c0_78] : memref<192x192xbf16, #tpu.memory_space<vmem>>, vector<192x192xbf16>
    %270 = arith.truncf %268 : vector<2x192xf32> to vector<2x192xbf16>
    %cst_79 = arith.constant dense<0.000000e+00> : vector<2x192xf32>
    %271 = tpu.matmul %270, %269, %cst_79 {dimension_numbers = #tpu.dot_dimension_numbers<[1], [0], [0], [1], [0, 0, 1, 1], [], []>} : vector<2x192xbf16>, vector<192x192xbf16>, vector<2x192xf32> -> vector<2x192xf32>
    %c9 = arith.constant 9 : index
    %c0_80 = arith.constant 0 : index
    %272 = vector.load %arg13[%c9, %c0_80] : memref<24x384xf32, #tpu.memory_space<vmem>>, vector<1x192xf32>
    %273 = vector.broadcast %272 : vector<1x192xf32> to vector<2x192xf32>
    %274 = arith.addf %271, %273 : vector<2x192xf32>
    %c10 = arith.constant 10 : index
    %c0_81 = arith.constant 0 : index
    %275 = vector.load %arg13[%c10, %c0_81] : memref<24x384xf32, #tpu.memory_space<vmem>>, vector<1x192xf32>
    %c11 = arith.constant 11 : index
    %c0_82 = arith.constant 0 : index
    %276 = vector.load %arg13[%c11, %c0_82] : memref<24x384xf32, #tpu.memory_space<vmem>>, vector<1x192xf32>
    %cst_83 = arith.constant dense<0.000000e+00> : vector<2xf32>
    %277 = vector.multi_reduction <add>, %274, %cst_83 [1] : vector<2x192xf32> to vector<2xf32>
    %278 = vector.shape_cast %277 : vector<2xf32> to vector<2x1xf32>
    %cst_84 = arith.constant 1.920000e+02 : f32
    %279 = vector.broadcast %cst_84 : f32 to vector<2x1xf32>
    %280 = arith.divf %278, %279 : vector<2x1xf32>
    %281 = vector.broadcast %280 : vector<2x1xf32> to vector<2x192xf32>
    %282 = arith.subf %274, %281 : vector<2x192xf32>
    %283 = vector.broadcast %280 : vector<2x1xf32> to vector<2x192xf32>
    %284 = arith.subf %274, %283 : vector<2x192xf32>
    %285 = arith.mulf %282, %284 : vector<2x192xf32>
    %cst_85 = arith.constant dense<0.000000e+00> : vector<2xf32>
    %286 = vector.multi_reduction <add>, %285, %cst_85 [1] : vector<2x192xf32> to vector<2xf32>
    %287 = vector.shape_cast %286 : vector<2xf32> to vector<2x1xf32>
    %cst_86 = arith.constant 1.920000e+02 : f32
    %288 = vector.broadcast %cst_86 : f32 to vector<2x1xf32>
    %289 = arith.divf %287, %288 : vector<2x1xf32>
    %290 = vector.broadcast %280 : vector<2x1xf32> to vector<2x192xf32>
    %291 = arith.subf %274, %290 : vector<2x192xf32>
    %cst_87 = arith.constant 9.99999974E-6 : f32
    %292 = vector.broadcast %cst_87 : f32 to vector<2x1xf32>
    %293 = arith.addf %289, %292 : vector<2x1xf32>
    %294 = math.rsqrt %293 : vector<2x1xf32>
    %295 = vector.broadcast %294 : vector<2x1xf32> to vector<2x192xf32>
    %296 = arith.mulf %291, %295 : vector<2x192xf32>
    %297 = vector.broadcast %275 : vector<1x192xf32> to vector<2x192xf32>
    %298 = arith.mulf %296, %297 : vector<2x192xf32>
    %299 = vector.broadcast %276 : vector<1x192xf32> to vector<2x192xf32>
    %300 = arith.addf %298, %299 : vector<2x192xf32>
    %cst_88 = arith.constant 0.000000e+00 : f32
    %301 = vector.broadcast %cst_88 : f32 to vector<2x192xf32>
    %302 = arith.maximumf %300, %301 : vector<2x192xf32>
    %c0_89 = arith.constant 0 : index
    %c0_90 = arith.constant 0 : index
    %303 = vector.load %arg12[%c0_89, %c0_90] : memref<192x192xbf16, #tpu.memory_space<vmem>>, vector<192x192xbf16>
    %304 = arith.truncf %302 : vector<2x192xf32> to vector<2x192xbf16>
    %cst_91 = arith.constant dense<0.000000e+00> : vector<2x192xf32>
    %305 = tpu.matmul %304, %303, %cst_91 {dimension_numbers = #tpu.dot_dimension_numbers<[1], [0], [0], [1], [0, 0, 1, 1], [], []>} : vector<2x192xbf16>, vector<192x192xbf16>, vector<2x192xf32> -> vector<2x192xf32>
    %c14 = arith.constant 14 : index
    %c0_92 = arith.constant 0 : index
    %306 = vector.load %arg13[%c14, %c0_92] : memref<24x384xf32, #tpu.memory_space<vmem>>, vector<1x192xf32>
    %307 = vector.broadcast %306 : vector<1x192xf32> to vector<2x192xf32>
    %308 = arith.addf %305, %307 : vector<2x192xf32>
    %c0_93 = arith.constant 0 : index
    %c0_94 = arith.constant 0 : index
    %309 = vector.load %arg15[%c0_93, %c0_94] : memref<2x192xf32, #tpu.memory_space<vmem>>, vector<2x192xf32>
    tpu.vector_store %arg15[%c0_93, %c0_94], %308 {strides = array<i32>} : memref<2x192xf32, #tpu.memory_space<vmem>>, vector<2x192xf32>,
    %310 = arith.subf %3, %308 : vector<2x192xf32>
    %311 = arith.mulf %310, %310 : vector<2x192xf32>
    %312 = vector.shape_cast %311 : vector<2x192xf32> to vector<1x2x192xf32>
    %cst_95 = arith.constant dense<0.000000e+00> : vector<1xf32>
    %313 = vector.multi_reduction <add>, %312, %cst_95 [1, 2] : vector<1x2x192xf32> to vector<1xf32>
    %314 = vector.shape_cast %313 : vector<1xf32> to vector<1x1x1xf32>
    %315 = vector.extract %314[0, 0, 0] : f32 from vector<1x1x1xf32>
    %cst_96 = arith.constant 0.00260416674 : f32
    %316 = arith.mulf %315, %cst_96 : f32
    %c0_97 = arith.constant 0 : index
    %c0_98 = arith.constant 0 : index
    %317 = memref.load %arg16[%c0_97, %c0_98] : memref<1x1xf32, #tpu.memory_space<smem>>
    memref.store %316, %arg16[%c0_97, %c0_98] : memref<1x1xf32, #tpu.memory_space<smem>>
    return
  }
}

</mosaic_0001>

<llo_original>
// kernel: model_forward.1
$region0: #{model_forward.1}
  #allocation0 [shape = 'u32[]', space=smem, size = 0x4, offset = 0x4, fixed_abs, tag = 'smem constant byte address 0x4 - core index']
  #allocation1 [shape = 'u32[144,128]{1,0:T(1,128)}', space=vmem, size = 0x12000, scoped, tag = 'internal scratch']
  %s0 = inlined_call_operand.vmem [shape: f32[2,240], index: 0, kind: input, shape index: {}]
  %s1 = inlined_call_operand.vmem [shape: f32[2,240], index: 1, kind: input, shape index: {}]
  %s2 = inlined_call_operand.vmem [shape: f32[2,5], index: 2, kind: input, shape index: {}]
  %s3 = inlined_call_operand.vmem [shape: f32[2,192], index: 3, kind: input, shape index: {}]
  %s4 = inlined_call_operand.vmem [shape: bf16[240,192], index: 4, kind: input, shape index: {}]
  %s5 = inlined_call_operand.vmem [shape: bf16[240,368], index: 5, kind: input, shape index: {}]
  %s6 = inlined_call_operand.hbm [shape: bf16[240,128], index: 6, kind: input, shape index: {}]
  %s7 = inlined_call_operand.vmem [shape: bf16[192,320], index: 7, kind: input, shape index: {}]
  %s8 = inlined_call_operand.hbm [shape: bf16[192,128], index: 8, kind: input, shape index: {}]
  %s9 = inlined_call_operand.vmem [shape: bf16[384,384], index: 9, kind: input, shape index: {}]
  %s10 = inlined_call_operand.vmem [shape: bf16[384,192], index: 10, kind: input, shape index: {}]
  %s11 = inlined_call_operand.hbm [shape: bf16[192,192], index: 11, kind: input, shape index: {}]
  %s12 = inlined_call_operand.hbm [shape: bf16[192,192], index: 12, kind: input, shape index: {}]
  %s13 = inlined_call_operand.hbm [shape: f32[24,384], index: 13, kind: input, shape index: {}]
  %s14 = inlined_call_operand.hbm [shape: f32[24,128], index: 14, kind: input, shape index: {}]
  %s15 = inlined_call_operand.hbm [shape: f32[2,192], index: 15, kind: output, shape index: {0}]
  %s16 = inlined_call_operand.hbm [shape: f32[1,1], index: 16, kind: output, shape index: {1}]
  %17 = xla_tuple %s15, %s16
  %s18 = sld [smem:[#allocation0]]
  $region102: #{model_forward.1} parent=0
    _
  %s20 = ssub.s32 1, %s18
  %s21 = scalar_select 0, %s20, %s18
  $region1: #{model_forward.1} parent=0
    #allocation2 [shape = 'u8[61440]{0}', space=vmem, size = 0xf000, scoped, tag = 'input window, operand 6, single buffered']
    #allocation3 [shape = 's32[1]{0}', space=sflag, size = 0x4, scoped, tag = 'scoped memory for model_forward.1']
    #allocation4 [shape = 's32[1]{0}', space=sflag, size = 0x4, scoped, tag = 'scoped memory for model_forward.1']
    #allocation5 [shape = 's32[1]{0}', space=sflag, size = 0x4, scoped, tag = 'scoped memory for model_forward.1']
    #allocation6 [shape = 'u8[49152]{0}', space=vmem, size = 0xc000, scoped, tag = 'input window, operand 8, single buffered']
    #allocation7 [shape = 's32[1]{0}', space=sflag, size = 0x4, scoped, tag = 'scoped memory for model_forward.1']
    #allocation8 [shape = 'u8[98304]{0}', space=vmem, size = 0x18000, scoped, tag = 'input window, operand 11, single buffered']
    #allocation9 [shape = 'u8[98304]{0}', space=vmem, size = 0x18000, scoped, tag = 'input window, operand 12, single buffered']
    #allocation10 [shape = 's32[1]{0}', space=sflag, size = 0x4, scoped, tag = 'scoped memory for model_forward.1']
    #allocation11 [shape = 'u8[36864]{0}', space=vmem, size = 0x9000, scoped, tag = 'input window, operand 13, single buffered']
    #allocation12 [shape = 'u8[12288]{0}', space=vmem, size = 0x3000, scoped, tag = 'input window, operand 14, single buffered']
    #allocation13 [shape = 's32[1]{0}', space=sflag, size = 0x4, scoped, tag = 'scoped memory for model_forward.1']
    #allocation14 [shape = 'u8[2048]{0}', space=vmem, size = 0x800, scoped, tag = 'output window, operand 0, single buffered']
    #allocation15 [shape = 'u8[512]{0}', space=smem, size = 0x200, scoped, tag = 'output window, operand 1, single buffered']
    %22 = vsyncpa [#allocation3], 0
    %23 = vsyncpa [#allocation7], 0
    %24 = vsyncpa [#allocation10], 0
    %25 = vsyncpa [#allocation13], 0
    %26 = vsyncpa [#allocation4], 0
    %27 = vsyncpa [#allocation5], 0
    // Predicated region
    $region2: #{model_forward.1} parent=1 // pred_check
      _
    $region3: #{model_forward.1} parent=1 // pred_check_branch
      %29 = sbr.rel (0) target = $region5
    $region4: #{model_forward.1} parent=1 // pred_region
      _
    $region5: #{model_forward.1} parent=1 // pred_fallthru
      _
    // Predicated region
    $region6: #{model_forward.1} parent=1 // pred_check
      _
    $region7: #{model_forward.1} parent=1 // pred_check_branch
      %31 = sbr.rel (0) target = $region9
    $region8: #{model_forward.1} parent=1 // pred_region
      _
    $region9: #{model_forward.1} parent=1 // pred_fallthru
      _
    // Predicated region
    $region10: #{model_forward.1} parent=1 // pred_check
      _
    $region11: #{model_forward.1} parent=1 // pred_check_branch
      %33 = sbr.rel (0) target = $region13
    $region12: #{model_forward.1} parent=1 // pred_region
      _
    $region13: #{model_forward.1} parent=1 // pred_fallthru
      _
    // Predicated region
    $region14: #{model_forward.1} parent=1 // pred_check
      _
    $region15: #{model_forward.1} parent=1 // pred_check_branch
      %35 = sbr.rel (0) target = $region17
    $region16: #{model_forward.1} parent=1 // pred_region
      _
    $region17: #{model_forward.1} parent=1 // pred_fallthru
      _
    // Predicated region
    $region18: #{model_forward.1} parent=1 // pred_check
      _
    $region19: #{model_forward.1} parent=1 // pred_check_branch
      %37 = sbr.rel (0) target = $region21
    $region20: #{model_forward.1} parent=1 // pred_region
      _
    $region21: #{model_forward.1} parent=1 // pred_fallthru
      _
    // Predicated region
    $region22: #{model_forward.1} parent=1 // pred_check
      _
    $region23: #{model_forward.1} parent=1 // pred_check_branch
      %39 = sbr.rel (0) target = $region25
    $region24: #{model_forward.1} parent=1 // pred_region
      _
    $region25: #{model_forward.1} parent=1 // pred_fallthru
      _
    // Predicated region
    $region26: #{model_forward.1} parent=1 // pred_check
      _
    $region27: #{model_forward.1} parent=1 // pred_check_branch
      %41 = sbr.rel (0) target = $region29
    $region28: #{model_forward.1} parent=1 // pred_region
      %s43 = ssub.s32 1920, 1920
      %44 = vsyncadd [#allocation3], %s43
      %s45 = sshll.u32 [#allocation2], 4
      %s46 = int_to_ptr.vmem [resolvable:$true] %s45
      %51 = dma.hbm_to_vmem [thread:$0]  %s6, 1920, %s46, [#allocation3], 64, 64, 4
    $region29: #{model_forward.1} parent=1 // pred_fallthru
      _
    // Predicated region
    $region30: #{model_forward.1} parent=1 // pred_check
      _
    $region31: #{model_forward.1} parent=1 // pred_check_branch
      %53 = sbr.rel (0) target = $region33
    $region32: #{model_forward.1} parent=1 // pred_region
      _
    $region33: #{model_forward.1} parent=1 // pred_fallthru
      _
    // Predicated region
    $region34: #{model_forward.1} parent=1 // pred_check
      _
    $region35: #{model_forward.1} parent=1 // pred_check_branch
      %55 = sbr.rel (0) target = $region37
    $region36: #{model_forward.1} parent=1 // pred_region
      %s57 = ssub.s32 1536, 1536
      %58 = vsyncadd [#allocation7], %s57
      %s59 = sshll.u32 [#allocation6], 4
      %s60 = int_to_ptr.vmem [resolvable:$true] %s59
      %65 = dma.hbm_to_vmem [thread:$0]  %s8, 1536, %s60, [#allocation7], 64, 64, 4
    $region37: #{model_forward.1} parent=1 // pred_fallthru
      _
    // Predicated region
    $region38: #{model_forward.1} parent=1 // pred_check
      _
    $region39: #{model_forward.1} parent=1 // pred_check_branch
      %67 = sbr.rel (0) target = $region41
    $region40: #{model_forward.1} parent=1 // pred_region
      _
    $region41: #{model_forward.1} parent=1 // pred_fallthru
      _
    // Predicated region
    $region42: #{model_forward.1} parent=1 // pred_check
      _
    $region43: #{model_forward.1} parent=1 // pred_check_branch
      %69 = sbr.rel (0) target = $region45
    $region44: #{model_forward.1} parent=1 // pred_region
      _
    $region45: #{model_forward.1} parent=1 // pred_fallthru
      _
    // Predicated region
    $region46: #{model_forward.1} parent=1 // pred_check
      _
    $region47: #{model_forward.1} parent=1 // pred_check_branch
      %71 = sbr.rel (0) target = $region49
    $region48: #{model_forward.1} parent=1 // pred_region
      %s73 = ssub.s32 3072, 3072
      %74 = vsyncadd [#allocation7], %s73
      %s75 = sshll.u32 [#allocation8], 4
      %s76 = int_to_ptr.vmem [resolvable:$true] %s75
      %81 = dma.hbm_to_vmem [thread:$0]  %s11, 3072, %s76, [#allocation7], 128, 128, 8
    $region49: #{model_forward.1} parent=1 // pred_fallthru
      _
    // Predicated region
    $region50: #{model_forward.1} parent=1 // pred_check
      _
    $region51: #{model_forward.1} parent=1 // pred_check_branch
      %83 = sbr.rel (0) target = $region53
    $region52: #{model_forward.1} parent=1 // pred_region
      %s85 = ssub.s32 3072, 3072
      %86 = vsyncadd [#allocation10], %s85
      %s87 = sshll.u32 [#allocation9], 4
      %s88 = int_to_ptr.vmem [resolvable:$true] %s87
      %93 = dma.hbm_to_vmem [thread:$0]  %s12, 3072, %s88, [#allocation10], 128, 128, 8
    $region53: #{model_forward.1} parent=1 // pred_fallthru
      _
    // Predicated region
    $region54: #{model_forward.1} parent=1 // pred_check
      _
    $region55: #{model_forward.1} parent=1 // pred_check_branch
      %95 = sbr.rel (0) target = $region57
    $region56: #{model_forward.1} parent=1 // pred_region
      %s97 = ssub.s32 1152, 1152
      %98 = vsyncadd [#allocation10], %s97
      %s99 = sshll.u32 [#allocation11], 4
      %s100 = int_to_ptr.vmem [resolvable:$true] %s99
      %105 = dma.hbm_to_vmem [thread:$0]  %s13, 1152, %s100, [#allocation10], 384, 384, 24
    $region57: #{model_forward.1} parent=1 // pred_fallthru
      _
    // Predicated region
    $region58: #{model_forward.1} parent=1 // pred_check
      _
    $region59: #{model_forward.1} parent=1 // pred_check_branch
      %107 = sbr.rel (0) target = $region61
    $region60: #{model_forward.1} parent=1 // pred_region
      %s109 = ssub.s32 384, 384
      %110 = vsyncadd [#allocation13], %s109
      %s111 = sshll.u32 [#allocation12], 4
      %s112 = int_to_ptr.vmem [resolvable:$true] %s111
      %117 = dma.hbm_to_vmem [thread:$0]  %s14, 384, %s112, [#allocation13], 128, 128, 8
    $region61: #{model_forward.1} parent=1 // pred_fallthru
      _
    // Predicated region
    $region62: #{model_forward.1} parent=1 // pred_check
      _
    $region63: #{model_forward.1} parent=1 // pred_check_branch
      %119 = sbr.rel (0) target = $region65
    $region64: #{model_forward.1} parent=1 // pred_region
      %120 = dma.done [#allocation3], 1920
    $region65: #{model_forward.1} parent=1 // pred_fallthru
      _
    // Predicated region
    $region66: #{model_forward.1} parent=1 // pred_check
      _
    $region67: #{model_forward.1} parent=1 // pred_check_branch
      %122 = sbr.rel (0) target = $region69
    $region68: #{model_forward.1} parent=1 // pred_region
      %123 = dma.done [#allocation7], 1536
    $region69: #{model_forward.1} parent=1 // pred_fallthru
      _
    // Predicated region
    $region70: #{model_forward.1} parent=1 // pred_check
      _
    $region71: #{model_forward.1} parent=1 // pred_check_branch
      %125 = sbr.rel (0) target = $region73
    $region72: #{model_forward.1} parent=1 // pred_region
      %126 = dma.done [#allocation7], 3072
    $region73: #{model_forward.1} parent=1 // pred_fallthru
      _
    // Predicated region
    $region74: #{model_forward.1} parent=1 // pred_check
      _
    $region75: #{model_forward.1} parent=1 // pred_check_branch
      %128 = sbr.rel (0) target = $region77
    $region76: #{model_forward.1} parent=1 // pred_region
      %129 = dma.done [#allocation10], 3072
    $region77: #{model_forward.1} parent=1 // pred_fallthru
      _
    // Predicated region
    $region78: #{model_forward.1} parent=1 // pred_check
      _
    $region79: #{model_forward.1} parent=1 // pred_check_branch
      %131 = sbr.rel (0) target = $region81
    $region80: #{model_forward.1} parent=1 // pred_region
      %132 = dma.done [#allocation10], 1152
    $region81: #{model_forward.1} parent=1 // pred_fallthru
      _
    // Predicated region
    $region82: #{model_forward.1} parent=1 // pred_check
      _
    $region83: #{model_forward.1} parent=1 // pred_check_branch
      %134 = sbr.rel (0) target = $region85
    $region84: #{model_forward.1} parent=1 // pred_region
      %135 = dma.done [#allocation13], 384
    $region85: #{model_forward.1} parent=1 // pred_fallthru
      _
    %v137 = vld [vmem:[%s0] sm:$0xf]
    %v138 = vld [vmem:[%s1] sm:$0xf]
    %v139 = vld [vmem:[%s2] sm:$0x3]
    %v140 = vld [vmem:[%s3] sm:$0xf]
    %v141 = vld [vmem:[%s4] sm:$0xff]
    %v142 = vld [vmem:[%s4 + $0x8] sm:$0xff]
    %v143 = vld [vmem:[%s4 + $0x10] sm:$0xff]
    %v144 = vld [vmem:[%s4 + $0x18] sm:$0xff]
    %v145 = vld [vmem:[%s4 + $0x20] sm:$0xff]
    %v146 = vld [vmem:[%s4 + $0x28] sm:$0xff]
    %v147 = vld [vmem:[%s4 + $0x30] sm:$0xff]
    %v148 = vld [vmem:[%s4 + $0x38] sm:$0xff]
    %v149 = vld [vmem:[%s4 + $0x40] sm:$0xff]
    %v150 = vld [vmem:[%s4 + $0x48] sm:$0xff]
    %v151 = vld [vmem:[%s4 + $0x50] sm:$0xff]
    %v152 = vld [vmem:[%s4 + $0x58] sm:$0xff]
    %v153 = vld [vmem:[%s4 + $0x60] sm:$0xff]
    %v154 = vld [vmem:[%s4 + $0x68] sm:$0xff]
    %v155 = vld [vmem:[%s4 + $0x70] sm:$0xff]
    %v156 = vld [vmem:[%s4 + $0x78] sm:$0xff]
    %v157 = vld [vmem:[%s4 + $0x80] sm:$0xff]
    %v158 = vld [vmem:[%s4 + $0x88] sm:$0xff]
    %v159 = vld [vmem:[%s4 + $0x90] sm:$0xff]
    %v160 = vld [vmem:[%s4 + $0x98] sm:$0xff]
    %v161 = vld [vmem:[%s4 + $0xa0] sm:$0xff]
    %v162 = vld [vmem:[%s4 + $0xa8] sm:$0xff]
    %v163 = vld [vmem:[%s4 + $0xb0] sm:$0xff]
    %v164 = vld [vmem:[%s4 + $0xb8] sm:$0xff]
    %v165 = vld [vmem:[%s4 + $0xc0] sm:$0xff]
    %v166 = vld [vmem:[%s4 + $0xc8] sm:$0xff]
    %v167 = vld [vmem:[%s4 + $0xd0] sm:$0xff]
    %v168 = vld [vmem:[%s4 + $0xd8] sm:$0xff]
    %v169 = vld [vmem:[%s4 + $0xe0] sm:$0xff]
    %v170 = vld [vmem:[%s4 + $0xe8] sm:$0xff]
    %v173 = vunpack.c.l.s4 1983009808
    %v174 = vunpack.c.0.s8 %v173
    %v175 = vlaneseq
    %v176 = vshrl.u32 %v175, 7
    %v177 = vsub.s32 %v174, %v176
    %v178 = vrot.slane %v137, %v177
    %v179 = vcombine.high %v178, %v178
    %v182 = vpack.c.bf16 %v178, %v178
    %v183 = vpack.c.bf16 %v179, %v179
    %s184 = scalar_lea.vmem [#allocation11], 28
    %v185 = vld [vmem:[%s184] ss:$8 sm:$0x3]
    %v187 = vlaneseq
    %v188 = vshrl.u32 %v187, 7
    %v189 = vsub.s32 0, %v188
    %v190 = vrot.slane %v185, %v189
    %v191 = vlaneseq
    %v192 = vshrl.u32 %v191, 7
    %v193 = vsub.s32 1, %v192
    %v194 = vrot.slane %v185, %v193
    %v227 = vunpack.c.l.b16 %v141
    %v228 = vunpack.c.h.b16 %v141
    %v229 = vunpack.c.l.b16 %v142
    %v230 = vunpack.c.h.b16 %v142
    %v231 = vunpack.c.l.b16 %v143
    %v232 = vunpack.c.h.b16 %v143
    %v233 = vunpack.c.l.b16 %v144
    %v234 = vunpack.c.h.b16 %v144
    %v235 = vunpack.c.l.b16 %v145
    %v236 = vunpack.c.h.b16 %v145
    %v237 = vunpack.c.l.b16 %v146
    %v238 = vunpack.c.h.b16 %v146
    %v239 = vunpack.c.l.b16 %v147
    %v240 = vunpack.c.h.b16 %v147
    %v241 = vunpack.c.l.b16 %v148
    %v242 = vunpack.c.h.b16 %v148
    %v243 = vunpack.c.l.b16 %v149
    %v244 = vunpack.c.h.b16 %v149
    %v245 = vunpack.c.l.b16 %v150
    %v246 = vunpack.c.h.b16 %v150
    %v247 = vunpack.c.l.b16 %v151
    %v248 = vunpack.c.h.b16 %v151
    %v249 = vunpack.c.l.b16 %v152
    %v250 = vunpack.c.h.b16 %v152
    %v251 = vunpack.c.l.b16 %v153
    %v252 = vunpack.c.h.b16 %v153
    %v253 = vunpack.c.l.b16 %v154
    %v254 = vunpack.c.h.b16 %v154
    %v255 = vunpack.c.l.b16 %v155
    %v256 = vunpack.c.h.b16 %v155
    %v257 = vunpack.c.l.b16 %v156
    %v258 = vunpack.c.h.b16 %v156
    %v259 = vunpack.c.l.b16 %v157
    %v260 = vunpack.c.h.b16 %v157
    %v261 = vunpack.c.l.b16 %v158
    %v262 = vunpack.c.h.b16 %v158
    %v263 = vunpack.c.l.b16 %v159
    %v264 = vunpack.c.h.b16 %v159
    %v265 = vunpack.c.l.b16 %v160
    %v266 = vunpack.c.h.b16 %v160
    %v267 = vunpack.c.l.b16 %v161
    %v268 = vunpack.c.h.b16 %v161
    %v269 = vunpack.c.l.b16 %v162
    %v270 = vunpack.c.h.b16 %v162
    %v271 = vunpack.c.l.b16 %v163
    %v272 = vunpack.c.h.b16 %v163
    %v273 = vunpack.c.l.b16 %v164
    %v274 = vunpack.c.h.b16 %v164
    %v275 = vunpack.c.l.b16 %v165
    %v276 = vunpack.c.h.b16 %v165
    %v277 = vunpack.c.l.b16 %v166
    %v278 = vunpack.c.h.b16 %v166
    %v279 = vunpack.c.l.b16 %v167
    %v280 = vunpack.c.h.b16 %v167
    %v281 = vunpack.c.l.b16 %v168
    %v282 = vunpack.c.h.b16 %v168
    %v283 = vunpack.c.l.b16 %v169
    %v284 = vunpack.c.h.b16 %v169
    %v285 = vunpack.c.l.b16 %v170
    %v286 = vunpack.c.h.b16 %v170
    %v287 = vpack.c.b16 %v229, %v227
    %v288 = vpack.c.b16 %v230, %v228
    %v289 = vpack.c.b16 %v233, %v231
    %v290 = vpack.c.b16 %v234, %v232
    %v291 = vpack.c.b16 %v237, %v235
    %v292 = vpack.c.b16 %v238, %v236
    %v293 = vpack.c.b16 %v241, %v239
    %v294 = vpack.c.b16 %v242, %v240
    %v295 = vpack.c.b16 %v245, %v243
    %v296 = vpack.c.b16 %v246, %v244
    %v297 = vpack.c.b16 %v249, %v247
    %v298 = vpack.c.b16 %v250, %v248
    %v299 = vpack.c.b16 %v253, %v251
    %v300 = vpack.c.b16 %v254, %v252
    %v301 = vpack.c.b16 %v257, %v255
    %v302 = vpack.c.b16 %v258, %v256
    %v303 = vpack.c.b16 %v261, %v259
    %v304 = vpack.c.b16 %v262, %v260
    %v305 = vpack.c.b16 %v265, %v263
    %v306 = vpack.c.b16 %v266, %v264
    %v307 = vpack.c.b16 %v269, %v267
    %v308 = vpack.c.b16 %v270, %v268
    %v309 = vpack.c.b16 %v273, %v271
    %v310 = vpack.c.b16 %v274, %v272
    %v311 = vpack.c.b16 %v277, %v275
    %v312 = vpack.c.b16 %v278, %v276
    %v313 = vpack.c.b16 %v281, %v279
    %v314 = vpack.c.b16 %v282, %v280
    %v315 = vpack.c.b16 %v285, %v283
    %v316 = vpack.c.b16 %v286, %v284
    %vm347 = vcmask 916480
    %v349 = vsel %vm347, %v183, 0
    %351 = vmatprep.subr.bf16.mxu0 %v288
    %352 = vmatpush1.bf16.msra.mxu0 %v287
    %353 = vmatprep.subr.bf16.mxu0 %v290
    %354 = vmatpush1.bf16.msra.mxu0 %v289
    %355 = vmatprep.subr.bf16.mxu0 %v292
    %356 = vmatpush1.bf16.msra.mxu0 %v291
    %357 = vmatprep.subr.bf16.mxu0 %v294
    %358 = vmatpush1.bf16.msra.mxu0 %v293
    %359 = vmatprep.subr.bf16.mxu0 %v296
    %360 = vmatpush1.bf16.msra.mxu0 %v295
    %361 = vmatprep.subr.bf16.mxu0 %v298
    %362 = vmatpush1.bf16.msra.mxu0 %v297
    %363 = vmatprep.subr.bf16.mxu0 %v300
    %364 = vmatpush1.bf16.msra.mxu0 %v299
    %365 = vmatprep.subr.bf16.mxu0 %v302
    %366 = vmatpush1.bf16.msra.mxu0 %v301
    %367 = vmatprep.subr.bf16.mxu0 %v304
    %368 = vmatpush1.bf16.msra.mxu0 %v303
    %369 = vmatprep.subr.bf16.mxu0 %v306
    %370 = vmatpush1.bf16.msra.mxu0 %v305
    %371 = vmatprep.subr.bf16.mxu0 %v308
    %372 = vmatpush1.bf16.msra.mxu0 %v307
    %373 = vmatprep.subr.bf16.mxu0 %v310
    %374 = vmatpush1.bf16.msra.mxu0 %v309
    %375 = vmatprep.subr.bf16.mxu0 %v312
    %376 = vmatpush1.bf16.msra.mxu0 %v311
    %377 = vmatprep.subr.bf16.mxu0 %v314
    %378 = vmatpush1.bf16.msra.mxu0 %v313
    %379 = vmatprep.subr.bf16.mxu0 %v316
    %380 = vmatpush1.bf16.msra.mxu0 %v315
    %381 = vmatprep.subr.bf16.mxu0 0
    %382 = vmatpush1.bf16.msra.mxu0 0
    %383 = vmatprep.mubr.bf16.mxu0 %v349
    %384 = vmatmul.mubr.bf16.gmra.mrb[0].mxu0 %v182
    %v385 = vpop.f32.mrb[0].mxu0
    %v386 = vadd.f32 %v190, %v385
    %v387 = vpop.f32.mrb[0].mxu0
    %v388 = vadd.f32 %v194, %v387
    %v389 = vpop.f32.mrb[0].mxu0
    %v390 = vpop.f32.mrb[0].mxu0
    %391 = vdwg.mxu0
    %v392 = vld [vmem:[%s5] sm:$0xff]
    %v393 = vld [vmem:[%s5 + $0x8] sm:$0xf]
    %v394 = vld [vmem:[%s5 + $0xc] sm:$0xff]
    %v395 = vld [vmem:[%s5 + $0x14] sm:$0xf]
    %v396 = vld [vmem:[%s5 + $0x18] sm:$0xff]
    %v397 = vld [vmem:[%s5 + $0x20] sm:$0xf]
    %v398 = vld [vmem:[%s5 + $0x24] sm:$0xff]
    %v399 = vld [vmem:[%s5 + $0x2c] sm:$0xf]
    %v400 = vld [vmem:[%s5 + $0x30] sm:$0xff]
    %v401 = vld [vmem:[%s5 + $0x38] sm:$0xf]
    %v402 = vld [vmem:[%s5 + $0x3c] sm:$0xff]
    %v403 = vld [vmem:[%s5 + $0x44] sm:$0xf]
    %v404 = vld [vmem:[%s5 + $0x48] sm:$0xff]
    %v405 = vld [vmem:[%s5 + $0x50] sm:$0xf]
    %v406 = vld [vmem:[%s5 + $0x54] sm:$0xff]
    %v407 = vld [vmem:[%s5 + $0x5c] sm:$0xf]
    %v408 = vld [vmem:[%s5 + $0x60] sm:$0xff]
    %v409 = vld [vmem:[%s5 + $0x68] sm:$0xf]
    %v410 = vld [vmem:[%s5 + $0x6c] sm:$0xff]
    %v411 = vld [vmem:[%s5 + $0x74] sm:$0xf]
    %v412 = vld [vmem:[%s5 + $0x78] sm:$0xff]
    %v413 = vld [vmem:[%s5 + $0x80] sm:$0xf]
    %v414 = vld [vmem:[%s5 + $0x84] sm:$0xff]
    %v415 = vld [vmem:[%s5 + $0x8c] sm:$0xf]
    %v416 = vld [vmem:[%s5 + $0x90] sm:$0xff]
    %v417 = vld [vmem:[%s5 + $0x98] sm:$0xf]
    %v418 = vld [vmem:[%s5 + $0x9c] sm:$0xff]
    %v419 = vld [vmem:[%s5 + $0xa4] sm:$0xf]
    %v420 = vld [vmem:[%s5 + $0xa8] sm:$0xff]
    %v421 = vld [vmem:[%s5 + $0xb0] sm:$0xf]
    %v422 = vld [vmem:[%s5 + $0xb4] sm:$0xff]
    %v423 = vld [vmem:[%s5 + $0xbc] sm:$0xf]
    %v424 = vld [vmem:[%s5 + $0xc0] sm:$0xff]
    %v425 = vld [vmem:[%s5 + $0xc8] sm:$0xf]
    %v426 = vld [vmem:[%s5 + $0xcc] sm:$0xff]
    %v427 = vld [vmem:[%s5 + $0xd4] sm:$0xf]
    %v428 = vld [vmem:[%s5 + $0xd8] sm:$0xff]
    %v429 = vld [vmem:[%s5 + $0xe0] sm:$0xf]
    %v430 = vld [vmem:[%s5 + $0xe4] sm:$0xff]
    %v431 = vld [vmem:[%s5 + $0xec] sm:$0xf]
    %v432 = vld [vmem:[%s5 + $0xf0] sm:$0xff]
    %v433 = vld [vmem:[%s5 + $0xf8] sm:$0xf]
    %v434 = vld [vmem:[%s5 + $0xfc] sm:$0xff]
    %v435 = vld [vmem:[%s5 + $0x104] sm:$0xf]
    %v436 = vld [vmem:[%s5 + $0x108] sm:$0xff]
    %v437 = vld [vmem:[%s5 + $0x110] sm:$0xf]
    %v438 = vld [vmem:[%s5 + $0x114] sm:$0xff]
    %v439 = vld [vmem:[%s5 + $0x11c] sm:$0xf]
    %v440 = vld [vmem:[%s5 + $0x120] sm:$0xff]
    %v441 = vld [vmem:[%s5 + $0x128] sm:$0xf]
    %v442 = vld [vmem:[%s5 + $0x12c] sm:$0xff]
    %v443 = vld [vmem:[%s5 + $0x134] sm:$0xf]
    %v444 = vld [vmem:[%s5 + $0x138] sm:$0xff]
    %v445 = vld [vmem:[%s5 + $0x140] sm:$0xf]
    %v446 = vld [vmem:[%s5 + $0x144] sm:$0xff]
    %v447 = vld [vmem:[%s5 + $0x14c] sm:$0xf]
    %v448 = vld [vmem:[%s5 + $0x150] sm:$0xff]
    %v449 = vld [vmem:[%s5 + $0x158] sm:$0xf]
    %v450 = vld [vmem:[%s5 + $0x15c] sm:$0xff]
    %v451 = vld [vmem:[%s5 + $0x164] sm:$0xf]
    %v454 = vunpack.c.l.s4 1983009808
    %v455 = vunpack.c.0.s8 %v454
    %v456 = vlaneseq
    %v457 = vshrl.u32 %v456, 7
    %v458 = vsub.s32 %v455, %v457
    %v459 = vrot.slane %v138, %v458
    %v460 = vcombine.high %v459, %v459
    %v463 = vpack.c.bf16 %v459, %v459
    %v464 = vpack.c.bf16 %v460, %v460
    %v525 = vunpack.c.l.b16 %v392
    %v526 = vunpack.c.h.b16 %v392
    %v527 = vunpack.c.l.b16 %v393
    %v528 = vunpack.c.l.b16 %v394
    %v529 = vunpack.c.h.b16 %v394
    %v530 = vunpack.c.l.b16 %v395
    %v531 = vunpack.c.l.b16 %v396
    %v532 = vunpack.c.h.b16 %v396
    %v533 = vunpack.c.l.b16 %v397
    %v534 = vunpack.c.l.b16 %v398
    %v535 = vunpack.c.h.b16 %v398
    %v536 = vunpack.c.l.b16 %v399
    %v537 = vunpack.c.l.b16 %v400
    %v538 = vunpack.c.h.b16 %v400
    %v539 = vunpack.c.l.b16 %v401
    %v540 = vunpack.c.l.b16 %v402
    %v541 = vunpack.c.h.b16 %v402
    %v542 = vunpack.c.l.b16 %v403
    %v543 = vunpack.c.l.b16 %v404
    %v544 = vunpack.c.h.b16 %v404
    %v545 = vunpack.c.l.b16 %v405
    %v546 = vunpack.c.l.b16 %v406
    %v547 = vunpack.c.h.b16 %v406
    %v548 = vunpack.c.l.b16 %v407
    %v549 = vunpack.c.l.b16 %v408
    %v550 = vunpack.c.h.b16 %v408
    %v551 = vunpack.c.l.b16 %v409
    %v552 = vunpack.c.l.b16 %v410
    %v553 = vunpack.c.h.b16 %v410
    %v554 = vunpack.c.l.b16 %v411
    %v555 = vunpack.c.l.b16 %v412
    %v556 = vunpack.c.h.b16 %v412
    %v557 = vunpack.c.l.b16 %v413
    %v558 = vunpack.c.l.b16 %v414
    %v559 = vunpack.c.h.b16 %v414
    %v560 = vunpack.c.l.b16 %v415
    %v561 = vunpack.c.l.b16 %v416
    %v562 = vunpack.c.h.b16 %v416
    %v563 = vunpack.c.l.b16 %v417
    %v564 = vunpack.c.l.b16 %v418
    %v565 = vunpack.c.h.b16 %v418
    %v566 = vunpack.c.l.b16 %v419
    %v567 = vunpack.c.l.b16 %v420
    %v568 = vunpack.c.h.b16 %v420
    %v569 = vunpack.c.l.b16 %v421
    %v570 = vunpack.c.l.b16 %v422
    %v571 = vunpack.c.h.b16 %v422
    %v572 = vunpack.c.l.b16 %v423
    %v573 = vunpack.c.l.b16 %v424
    %v574 = vunpack.c.h.b16 %v424
    %v575 = vunpack.c.l.b16 %v425
    %v576 = vunpack.c.l.b16 %v426
    %v577 = vunpack.c.h.b16 %v426
    %v578 = vunpack.c.l.b16 %v427
    %v579 = vunpack.c.l.b16 %v428
    %v580 = vunpack.c.h.b16 %v428
    %v581 = vunpack.c.l.b16 %v429
    %v582 = vunpack.c.l.b16 %v430
    %v583 = vunpack.c.h.b16 %v430
    %v584 = vunpack.c.l.b16 %v431
    %v585 = vunpack.c.l.b16 %v432
    %v586 = vunpack.c.h.b16 %v432
    %v587 = vunpack.c.l.b16 %v433
    %v588 = vunpack.c.l.b16 %v434
    %v589 = vunpack.c.h.b16 %v434
    %v590 = vunpack.c.l.b16 %v435
    %v591 = vunpack.c.l.b16 %v436
    %v592 = vunpack.c.h.b16 %v436
    %v593 = vunpack.c.l.b16 %v437
    %v594 = vunpack.c.l.b16 %v438
    %v595 = vunpack.c.h.b16 %v438
    %v596 = vunpack.c.l.b16 %v439
    %v597 = vunpack.c.l.b16 %v440
    %v598 = vunpack.c.h.b16 %v440
    %v599 = vunpack.c.l.b16 %v441
    %v600 = vunpack.c.l.b16 %v442
    %v601 = vunpack.c.h.b16 %v442
    %v602 = vunpack.c.l.b16 %v443
    %v603 = vunpack.c.l.b16 %v444
    %v604 = vunpack.c.h.b16 %v444
    %v605 = vunpack.c.l.b16 %v445
    %v606 = vunpack.c.l.b16 %v446
    %v607 = vunpack.c.h.b16 %v446
    %v608 = vunpack.c.l.b16 %v447
    %v609 = vunpack.c.l.b16 %v448
    %v610 = vunpack.c.h.b16 %v448
    %v611 = vunpack.c.l.b16 %v449
    %v612 = vunpack.c.l.b16 %v450
    %v613 = vunpack.c.h.b16 %v450
    %v614 = vunpack.c.l.b16 %v451
    %v615 = vpack.c.b16 %v528, %v525
    %v616 = vpack.c.b16 %v529, %v526
    %v617 = vpack.c.b16 %v530, %v527
    %v618 = vpack.c.b16 %v534, %v531
    %v619 = vpack.c.b16 %v535, %v532
    %v620 = vpack.c.b16 %v536, %v533
    %v621 = vpack.c.b16 %v540, %v537
    %v622 = vpack.c.b16 %v541, %v538
    %v623 = vpack.c.b16 %v542, %v539
    %v624 = vpack.c.b16 %v546, %v543
    %v625 = vpack.c.b16 %v547, %v544
    %v626 = vpack.c.b16 %v548, %v545
    %v627 = vpack.c.b16 %v552, %v549
    %v628 = vpack.c.b16 %v553, %v550
    %v629 = vpack.c.b16 %v554, %v551
    %v630 = vpack.c.b16 %v558, %v555
    %v631 = vpack.c.b16 %v559, %v556
    %v632 = vpack.c.b16 %v560, %v557
    %v633 = vpack.c.b16 %v564, %v561
    %v634 = vpack.c.b16 %v565, %v562
    %v635 = vpack.c.b16 %v566, %v563
    %v636 = vpack.c.b16 %v570, %v567
    %v637 = vpack.c.b16 %v571, %v568
    %v638 = vpack.c.b16 %v572, %v569
    %v639 = vpack.c.b16 %v576, %v573
    %v640 = vpack.c.b16 %v577, %v574
    %v641 = vpack.c.b16 %v578, %v575
    %v642 = vpack.c.b16 %v582, %v579
    %v643 = vpack.c.b16 %v583, %v580
    %v644 = vpack.c.b16 %v584, %v581
    %v645 = vpack.c.b16 %v588, %v585
    %v646 = vpack.c.b16 %v589, %v586
    %v647 = vpack.c.b16 %v590, %v587
    %v648 = vpack.c.b16 %v594, %v591
    %v649 = vpack.c.b16 %v595, %v592
    %v650 = vpack.c.b16 %v596, %v593
    %v651 = vpack.c.b16 %v600, %v597
    %v652 = vpack.c.b16 %v601, %v598
    %v653 = vpack.c.b16 %v602, %v599
    %v654 = vpack.c.b16 %v606, %v603
    %v655 = vpack.c.b16 %v607, %v604
    %v656 = vpack.c.b16 %v608, %v605
    %v657 = vpack.c.b16 %v612, %v609
    %v658 = vpack.c.b16 %v613, %v610
    %v659 = vpack.c.b16 %v614, %v611
    %v706 = vsel %vm347, %v464, 0
    %708 = vmatprep.subr.bf16.mxu0 %v616
    %709 = vmatpush1.bf16.msra.mxu0 %v615
    %710 = vmatprep.subr.bf16.mxu0 %v619
    %711 = vmatpush1.bf16.msra.mxu0 %v618
    %712 = vmatprep.subr.bf16.mxu0 %v622
    %713 = vmatpush1.bf16.msra.mxu0 %v621
    %714 = vmatprep.subr.bf16.mxu0 %v625
    %715 = vmatpush1.bf16.msra.mxu0 %v624
    %716 = vmatprep.subr.bf16.mxu0 %v628
    %717 = vmatpush1.bf16.msra.mxu0 %v627
    %718 = vmatprep.subr.bf16.mxu0 %v631
    %719 = vmatpush1.bf16.msra.mxu0 %v630
    %720 = vmatprep.subr.bf16.mxu0 %v634
    %721 = vmatpush1.bf16.msra.mxu0 %v633
    %722 = vmatprep.subr.bf16.mxu0 %v637
    %723 = vmatpush1.bf16.msra.mxu0 %v636
    %724 = vmatprep.subr.bf16.mxu0 %v640
    %725 = vmatpush1.bf16.msra.mxu0 %v639
    %726 = vmatprep.subr.bf16.mxu0 %v643
    %727 = vmatpush1.bf16.msra.mxu0 %v642
    %728 = vmatprep.subr.bf16.mxu0 %v646
    %729 = vmatpush1.bf16.msra.mxu0 %v645
    %730 = vmatprep.subr.bf16.mxu0 %v649
    %731 = vmatpush1.bf16.msra.mxu0 %v648
    %732 = vmatprep.subr.bf16.mxu0 %v652
    %733 = vmatpush1.bf16.msra.mxu0 %v651
    %734 = vmatprep.subr.bf16.mxu0 %v655
    %735 = vmatpush1.bf16.msra.mxu0 %v654
    %736 = vmatprep.subr.bf16.mxu0 %v658
    %737 = vmatpush1.bf16.msra.mxu0 %v657
    %738 = vmatprep.subr.bf16.mxu0 0
    %739 = vmatpush1.bf16.msra.mxu0 0
    %740 = vmatprep.mubr.bf16.mxu0 %v706
    %741 = vmatmul.mubr.bf16.gmra.mrb[0].mxu0 %v463
    %v742 = vpop.f32.mrb[0].mxu0
    %v743 = vadd.f32 0.0, %v742
    %v744 = vpop.f32.mrb[0].mxu0
    %v745 = vadd.f32 0.0, %v744
    %v746 = vpop.f32.mrb[0].mxu0
    %v747 = vpop.f32.mrb[0].mxu0
    %748 = vdwg.mxu0
    %749 = vmatprep.subr.bf16.mxu0 0
    %750 = vmatpush1.bf16.msra.mxu0 %v617
    %751 = vmatprep.subr.bf16.mxu0 0
    %752 = vmatpush1.bf16.msra.mxu0 %v620
    %753 = vmatprep.subr.bf16.mxu0 0
    %754 = vmatpush1.bf16.msra.mxu0 %v623
    %755 = vmatprep.subr.bf16.mxu0 0
    %756 = vmatpush1.bf16.msra.mxu0 %v626
    %757 = vmatprep.subr.bf16.mxu0 0
    %758 = vmatpush1.bf16.msra.mxu0 %v629
    %759 = vmatprep.subr.bf16.mxu0 0
    %760 = vmatpush1.bf16.msra.mxu0 %v632
    %761 = vmatprep.subr.bf16.mxu0 0
    %762 = vmatpush1.bf16.msra.mxu0 %v635
    %763 = vmatprep.subr.bf16.mxu0 0
    %764 = vmatpush1.bf16.msra.mxu0 %v638
    %765 = vmatprep.subr.bf16.mxu0 0
    %766 = vmatpush1.bf16.msra.mxu0 %v641
    %767 = vmatprep.subr.bf16.mxu0 0
    %768 = vmatpush1.bf16.msra.mxu0 %v644
    %769 = vmatprep.subr.bf16.mxu0 0
    %770 = vmatpush1.bf16.msra.mxu0 %v647
    %771 = vmatprep.subr.bf16.mxu0 0
    %772 = vmatpush1.bf16.msra.mxu0 %v650
    %773 = vmatprep.subr.bf16.mxu0 0
    %774 = vmatpush1.bf16.msra.mxu0 %v653
    %775 = vmatprep.subr.bf16.mxu0 0
    %776 = vmatpush1.bf16.msra.mxu0 %v656
    %777 = vmatprep.subr.bf16.mxu0 0
    %778 = vmatpush1.bf16.msra.mxu0 %v659
    %779 = vmatprep.subr.bf16.mxu0 0
    %780 = vmatpush1.bf16.msra.mxu0 0
    %781 = vmatprep.mubr.bf16.mxu0 %v706
    %782 = vmatmul.mubr.bf16.gmra.mrb[0].mxu0 %v463
    %v783 = vpop.f32.mrb[0].mxu0
    %v784 = vadd.f32 0.0, %v783
    %v785 = vpop.f32.mrb[0].mxu0
    %v786 = vpop.f32.mrb[0].mxu0
    %v787 = vpop.f32.mrb[0].mxu0
    %788 = vdwg.mxu0
    %v789 = vld [vmem:[#allocation11] ss:$8 sm:$0x3]
    %v791 = vlaneseq
    %v792 = vshrl.u32 %v791, 7
    %v793 = vsub.s32 0, %v792
    %v794 = vrot.slane %v789, %v793
    %v795 = vlaneseq
    %v796 = vshrl.u32 %v795, 7
    %v797 = vsub.s32 1, %v796
    %v798 = vrot.slane %v789, %v797
    %v801 = vadd.f32 %v745, %v794
    %v802 = vadd.f32 %v784, %v798
    %s803 = scalar_lea.vmem [#allocation11], 1
    %v804 = vld [vmem:[%s803] ss:$8 sm:$0x3]
    %s805 = scalar_lea.vmem [#allocation11], 2
    %v806 = vld [vmem:[%s805] ss:$8 sm:$0x3]
    %vm807 = vcmask 1041408
    %v808 = vsel %vm807, %v801, 0.0
    %vm809 = vcmask 910336
    %v810 = vsel %vm809, %v802, 0.0
    %v811 = vadd.f32 %v808, %v810
    %812 = vadd.xlane.f32.xlu0 %v811
    %v813 = vpop.xlane.xlu0 %812
    %v814 = vrcp.pop 240.0
    %v815 = vmul.f32 %v813, %v814
    %v816 = vsub.f32 %v801, %v815
    %v817 = vsub.f32 %v802, %v815
    %v818 = vmul.f32 %v816, %v816
    %v819 = vmul.f32 %v817, %v817
    %v820 = vsel %vm807, %v818, 0.0
    %v821 = vsel %vm809, %v819, 0.0
    %v822 = vadd.f32 %v820, %v821
    %823 = vadd.xlane.f32.xlu0 %v822
    %v824 = vpop.xlane.xlu0 %823
    %v825 = vmul.f32 %v824, %v814
    %v826 = vadd.f32 %v825, 1e-05
    %v827 = vrsqrt.pop %v826
    %v828 = vmul.f32 %v816, %v827
    %v829 = vmul.f32 %v817, %v827
    %v831 = vlaneseq
    %v832 = vshrl.u32 %v831, 7
    %v833 = vsub.s32 0, %v832
    %v834 = vrot.slane %v804, %v833
    %v835 = vlaneseq
    %v836 = vshrl.u32 %v835, 7
    %v837 = vsub.s32 1, %v836
    %v838 = vrot.slane %v804, %v837
    %v841 = vmul.f32 %v828, %v834
    %v842 = vmul.f32 %v829, %v838
    %v844 = vlaneseq
    %v845 = vshrl.u32 %v844, 7
    %v846 = vsub.s32 0, %v845
    %v847 = vrot.slane %v806, %v846
    %v848 = vlaneseq
    %v849 = vshrl.u32 %v848, 7
    %v850 = vsub.s32 1, %v849
    %v851 = vrot.slane %v806, %v850
    %v854 = vadd.f32 %v841, %v847
    %v855 = vadd.f32 %v842, %v851
    %v856 = vmax.f32 %v854, 0.0
    %v857 = vmax.f32 %v855, 0.0
    %v858 = vld [vmem:[#allocation2] sm:$0xf]
    %v859 = vld [vmem:[#allocation2 + $0x4] sm:$0xf]
    %v860 = vld [vmem:[#allocation2 + $0x8] sm:$0xf]
    %v861 = vld [vmem:[#allocation2 + $0xc] sm:$0xf]
    %v862 = vld [vmem:[#allocation2 + $0x10] sm:$0xf]
    %v863 = vld [vmem:[#allocation2 + $0x14] sm:$0xf]
    %v864 = vld [vmem:[#allocation2 + $0x18] sm:$0xf]
    %v865 = vld [vmem:[#allocation2 + $0x1c] sm:$0xf]
    %v866 = vld [vmem:[#allocation2 + $0x20] sm:$0xf]
    %v867 = vld [vmem:[#allocation2 + $0x24] sm:$0xf]
    %v868 = vld [vmem:[#allocation2 + $0x28] sm:$0xf]
    %v869 = vld [vmem:[#allocation2 + $0x2c] sm:$0xf]
    %v870 = vld [vmem:[#allocation2 + $0x30] sm:$0xf]
    %v871 = vld [vmem:[#allocation2 + $0x34] sm:$0xf]
    %v872 = vld [vmem:[#allocation2 + $0x38] sm:$0xf]
    %v873 = vld [vmem:[#allocation2 + $0x3c] sm:$0xf]
    %v874 = vld [vmem:[#allocation2 + $0x40] sm:$0xf]
    %v875 = vld [vmem:[#allocation2 + $0x44] sm:$0xf]
    %v876 = vld [vmem:[#allocation2 + $0x48] sm:$0xf]
    %v877 = vld [vmem:[#allocation2 + $0x4c] sm:$0xf]
    %v878 = vld [vmem:[#allocation2 + $0x50] sm:$0xf]
    %v879 = vld [vmem:[#allocation2 + $0x54] sm:$0xf]
    %v880 = vld [vmem:[#allocation2 + $0x58] sm:$0xf]
    %v881 = vld [vmem:[#allocation2 + $0x5c] sm:$0xf]
    %v882 = vld [vmem:[#allocation2 + $0x60] sm:$0xf]
    %v883 = vld [vmem:[#allocation2 + $0x64] sm:$0xf]
    %v884 = vld [vmem:[#allocation2 + $0x68] sm:$0xf]
    %v885 = vld [vmem:[#allocation2 + $0x6c] sm:$0xf]
    %v886 = vld [vmem:[#allocation2 + $0x70] sm:$0xf]
    %v887 = vld [vmem:[#allocation2 + $0x74] sm:$0xf]
    %v888 = vpack.c.bf16 %v856, %v856
    %v889 = vpack.c.bf16 %v857, %v857
    %v920 = vunpack.c.l.b16 %v858
    %v921 = vunpack.c.l.b16 %v859
    %v922 = vunpack.c.l.b16 %v860
    %v923 = vunpack.c.l.b16 %v861
    %v924 = vunpack.c.l.b16 %v862
    %v925 = vunpack.c.l.b16 %v863
    %v926 = vunpack.c.l.b16 %v864
    %v927 = vunpack.c.l.b16 %v865
    %v928 = vunpack.c.l.b16 %v866
    %v929 = vunpack.c.l.b16 %v867
    %v930 = vunpack.c.l.b16 %v868
    %v931 = vunpack.c.l.b16 %v869
    %v932 = vunpack.c.l.b16 %v870
    %v933 = vunpack.c.l.b16 %v871
    %v934 = vunpack.c.l.b16 %v872
    %v935 = vunpack.c.l.b16 %v873
    %v936 = vunpack.c.l.b16 %v874
    %v937 = vunpack.c.l.b16 %v875
    %v938 = vunpack.c.l.b16 %v876
    %v939 = vunpack.c.l.b16 %v877
    %v940 = vunpack.c.l.b16 %v878
    %v941 = vunpack.c.l.b16 %v879
    %v942 = vunpack.c.l.b16 %v880
    %v943 = vunpack.c.l.b16 %v881
    %v944 = vunpack.c.l.b16 %v882
    %v945 = vunpack.c.l.b16 %v883
    %v946 = vunpack.c.l.b16 %v884
    %v947 = vunpack.c.l.b16 %v885
    %v948 = vunpack.c.l.b16 %v886
    %v949 = vunpack.c.l.b16 %v887
    %v950 = vpack.c.b16 %v921, %v920
    %v951 = vpack.c.b16 %v923, %v922
    %v952 = vpack.c.b16 %v925, %v924
    %v953 = vpack.c.b16 %v927, %v926
    %v954 = vpack.c.b16 %v929, %v928
    %v955 = vpack.c.b16 %v931, %v930
    %v956 = vpack.c.b16 %v933, %v932
    %v957 = vpack.c.b16 %v935, %v934
    %v958 = vpack.c.b16 %v937, %v936
    %v959 = vpack.c.b16 %v939, %v938
    %v960 = vpack.c.b16 %v941, %v940
    %v961 = vpack.c.b16 %v943, %v942
    %v962 = vpack.c.b16 %v945, %v944
    %v963 = vpack.c.b16 %v947, %v946
    %v964 = vpack.c.b16 %v949, %v948
    %v981 = vsel %vm347, %v889, 0
    %983 = vmatprep.subr.bf16.mxu0 0
    %984 = vmatpush1.bf16.msra.mxu0 %v950
    %985 = vmatprep.subr.bf16.mxu0 0
    %986 = vmatpush1.bf16.msra.mxu0 %v951
    %987 = vmatprep.subr.bf16.mxu0 0
    %988 = vmatpush1.bf16.msra.mxu0 %v952
    %989 = vmatprep.subr.bf16.mxu0 0
    %990 = vmatpush1.bf16.msra.mxu0 %v953
    %991 = vmatprep.subr.bf16.mxu0 0
    %992 = vmatpush1.bf16.msra.mxu0 %v954
    %993 = vmatprep.subr.bf16.mxu0 0
    %994 = vmatpush1.bf16.msra.mxu0 %v955
    %995 = vmatprep.subr.bf16.mxu0 0
    %996 = vmatpush1.bf16.msra.mxu0 %v956
    %997 = vmatprep.subr.bf16.mxu0 0
    %998 = vmatpush1.bf16.msra.mxu0 %v957
    %999 = vmatprep.subr.bf16.mxu0 0
    %1000 = vmatpush1.bf16.msra.mxu0 %v958
    %1001 = vmatprep.subr.bf16.mxu0 0
    %1002 = vmatpush1.bf16.msra.mxu0 %v959
    %1003 = vmatprep.subr.bf16.mxu0 0
    %1004 = vmatpush1.bf16.msra.mxu0 %v960
    %1005 = vmatprep.subr.bf16.mxu0 0
    %1006 = vmatpush1.bf16.msra.mxu0 %v961
    %1007 = vmatprep.subr.bf16.mxu0 0
    %1008 = vmatpush1.bf16.msra.mxu0 %v962
    %1009 = vmatprep.subr.bf16.mxu0 0
    %1010 = vmatpush1.bf16.msra.mxu0 %v963
    %1011 = vmatprep.subr.bf16.mxu0 0
    %1012 = vmatpush1.bf16.msra.mxu0 %v964
    %1013 = vmatprep.subr.bf16.mxu0 0
    %1014 = vmatpush1.bf16.msra.mxu0 0
    %1015 = vmatprep.mubr.bf16.mxu0 %v981
    %1016 = vmatmul.mubr.bf16.gmra.mrb[0].mxu0 %v888
    %v1017 = vpop.f32.mrb[0].mxu0
    %v1018 = vadd.f32 %v743, %v1017
    %v1019 = vpop.f32.mrb[0].mxu0
    %v1020 = vpop.f32.mrb[0].mxu0
    %v1021 = vpop.f32.mrb[0].mxu0
    %1022 = vdwg.mxu0
    %v1023 = vld [vmem:[#allocation11 + $0x1f] ss:$0 sm:$0xff]
    %v1024 = vadd.f32 %v1018, %v1023
    %v1025 = vld [vmem:[#allocation12] sm:$0x1f]
    %1027 = vset.pattern.permute.xlu0 0
    %1028 = vperm.xlu0 %1027, %v139
    %v1029 = vpop.permute.xlu0 %1028
    %v1031 = vlaneseq
    %v1032 = vshrl.u32 %v1031, 7
    %v1033 = vsub.s32 0, %v1032
    %v1034 = vrot.slane %v1025, %v1033
    %v1035 = vmul.f32 %v1029, %v1034
    %1036 = vset.pattern.permute.xlu0 1
    %1037 = vperm.xlu0 %1036, %v139
    %v1038 = vpop.permute.xlu0 %1037
    %v1040 = vlaneseq
    %v1041 = vshrl.u32 %v1040, 7
    %v1042 = vsub.s32 1, %v1041
    %v1043 = vrot.slane %v1025, %v1042
    %v1044 = vmul.f32 %v1038, %v1043
    %v1045 = vadd.f32 %v1035, %v1044
    %1046 = vset.pattern.permute.xlu0 2
    %1047 = vperm.xlu0 %1046, %v139
    %v1048 = vpop.permute.xlu0 %1047
    %v1050 = vlaneseq
    %v1051 = vshrl.u32 %v1050, 7
    %v1052 = vsub.s32 2, %v1051
    %v1053 = vrot.slane %v1025, %v1052
    %v1054 = vmul.f32 %v1048, %v1053
    %v1055 = vadd.f32 %v1045, %v1054
    %1056 = vset.pattern.permute.xlu0 3
    %1057 = vperm.xlu0 %1056, %v139
    %v1058 = vpop.permute.xlu0 %1057
    %v1060 = vlaneseq
    %v1061 = vshrl.u32 %v1060, 7
    %v1062 = vsub.s32 3, %v1061
    %v1063 = vrot.slane %v1025, %v1062
    %v1064 = vmul.f32 %v1058, %v1063
    %v1065 = vadd.f32 %v1055, %v1064
    %1066 = vset.pattern.permute.xlu0 4
    %1067 = vperm.xlu0 %1066, %v139
    %v1068 = vpop.permute.xlu0 %1067
    %v1070 = vlaneseq
    %v1071 = vshrl.u32 %v1070, 7
    %v1072 = vsub.s32 4, %v1071
    %v1073 = vrot.slane %v1025, %v1072
    %v1074 = vmul.f32 %v1068, %v1073
    %v1075 = vadd.f32 %v1065, %v1074
    %v1076 = vld [vmem:[#allocation11 + $0x32] ss:$0 sm:$0xff]
    %v1077 = vadd.f32 %v1075, %v1076
    %v1078 = vld [vmem:[#allocation11 + $0x33] ss:$0 sm:$0xff]
    %v1079 = vld [vmem:[#allocation11 + $0x34] ss:$0 sm:$0xff]
    %vm1080 = vcmask 33792
    %v1081 = vsel %vm1080, %v1077, 0.0
    %1082 = vadd.xlane.f32.xlu0 %v1081
    %v1083 = vpop.xlane.xlu0 %1082
    %v1084 = vrcp.pop 5.0
    %v1085 = vmul.f32 %v1083, %v1084
    %v1086 = vsub.f32 %v1077, %v1085
    %v1087 = vmul.f32 %v1086, %v1086
    %v1088 = vsel %vm1080, %v1087, 0.0
    %1089 = vadd.xlane.f32.xlu0 %v1088
    %v1090 = vpop.xlane.xlu0 %1089
    %v1091 = vmul.f32 %v1090, %v1084
    %v1092 = vadd.f32 %v1091, 1e-05
    %v1093 = vrsqrt.pop %v1092
    %v1094 = vmul.f32 %v1086, %v1093
    %v1095 = vmul.f32 %v1094, %v1078
    %v1096 = vadd.f32 %v1095, %v1079
    %v1097 = vmax.f32 %v1096, 0.0
    %v1098 = vld [vmem:[#allocation12 + $0x8] sm:$0xff]
    %v1099 = vld [vmem:[#allocation12 + $0x10] sm:$0x3]
    %1101 = vset.pattern.permute.xlu0 0
    %1102 = vperm.xlu0 %1101, %v1097
    %v1103 = vpop.permute.xlu0 %1102
    %v1105 = vlaneseq
    %v1106 = vshrl.u32 %v1105, 7
    %v1107 = vsub.s32 0, %v1106
    %v1108 = vrot.slane %v1098, %v1107
    %v1109 = vmul.f32 %v1103, %v1108
    %1110 = vset.pattern.permute.xlu0 1
    %1111 = vperm.xlu0 %1110, %v1097
    %v1112 = vpop.permute.xlu0 %1111
    %v1114 = vlaneseq
    %v1115 = vshrl.u32 %v1114, 7
    %v1116 = vsub.s32 1, %v1115
    %v1117 = vrot.slane %v1098, %v1116
    %v1118 = vmul.f32 %v1112, %v1117
    %v1119 = vadd.f32 %v1109, %v1118
    %1120 = vset.pattern.permute.xlu0 2
    %1121 = vperm.xlu0 %1120, %v1097
    %v1122 = vpop.permute.xlu0 %1121
    %v1124 = vlaneseq
    %v1125 = vshrl.u32 %v1124, 7
    %v1126 = vsub.s32 2, %v1125
    %v1127 = vrot.slane %v1098, %v1126
    %v1128 = vmul.f32 %v1122, %v1127
    %v1129 = vadd.f32 %v1119, %v1128
    %1130 = vset.pattern.permute.xlu0 3
    %1131 = vperm.xlu0 %1130, %v1097
    %v1132 = vpop.permute.xlu0 %1131
    %v1134 = vlaneseq
    %v1135 = vshrl.u32 %v1134, 7
    %v1136 = vsub.s32 3, %v1135
    %v1137 = vrot.slane %v1098, %v1136
    %v1138 = vmul.f32 %v1132, %v1137
    %v1139 = vadd.f32 %v1129, %v1138
    %1140 = vset.pattern.permute.xlu0 4
    %1141 = vperm.xlu0 %1140, %v1097
    %v1142 = vpop.permute.xlu0 %1141
    %v1144 = vlaneseq
    %v1145 = vshrl.u32 %v1144, 7
    %v1146 = vsub.s32 4, %v1145
    %v1147 = vrot.slane %v1098, %v1146
    %v1148 = vmul.f32 %v1142, %v1147
    %v1149 = vadd.f32 %v1139, %v1148
    %v1150 = vlaneseq
    %v1151 = vshrl.u32 %v1150, 7
    %v1152 = vsub.s32 5, %v1151
    %v1153 = vrot.slane %v1098, %v1152
    %v1154 = vmul.f32 %v1029, %v1153
    %v1155 = vadd.f32 %v1149, %v1154
    %v1156 = vlaneseq
    %v1157 = vshrl.u32 %v1156, 7
    %v1158 = vsub.s32 6, %v1157
    %v1159 = vrot.slane %v1098, %v1158
    %v1160 = vmul.f32 %v1038, %v1159
    %v1161 = vadd.f32 %v1155, %v1160
    %v1162 = vlaneseq
    %v1163 = vshrl.u32 %v1162, 7
    %v1164 = vsub.s32 7, %v1163
    %v1165 = vrot.slane %v1098, %v1164
    %v1166 = vmul.f32 %v1048, %v1165
    %v1167 = vadd.f32 %v1161, %v1166
    %v1168 = vlaneseq
    %v1169 = vshrl.u32 %v1168, 7
    %v1170 = vsub.s32 0, %v1169
    %v1171 = vrot.slane %v1099, %v1170
    %v1172 = vmul.f32 %v1058, %v1171
    %v1173 = vadd.f32 %v1167, %v1172
    %v1174 = vlaneseq
    %v1175 = vshrl.u32 %v1174, 7
    %v1176 = vsub.s32 1, %v1175
    %v1177 = vrot.slane %v1099, %v1176
    %v1178 = vmul.f32 %v1068, %v1177
    %v1179 = vadd.f32 %v1173, %v1178
    %v1180 = vld [vmem:[#allocation11 + $0x30] ss:$0 sm:$0xff]
    %v1181 = vadd.f32 %v1179, %v1180
    %v1182 = vld [vmem:[%s7] sm:$0xff]
    %v1183 = vld [vmem:[%s7 + $0x8] sm:$0xf]
    %v1184 = vld [vmem:[%s7 + $0xc] sm:$0xff]
    %v1185 = vld [vmem:[%s7 + $0x14] sm:$0xf]
    %v1186 = vld [vmem:[%s7 + $0x18] sm:$0xff]
    %v1187 = vld [vmem:[%s7 + $0x20] sm:$0xf]
    %v1188 = vld [vmem:[%s7 + $0x24] sm:$0xff]
    %v1189 = vld [vmem:[%s7 + $0x2c] sm:$0xf]
    %v1190 = vld [vmem:[%s7 + $0x30] sm:$0xff]
    %v1191 = vld [vmem:[%s7 + $0x38] sm:$0xf]
    %v1192 = vld [vmem:[%s7 + $0x3c] sm:$0xff]
    %v1193 = vld [vmem:[%s7 + $0x44] sm:$0xf]
    %v1194 = vld [vmem:[%s7 + $0x48] sm:$0xff]
    %v1195 = vld [vmem:[%s7 + $0x50] sm:$0xf]
    %v1196 = vld [vmem:[%s7 + $0x54] sm:$0xff]
    %v1197 = vld [vmem:[%s7 + $0x5c] sm:$0xf]
    %v1198 = vld [vmem:[%s7 + $0x60] sm:$0xff]
    %v1199 = vld [vmem:[%s7 + $0x68] sm:$0xf]
    %v1200 = vld [vmem:[%s7 + $0x6c] sm:$0xff]
    %v1201 = vld [vmem:[%s7 + $0x74] sm:$0xf]
    %v1202 = vld [vmem:[%s7 + $0x78] sm:$0xff]
    %v1203 = vld [vmem:[%s7 + $0x80] sm:$0xf]
    %v1204 = vld [vmem:[%s7 + $0x84] sm:$0xff]
    %v1205 = vld [vmem:[%s7 + $0x8c] sm:$0xf]
    %v1206 = vld [vmem:[%s7 + $0x90] sm:$0xff]
    %v1207 = vld [vmem:[%s7 + $0x98] sm:$0xf]
    %v1208 = vld [vmem:[%s7 + $0x9c] sm:$0xff]
    %v1209 = vld [vmem:[%s7 + $0xa4] sm:$0xf]
    %v1210 = vld [vmem:[%s7 + $0xa8] sm:$0xff]
    %v1211 = vld [vmem:[%s7 + $0xb0] sm:$0xf]
    %v1212 = vld [vmem:[%s7 + $0xb4] sm:$0xff]
    %v1213 = vld [vmem:[%s7 + $0xbc] sm:$0xf]
    %v1214 = vld [vmem:[%s7 + $0xc0] sm:$0xff]
    %v1215 = vld [vmem:[%s7 + $0xc8] sm:$0xf]
    %v1216 = vld [vmem:[%s7 + $0xcc] sm:$0xff]
    %v1217 = vld [vmem:[%s7 + $0xd4] sm:$0xf]
    %v1218 = vld [vmem:[%s7 + $0xd8] sm:$0xff]
    %v1219 = vld [vmem:[%s7 + $0xe0] sm:$0xf]
    %v1220 = vld [vmem:[%s7 + $0xe4] sm:$0xff]
    %v1221 = vld [vmem:[%s7 + $0xec] sm:$0xf]
    %v1222 = vld [vmem:[%s7 + $0xf0] sm:$0xff]
    %v1223 = vld [vmem:[%s7 + $0xf8] sm:$0xf]
    %v1224 = vld [vmem:[%s7 + $0xfc] sm:$0xff]
    %v1225 = vld [vmem:[%s7 + $0x104] sm:$0xf]
    %v1226 = vld [vmem:[%s7 + $0x108] sm:$0xff]
    %v1227 = vld [vmem:[%s7 + $0x110] sm:$0xf]
    %v1228 = vld [vmem:[%s7 + $0x114] sm:$0xff]
    %v1229 = vld [vmem:[%s7 + $0x11c] sm:$0xf]
    %v1230 = vpack.c.bf16 %v386, %v386
    %v1231 = vpack.c.bf16 %v388, %v388
    %v1280 = vunpack.c.l.b16 %v1182
    %v1281 = vunpack.c.h.b16 %v1182
    %v1282 = vunpack.c.l.b16 %v1183
    %v1283 = vunpack.c.l.b16 %v1184
    %v1284 = vunpack.c.h.b16 %v1184
    %v1285 = vunpack.c.l.b16 %v1185
    %v1286 = vunpack.c.l.b16 %v1186
    %v1287 = vunpack.c.h.b16 %v1186
    %v1288 = vunpack.c.l.b16 %v1187
    %v1289 = vunpack.c.l.b16 %v1188
    %v1290 = vunpack.c.h.b16 %v1188
    %v1291 = vunpack.c.l.b16 %v1189
    %v1292 = vunpack.c.l.b16 %v1190
    %v1293 = vunpack.c.h.b16 %v1190
    %v1294 = vunpack.c.l.b16 %v1191
    %v1295 = vunpack.c.l.b16 %v1192
    %v1296 = vunpack.c.h.b16 %v1192
    %v1297 = vunpack.c.l.b16 %v1193
    %v1298 = vunpack.c.l.b16 %v1194
    %v1299 = vunpack.c.h.b16 %v1194
    %v1300 = vunpack.c.l.b16 %v1195
    %v1301 = vunpack.c.l.b16 %v1196
    %v1302 = vunpack.c.h.b16 %v1196
    %v1303 = vunpack.c.l.b16 %v1197
    %v1304 = vunpack.c.l.b16 %v1198
    %v1305 = vunpack.c.h.b16 %v1198
    %v1306 = vunpack.c.l.b16 %v1199
    %v1307 = vunpack.c.l.b16 %v1200
    %v1308 = vunpack.c.h.b16 %v1200
    %v1309 = vunpack.c.l.b16 %v1201
    %v1310 = vunpack.c.l.b16 %v1202
    %v1311 = vunpack.c.h.b16 %v1202
    %v1312 = vunpack.c.l.b16 %v1203
    %v1313 = vunpack.c.l.b16 %v1204
    %v1314 = vunpack.c.h.b16 %v1204
    %v1315 = vunpack.c.l.b16 %v1205
    %v1316 = vunpack.c.l.b16 %v1206
    %v1317 = vunpack.c.h.b16 %v1206
    %v1318 = vunpack.c.l.b16 %v1207
    %v1319 = vunpack.c.l.b16 %v1208
    %v1320 = vunpack.c.h.b16 %v1208
    %v1321 = vunpack.c.l.b16 %v1209
    %v1322 = vunpack.c.l.b16 %v1210
    %v1323 = vunpack.c.h.b16 %v1210
    %v1324 = vunpack.c.l.b16 %v1211
    %v1325 = vunpack.c.l.b16 %v1212
    %v1326 = vunpack.c.h.b16 %v1212
    %v1327 = vunpack.c.l.b16 %v1213
    %v1328 = vunpack.c.l.b16 %v1214
    %v1329 = vunpack.c.h.b16 %v1214
    %v1330 = vunpack.c.l.b16 %v1215
    %v1331 = vunpack.c.l.b16 %v1216
    %v1332 = vunpack.c.h.b16 %v1216
    %v1333 = vunpack.c.l.b16 %v1217
    %v1334 = vunpack.c.l.b16 %v1218
    %v1335 = vunpack.c.h.b16 %v1218
    %v1336 = vunpack.c.l.b16 %v1219
    %v1337 = vunpack.c.l.b16 %v1220
    %v1338 = vunpack.c.h.b16 %v1220
    %v1339 = vunpack.c.l.b16 %v1221
    %v1340 = vunpack.c.l.b16 %v1222
    %v1341 = vunpack.c.h.b16 %v1222
    %v1342 = vunpack.c.l.b16 %v1223
    %v1343 = vunpack.c.l.b16 %v1224
    %v1344 = vunpack.c.h.b16 %v1224
    %v1345 = vunpack.c.l.b16 %v1225
    %v1346 = vunpack.c.l.b16 %v1226
    %v1347 = vunpack.c.h.b16 %v1226
    %v1348 = vunpack.c.l.b16 %v1227
    %v1349 = vunpack.c.l.b16 %v1228
    %v1350 = vunpack.c.h.b16 %v1228
    %v1351 = vunpack.c.l.b16 %v1229
    %v1352 = vpack.c.b16 %v1283, %v1280
    %v1353 = vpack.c.b16 %v1284, %v1281
    %v1354 = vpack.c.b16 %v1285, %v1282
    %v1355 = vpack.c.b16 %v1289, %v1286
    %v1356 = vpack.c.b16 %v1290, %v1287
    %v1357 = vpack.c.b16 %v1291, %v1288
    %v1358 = vpack.c.b16 %v1295, %v1292
    %v1359 = vpack.c.b16 %v1296, %v1293
    %v1360 = vpack.c.b16 %v1297, %v1294
    %v1361 = vpack.c.b16 %v1301, %v1298
    %v1362 = vpack.c.b16 %v1302, %v1299
    %v1363 = vpack.c.b16 %v1303, %v1300
    %v1364 = vpack.c.b16 %v1307, %v1304
    %v1365 = vpack.c.b16 %v1308, %v1305
    %v1366 = vpack.c.b16 %v1309, %v1306
    %v1367 = vpack.c.b16 %v1313, %v1310
    %v1368 = vpack.c.b16 %v1314, %v1311
    %v1369 = vpack.c.b16 %v1315, %v1312
    %v1370 = vpack.c.b16 %v1319, %v1316
    %v1371 = vpack.c.b16 %v1320, %v1317
    %v1372 = vpack.c.b16 %v1321, %v1318
    %v1373 = vpack.c.b16 %v1325, %v1322
    %v1374 = vpack.c.b16 %v1326, %v1323
    %v1375 = vpack.c.b16 %v1327, %v1324
    %v1376 = vpack.c.b16 %v1331, %v1328
    %v1377 = vpack.c.b16 %v1332, %v1329
    %v1378 = vpack.c.b16 %v1333, %v1330
    %v1379 = vpack.c.b16 %v1337, %v1334
    %v1380 = vpack.c.b16 %v1338, %v1335
    %v1381 = vpack.c.b16 %v1339, %v1336
    %v1382 = vpack.c.b16 %v1343, %v1340
    %v1383 = vpack.c.b16 %v1344, %v1341
    %v1384 = vpack.c.b16 %v1345, %v1342
    %v1385 = vpack.c.b16 %v1349, %v1346
    %v1386 = vpack.c.b16 %v1350, %v1347
    %v1387 = vpack.c.b16 %v1351, %v1348
    %vm1424 = vcmask 523264
    %v1426 = vsel %vm1424, %v1231, 0
    %1428 = vmatprep.subr.bf16.mxu0 %v1353
    %1429 = vmatpush1.bf16.msra.mxu0 %v1352
    %1430 = vmatprep.subr.bf16.mxu0 %v1356
    %1431 = vmatpush1.bf16.msra.mxu0 %v1355
    %1432 = vmatprep.subr.bf16.mxu0 %v1359
    %1433 = vmatpush1.bf16.msra.mxu0 %v1358
    %1434 = vmatprep.subr.bf16.mxu0 %v1362
    %1435 = vmatpush1.bf16.msra.mxu0 %v1361
    %1436 = vmatprep.subr.bf16.mxu0 %v1365
    %1437 = vmatpush1.bf16.msra.mxu0 %v1364
    %1438 = vmatprep.subr.bf16.mxu0 %v1368
    %1439 = vmatpush1.bf16.msra.mxu0 %v1367
    %1440 = vmatprep.subr.bf16.mxu0 %v1371
    %1441 = vmatpush1.bf16.msra.mxu0 %v1370
    %1442 = vmatprep.subr.bf16.mxu0 %v1374
    %1443 = vmatpush1.bf16.msra.mxu0 %v1373
    %1444 = vmatprep.subr.bf16.mxu0 %v1377
    %1445 = vmatpush1.bf16.msra.mxu0 %v1376
    %1446 = vmatprep.subr.bf16.mxu0 %v1380
    %1447 = vmatpush1.bf16.msra.mxu0 %v1379
    %1448 = vmatprep.subr.bf16.mxu0 %v1383
    %1449 = vmatpush1.bf16.msra.mxu0 %v1382
    %1450 = vmatprep.subr.bf16.mxu0 %v1386
    %1451 = vmatpush1.bf16.msra.mxu0 %v1385
    %1452 = vmatprep.subr.bf16.mxu0 0
    %1453 = vmatpush1.bf16.msra.mxu0 0
    %1454 = vmatprep.subr.bf16.mxu0 0
    %1455 = vmatpush1.bf16.msra.mxu0 0
    %1456 = vmatprep.subr.bf16.mxu0 0
    %1457 = vmatpush1.bf16.msra.mxu0 0
    %1458 = vmatprep.subr.bf16.mxu0 0
    %1459 = vmatpush1.bf16.msra.mxu0 0
    %1460 = vmatprep.mubr.bf16.mxu0 %v1426
    %1461 = vmatmul.mubr.bf16.gmra.mrb[0].mxu0 %v1230
    %v1462 = vpop.f32.mrb[0].mxu0
    %v1463 = vadd.f32 0.0, %v1462
    %v1464 = vpop.f32.mrb[0].mxu0
    %v1465 = vadd.f32 0.0, %v1464
    %v1466 = vpop.f32.mrb[0].mxu0
    %v1467 = vpop.f32.mrb[0].mxu0
    %1468 = vdwg.mxu0
    %1469 = vmatprep.subr.bf16.mxu0 0
    %1470 = vmatpush1.bf16.msra.mxu0 %v1354
    %1471 = vmatprep.subr.bf16.mxu0 0
    %1472 = vmatpush1.bf16.msra.mxu0 %v1357
    %1473 = vmatprep.subr.bf16.mxu0 0
    %1474 = vmatpush1.bf16.msra.mxu0 %v1360
    %1475 = vmatprep.subr.bf16.mxu0 0
    %1476 = vmatpush1.bf16.msra.mxu0 %v1363
    %1477 = vmatprep.subr.bf16.mxu0 0
    %1478 = vmatpush1.bf16.msra.mxu0 %v1366
    %1479 = vmatprep.subr.bf16.mxu0 0
    %1480 = vmatpush1.bf16.msra.mxu0 %v1369
    %1481 = vmatprep.subr.bf16.mxu0 0
    %1482 = vmatpush1.bf16.msra.mxu0 %v1372
    %1483 = vmatprep.subr.bf16.mxu0 0
    %1484 = vmatpush1.bf16.msra.mxu0 %v1375
    %1485 = vmatprep.subr.bf16.mxu0 0
    %1486 = vmatpush1.bf16.msra.mxu0 %v1378
    %1487 = vmatprep.subr.bf16.mxu0 0
    %1488 = vmatpush1.bf16.msra.mxu0 %v1381
    %1489 = vmatprep.subr.bf16.mxu0 0
    %1490 = vmatpush1.bf16.msra.mxu0 %v1384
    %1491 = vmatprep.subr.bf16.mxu0 0
    %1492 = vmatpush1.bf16.msra.mxu0 %v1387
    %1493 = vmatprep.subr.bf16.mxu0 0
    %1494 = vmatpush1.bf16.msra.mxu0 0
    %1495 = vmatprep.subr.bf16.mxu0 0
    %1496 = vmatpush1.bf16.msra.mxu0 0
    %1497 = vmatprep.subr.bf16.mxu0 0
    %1498 = vmatpush1.bf16.msra.mxu0 0
    %1499 = vmatprep.subr.bf16.mxu0 0
    %1500 = vmatpush1.bf16.msra.mxu0 0
    %1501 = vmatprep.mubr.bf16.mxu0 %v1426
    %1502 = vmatmul.mubr.bf16.gmra.mrb[0].mxu0 %v1230
    %v1503 = vpop.f32.mrb[0].mxu0
    %v1504 = vadd.f32 0.0, %v1503
    %v1505 = vpop.f32.mrb[0].mxu0
    %v1506 = vpop.f32.mrb[0].mxu0
    %v1507 = vpop.f32.mrb[0].mxu0
    %1508 = vdwg.mxu0
    %s1509 = scalar_lea.vmem [#allocation11], 3
    %v1510 = vld [vmem:[%s1509] ss:$8 sm:$0x3]
    %v1512 = vlaneseq
    %v1513 = vshrl.u32 %v1512, 7
    %v1514 = vsub.s32 0, %v1513
    %v1515 = vrot.slane %v1510, %v1514
    %v1516 = vlaneseq
    %v1517 = vshrl.u32 %v1516, 7
    %v1518 = vsub.s32 1, %v1517
    %v1519 = vrot.slane %v1510, %v1518
    %v1522 = vadd.f32 %v1465, %v1515
    %v1523 = vadd.f32 %v1504, %v1519
    %s1524 = scalar_lea.vmem [#allocation11], 4
    %v1525 = vld [vmem:[%s1524] ss:$8 sm:$0x3]
    %s1526 = scalar_lea.vmem [#allocation11], 5
    %v1527 = vld [vmem:[%s1526] ss:$8 sm:$0x3]
    %v1528 = vsel %vm807, %v1522, 0.0
    %vm1529 = vcmask 517120
    %v1530 = vsel %vm1529, %v1523, 0.0
    %v1531 = vadd.f32 %v1528, %v1530
    %1532 = vadd.xlane.f32.xlu0 %v1531
    %v1533 = vpop.xlane.xlu0 %1532
    %v1534 = vrcp.pop 192.0
    %v1535 = vmul.f32 %v1533, %v1534
    %v1536 = vsub.f32 %v1522, %v1535
    %v1537 = vsub.f32 %v1523, %v1535
    %v1538 = vmul.f32 %v1536, %v1536
    %v1539 = vmul.f32 %v1537, %v1537
    %v1540 = vsel %vm807, %v1538, 0.0
    %v1541 = vsel %vm1529, %v1539, 0.0
    %v1542 = vadd.f32 %v1540, %v1541
    %1543 = vadd.xlane.f32.xlu0 %v1542
    %v1544 = vpop.xlane.xlu0 %1543
    %v1545 = vmul.f32 %v1544, %v1534
    %v1546 = vadd.f32 %v1545, 1e-05
    %v1547 = vrsqrt.pop %v1546
    %v1548 = vmul.f32 %v1536, %v1547
    %v1549 = vmul.f32 %v1537, %v1547
    %v1551 = vlaneseq
    %v1552 = vshrl.u32 %v1551, 7
    %v1553 = vsub.s32 0, %v1552
    %v1554 = vrot.slane %v1525, %v1553
    %v1555 = vlaneseq
    %v1556 = vshrl.u32 %v1555, 7
    %v1557 = vsub.s32 1, %v1556
    %v1558 = vrot.slane %v1525, %v1557
    %v1561 = vmul.f32 %v1548, %v1554
    %v1562 = vmul.f32 %v1549, %v1558
    %v1564 = vlaneseq
    %v1565 = vshrl.u32 %v1564, 7
    %v1566 = vsub.s32 0, %v1565
    %v1567 = vrot.slane %v1527, %v1566
    %v1568 = vlaneseq
    %v1569 = vshrl.u32 %v1568, 7
    %v1570 = vsub.s32 1, %v1569
    %v1571 = vrot.slane %v1527, %v1570
    %v1574 = vadd.f32 %v1561, %v1567
    %v1575 = vadd.f32 %v1562, %v1571
    %v1576 = vmax.f32 %v1574, 0.0
    %v1577 = vmax.f32 %v1575, 0.0
    %v1578 = vld [vmem:[#allocation6] sm:$0xf]
    %v1579 = vld [vmem:[#allocation6 + $0x4] sm:$0xf]
    %v1580 = vld [vmem:[#allocation6 + $0x8] sm:$0xf]
    %v1581 = vld [vmem:[#allocation6 + $0xc] sm:$0xf]
    %v1582 = vld [vmem:[#allocation6 + $0x10] sm:$0xf]
    %v1583 = vld [vmem:[#allocation6 + $0x14] sm:$0xf]
    %v1584 = vld [vmem:[#allocation6 + $0x18] sm:$0xf]
    %v1585 = vld [vmem:[#allocation6 + $0x1c] sm:$0xf]
    %v1586 = vld [vmem:[#allocation6 + $0x20] sm:$0xf]
    %v1587 = vld [vmem:[#allocation6 + $0x24] sm:$0xf]
    %v1588 = vld [vmem:[#allocation6 + $0x28] sm:$0xf]
    %v1589 = vld [vmem:[#allocation6 + $0x2c] sm:$0xf]
    %v1590 = vld [vmem:[#allocation6 + $0x30] sm:$0xf]
    %v1591 = vld [vmem:[#allocation6 + $0x34] sm:$0xf]
    %v1592 = vld [vmem:[#allocation6 + $0x38] sm:$0xf]
    %v1593 = vld [vmem:[#allocation6 + $0x3c] sm:$0xf]
    %v1594 = vld [vmem:[#allocation6 + $0x40] sm:$0xf]
    %v1595 = vld [vmem:[#allocation6 + $0x44] sm:$0xf]
    %v1596 = vld [vmem:[#allocation6 + $0x48] sm:$0xf]
    %v1597 = vld [vmem:[#allocation6 + $0x4c] sm:$0xf]
    %v1598 = vld [vmem:[#allocation6 + $0x50] sm:$0xf]
    %v1599 = vld [vmem:[#allocation6 + $0x54] sm:$0xf]
    %v1600 = vld [vmem:[#allocation6 + $0x58] sm:$0xf]
    %v1601 = vld [vmem:[#allocation6 + $0x5c] sm:$0xf]
    %v1602 = vpack.c.bf16 %v1576, %v1576
    %v1603 = vpack.c.bf16 %v1577, %v1577
    %v1628 = vunpack.c.l.b16 %v1578
    %v1629 = vunpack.c.l.b16 %v1579
    %v1630 = vunpack.c.l.b16 %v1580
    %v1631 = vunpack.c.l.b16 %v1581
    %v1632 = vunpack.c.l.b16 %v1582
    %v1633 = vunpack.c.l.b16 %v1583
    %v1634 = vunpack.c.l.b16 %v1584
    %v1635 = vunpack.c.l.b16 %v1585
    %v1636 = vunpack.c.l.b16 %v1586
    %v1637 = vunpack.c.l.b16 %v1587
    %v1638 = vunpack.c.l.b16 %v1588
    %v1639 = vunpack.c.l.b16 %v1589
    %v1640 = vunpack.c.l.b16 %v1590
    %v1641 = vunpack.c.l.b16 %v1591
    %v1642 = vunpack.c.l.b16 %v1592
    %v1643 = vunpack.c.l.b16 %v1593
    %v1644 = vunpack.c.l.b16 %v1594
    %v1645 = vunpack.c.l.b16 %v1595
    %v1646 = vunpack.c.l.b16 %v1596
    %v1647 = vunpack.c.l.b16 %v1597
    %v1648 = vunpack.c.l.b16 %v1598
    %v1649 = vunpack.c.l.b16 %v1599
    %v1650 = vunpack.c.l.b16 %v1600
    %v1651 = vunpack.c.l.b16 %v1601
    %v1652 = vpack.c.b16 %v1629, %v1628
    %v1653 = vpack.c.b16 %v1631, %v1630
    %v1654 = vpack.c.b16 %v1633, %v1632
    %v1655 = vpack.c.b16 %v1635, %v1634
    %v1656 = vpack.c.b16 %v1637, %v1636
    %v1657 = vpack.c.b16 %v1639, %v1638
    %v1658 = vpack.c.b16 %v1641, %v1640
    %v1659 = vpack.c.b16 %v1643, %v1642
    %v1660 = vpack.c.b16 %v1645, %v1644
    %v1661 = vpack.c.b16 %v1647, %v1646
    %v1662 = vpack.c.b16 %v1649, %v1648
    %v1663 = vpack.c.b16 %v1651, %v1650
    %v1677 = vsel %vm1424, %v1603, 0
    %1679 = vmatprep.subr.bf16.mxu0 0
    %1680 = vmatpush1.bf16.msra.mxu0 %v1652
    %1681 = vmatprep.subr.bf16.mxu0 0
    %1682 = vmatpush1.bf16.msra.mxu0 %v1653
    %1683 = vmatprep.subr.bf16.mxu0 0
    %1684 = vmatpush1.bf16.msra.mxu0 %v1654
    %1685 = vmatprep.subr.bf16.mxu0 0
    %1686 = vmatpush1.bf16.msra.mxu0 %v1655
    %1687 = vmatprep.subr.bf16.mxu0 0
    %1688 = vmatpush1.bf16.msra.mxu0 %v1656
    %1689 = vmatprep.subr.bf16.mxu0 0
    %1690 = vmatpush1.bf16.msra.mxu0 %v1657
    %1691 = vmatprep.subr.bf16.mxu0 0
    %1692 = vmatpush1.bf16.msra.mxu0 %v1658
    %1693 = vmatprep.subr.bf16.mxu0 0
    %1694 = vmatpush1.bf16.msra.mxu0 %v1659
    %1695 = vmatprep.subr.bf16.mxu0 0
    %1696 = vmatpush1.bf16.msra.mxu0 %v1660
    %1697 = vmatprep.subr.bf16.mxu0 0
    %1698 = vmatpush1.bf16.msra.mxu0 %v1661
    %1699 = vmatprep.subr.bf16.mxu0 0
    %1700 = vmatpush1.bf16.msra.mxu0 %v1662
    %1701 = vmatprep.subr.bf16.mxu0 0
    %1702 = vmatpush1.bf16.msra.mxu0 %v1663
    %1703 = vmatprep.subr.bf16.mxu0 0
    %1704 = vmatpush1.bf16.msra.mxu0 0
    %1705 = vmatprep.subr.bf16.mxu0 0
    %1706 = vmatpush1.bf16.msra.mxu0 0
    %1707 = vmatprep.subr.bf16.mxu0 0
    %1708 = vmatpush1.bf16.msra.mxu0 0
    %1709 = vmatprep.subr.bf16.mxu0 0
    %1710 = vmatpush1.bf16.msra.mxu0 0
    %1711 = vmatprep.mubr.bf16.mxu0 %v1677
    %1712 = vmatmul.mubr.bf16.gmra.mrb[0].mxu0 %v1602
    %v1713 = vpop.f32.mrb[0].mxu0
    %v1714 = vadd.f32 %v1463, %v1713
    %v1715 = vpop.f32.mrb[0].mxu0
    %v1716 = vpop.f32.mrb[0].mxu0
    %v1717 = vpop.f32.mrb[0].mxu0
    %1718 = vdwg.mxu0
    %v1719 = vld [vmem:[#allocation11 + $0x31] ss:$0 sm:$0xff]
    %v1720 = vadd.f32 %v1714, %v1719
    %v1721 = vld [vmem:[%s9] sm:$0xff]
    %v1722 = vld [vmem:[%s9 + $0x8] sm:$0xf]
    %v1723 = vld [vmem:[%s9 + $0xc] sm:$0xff]
    %v1724 = vld [vmem:[%s9 + $0x14] sm:$0xf]
    %v1725 = vld [vmem:[%s9 + $0x18] sm:$0xff]
    %v1726 = vld [vmem:[%s9 + $0x20] sm:$0xf]
    %v1727 = vld [vmem:[%s9 + $0x24] sm:$0xff]
    %v1728 = vld [vmem:[%s9 + $0x2c] sm:$0xf]
    %v1729 = vld [vmem:[%s9 + $0x30] sm:$0xff]
    %v1730 = vld [vmem:[%s9 + $0x38] sm:$0xf]
    %v1731 = vld [vmem:[%s9 + $0x3c] sm:$0xff]
    %v1732 = vld [vmem:[%s9 + $0x44] sm:$0xf]
    %v1733 = vld [vmem:[%s9 + $0x48] sm:$0xff]
    %v1734 = vld [vmem:[%s9 + $0x50] sm:$0xf]
    %v1735 = vld [vmem:[%s9 + $0x54] sm:$0xff]
    %v1736 = vld [vmem:[%s9 + $0x5c] sm:$0xf]
    %v1737 = vld [vmem:[%s9 + $0x60] sm:$0xff]
    %v1738 = vld [vmem:[%s9 + $0x68] sm:$0xf]
    %v1739 = vld [vmem:[%s9 + $0x6c] sm:$0xff]
    %v1740 = vld [vmem:[%s9 + $0x74] sm:$0xf]
    %v1741 = vld [vmem:[%s9 + $0x78] sm:$0xff]
    %v1742 = vld [vmem:[%s9 + $0x80] sm:$0xf]
    %v1743 = vld [vmem:[%s9 + $0x84] sm:$0xff]
    %v1744 = vld [vmem:[%s9 + $0x8c] sm:$0xf]
    %v1745 = vld [vmem:[%s9 + $0x90] sm:$0xff]
    %v1746 = vld [vmem:[%s9 + $0x98] sm:$0xf]
    %v1747 = vld [vmem:[%s9 + $0x9c] sm:$0xff]
    %v1748 = vld [vmem:[%s9 + $0xa4] sm:$0xf]
    %v1749 = vld [vmem:[%s9 + $0xa8] sm:$0xff]
    %v1750 = vld [vmem:[%s9 + $0xb0] sm:$0xf]
    %v1751 = vld [vmem:[%s9 + $0xb4] sm:$0xff]
    %v1752 = vld [vmem:[%s9 + $0xbc] sm:$0xf]
    %v1753 = vpack.c.bf16 %v1024, %v1024
    %v1754 = vld [vmem:[%s9 + $0xc0] sm:$0xff]
    %v1755 = vld [vmem:[%s9 + $0xc8] sm:$0xf]
    %v1756 = vld [vmem:[%s9 + $0xcc] sm:$0xff]
    %v1757 = vld [vmem:[%s9 + $0xd4] sm:$0xf]
    %v1758 = vld [vmem:[%s9 + $0xd8] sm:$0xff]
    %v1759 = vld [vmem:[%s9 + $0xe0] sm:$0xf]
    %v1760 = vld [vmem:[%s9 + $0xe4] sm:$0xff]
    %v1761 = vld [vmem:[%s9 + $0xec] sm:$0xf]
    %v1762 = vld [vmem:[%s9 + $0xf0] sm:$0xff]
    %v1763 = vld [vmem:[%s9 + $0xf8] sm:$0xf]
    %v1764 = vld [vmem:[%s9 + $0xfc] sm:$0xff]
    %v1765 = vld [vmem:[%s9 + $0x104] sm:$0xf]
    %v1766 = vld [vmem:[%s9 + $0x108] sm:$0xff]
    %v1767 = vld [vmem:[%s9 + $0x110] sm:$0xf]
    %v1768 = vld [vmem:[%s9 + $0x114] sm:$0xff]
    %v1769 = vld [vmem:[%s9 + $0x11c] sm:$0xf]
    %v1770 = vld [vmem:[%s9 + $0x120] sm:$0xff]
    %v1771 = vld [vmem:[%s9 + $0x128] sm:$0xf]
    %v1772 = vld [vmem:[%s9 + $0x12c] sm:$0xff]
    %v1773 = vld [vmem:[%s9 + $0x134] sm:$0xf]
    %v1774 = vld [vmem:[%s9 + $0x138] sm:$0xff]
    %v1775 = vld [vmem:[%s9 + $0x140] sm:$0xf]
    %v1776 = vld [vmem:[%s9 + $0x144] sm:$0xff]
    %v1777 = vld [vmem:[%s9 + $0x14c] sm:$0xf]
    %v1778 = vld [vmem:[%s9 + $0x150] sm:$0xff]
    %v1779 = vld [vmem:[%s9 + $0x158] sm:$0xf]
    %v1780 = vld [vmem:[%s9 + $0x15c] sm:$0xff]
    %v1781 = vld [vmem:[%s9 + $0x164] sm:$0xf]
    %v1782 = vld [vmem:[%s9 + $0x168] sm:$0xff]
    %v1783 = vld [vmem:[%s9 + $0x170] sm:$0xf]
    %v1784 = vld [vmem:[%s9 + $0x174] sm:$0xff]
    %v1785 = vld [vmem:[%s9 + $0x17c] sm:$0xf]
    %v1786 = vpack.c.bf16 %v1181, %v1181
    %v1819 = vunpack.c.l.b16 %v1754
    %v1820 = vunpack.c.h.b16 %v1754
    %v1821 = vunpack.c.l.b16 %v1755
    %v1822 = vunpack.c.l.b16 %v1756
    %v1823 = vunpack.c.h.b16 %v1756
    %v1824 = vunpack.c.l.b16 %v1757
    %v1825 = vunpack.c.l.b16 %v1758
    %v1826 = vunpack.c.h.b16 %v1758
    %v1827 = vunpack.c.l.b16 %v1759
    %v1828 = vunpack.c.l.b16 %v1760
    %v1829 = vunpack.c.h.b16 %v1760
    %v1830 = vunpack.c.l.b16 %v1761
    %v1831 = vunpack.c.l.b16 %v1762
    %v1832 = vunpack.c.h.b16 %v1762
    %v1833 = vunpack.c.l.b16 %v1763
    %v1834 = vunpack.c.l.b16 %v1764
    %v1835 = vunpack.c.h.b16 %v1764
    %v1836 = vunpack.c.l.b16 %v1765
    %v1837 = vunpack.c.l.b16 %v1766
    %v1838 = vunpack.c.h.b16 %v1766
    %v1839 = vunpack.c.l.b16 %v1767
    %v1840 = vunpack.c.l.b16 %v1768
    %v1841 = vunpack.c.h.b16 %v1768
    %v1842 = vunpack.c.l.b16 %v1769
    %v1843 = vunpack.c.l.b16 %v1770
    %v1844 = vunpack.c.h.b16 %v1770
    %v1845 = vunpack.c.l.b16 %v1771
    %v1846 = vunpack.c.l.b16 %v1772
    %v1847 = vunpack.c.h.b16 %v1772
    %v1848 = vunpack.c.l.b16 %v1773
    %v1849 = vunpack.c.l.b16 %v1774
    %v1850 = vunpack.c.h.b16 %v1774
    %v1851 = vunpack.c.l.b16 %v1775
    %v1852 = vunpack.c.l.b16 %v1776
    %v1853 = vunpack.c.h.b16 %v1776
    %v1854 = vunpack.c.l.b16 %v1777
    %v1855 = vunpack.c.l.b16 %v1778
    %v1856 = vunpack.c.h.b16 %v1778
    %v1857 = vunpack.c.l.b16 %v1779
    %v1858 = vunpack.c.l.b16 %v1780
    %v1859 = vunpack.c.h.b16 %v1780
    %v1860 = vunpack.c.l.b16 %v1781
    %v1861 = vunpack.c.l.b16 %v1782
    %v1862 = vunpack.c.h.b16 %v1782
    %v1863 = vunpack.c.l.b16 %v1783
    %v1864 = vunpack.c.l.b16 %v1784
    %v1865 = vunpack.c.h.b16 %v1784
    %v1866 = vunpack.c.l.b16 %v1785
    %v1867 = vpack.c.b16 %v1822, %v1819
    %v1868 = vpack.c.b16 %v1823, %v1820
    %v1869 = vpack.c.b16 %v1824, %v1821
    %v1870 = vpack.c.b16 %v1828, %v1825
    %v1871 = vpack.c.b16 %v1829, %v1826
    %v1872 = vpack.c.b16 %v1830, %v1827
    %v1873 = vpack.c.b16 %v1834, %v1831
    %v1874 = vpack.c.b16 %v1835, %v1832
    %v1875 = vpack.c.b16 %v1836, %v1833
    %v1876 = vpack.c.b16 %v1840, %v1837
    %v1877 = vpack.c.b16 %v1841, %v1838
    %v1878 = vpack.c.b16 %v1842, %v1839
    %v1879 = vpack.c.b16 %v1846, %v1843
    %v1880 = vpack.c.b16 %v1847, %v1844
    %v1881 = vpack.c.b16 %v1848, %v1845
    %v1882 = vpack.c.b16 %v1852, %v1849
    %v1883 = vpack.c.b16 %v1853, %v1850
    %v1884 = vpack.c.b16 %v1854, %v1851
    %v1885 = vpack.c.b16 %v1858, %v1855
    %v1886 = vpack.c.b16 %v1859, %v1856
    %v1887 = vpack.c.b16 %v1860, %v1857
    %v1888 = vpack.c.b16 %v1864, %v1861
    %v1889 = vpack.c.b16 %v1865, %v1862
    %v1890 = vpack.c.b16 %v1866, %v1863
    %1915 = vmatprep.subr.bf16.mxu0 %v1868
    %1916 = vmatpush1.bf16.msra.mxu0 %v1867
    %1917 = vmatprep.subr.bf16.mxu0 %v1871
    %1918 = vmatpush1.bf16.msra.mxu0 %v1870
    %1919 = vmatprep.subr.bf16.mxu0 %v1874
    %1920 = vmatpush1.bf16.msra.mxu0 %v1873
    %1921 = vmatprep.subr.bf16.mxu0 %v1877
    %1922 = vmatpush1.bf16.msra.mxu0 %v1876
    %1923 = vmatprep.subr.bf16.mxu0 %v1880
    %1924 = vmatpush1.bf16.msra.mxu0 %v1879
    %1925 = vmatprep.subr.bf16.mxu0 %v1883
    %1926 = vmatpush1.bf16.msra.mxu0 %v1882
    %1927 = vmatprep.subr.bf16.mxu0 %v1886
    %1928 = vmatpush1.bf16.msra.mxu0 %v1885
    %1929 = vmatprep.subr.bf16.mxu0 %v1889
    %1930 = vmatpush1.bf16.msra.mxu0 %v1888
    %1931 = vmatprep.subr.bf16.mxu0 0
    %1932 = vmatpush1.bf16.msra.mxu0 0
    %1933 = vmatprep.subr.bf16.mxu0 0
    %1934 = vmatpush1.bf16.msra.mxu0 0
    %1935 = vmatprep.subr.bf16.mxu0 0
    %1936 = vmatpush1.bf16.msra.mxu0 0
    %1937 = vmatprep.subr.bf16.mxu0 0
    %1938 = vmatpush1.bf16.msra.mxu0 0
    %1939 = vmatprep.subr.bf16.mxu0 0
    %1940 = vmatpush1.bf16.msra.mxu0 0
    %1941 = vmatprep.subr.bf16.mxu0 0
    %1942 = vmatpush1.bf16.msra.mxu0 0
    %1943 = vmatprep.subr.bf16.mxu0 0
    %1944 = vmatpush1.bf16.msra.mxu0 0
    %1945 = vmatprep.subr.bf16.mxu0 0
    %1946 = vmatpush1.bf16.msra.mxu0 0
    %1947 = vmatprep.mubr.bf16.mxu0 0
    %1948 = vmatmul.mubr.bf16.gmra.mrb[0].mxu0 %v1786
    %v1949 = vpop.f32.mrb[0].mxu0
    %v1950 = vadd.f32 0.0, %v1949
    %v1951 = vpop.f32.mrb[0].mxu0
    %v1952 = vadd.f32 0.0, %v1951
    %v1953 = vpop.f32.mrb[0].mxu0
    %v1954 = vpop.f32.mrb[0].mxu0
    %1955 = vdwg.mxu0
    %1956 = vmatprep.subr.bf16.mxu0 0
    %1957 = vmatpush1.bf16.msra.mxu0 %v1869
    %1958 = vmatprep.subr.bf16.mxu0 0
    %1959 = vmatpush1.bf16.msra.mxu0 %v1872
    %1960 = vmatprep.subr.bf16.mxu0 0
    %1961 = vmatpush1.bf16.msra.mxu0 %v1875
    %1962 = vmatprep.subr.bf16.mxu0 0
    %1963 = vmatpush1.bf16.msra.mxu0 %v1878
    %1964 = vmatprep.subr.bf16.mxu0 0
    %1965 = vmatpush1.bf16.msra.mxu0 %v1881
    %1966 = vmatprep.subr.bf16.mxu0 0
    %1967 = vmatpush1.bf16.msra.mxu0 %v1884
    %1968 = vmatprep.subr.bf16.mxu0 0
    %1969 = vmatpush1.bf16.msra.mxu0 %v1887
    %1970 = vmatprep.subr.bf16.mxu0 0
    %1971 = vmatpush1.bf16.msra.mxu0 %v1890
    %1972 = vmatprep.subr.bf16.mxu0 0
    %1973 = vmatpush1.bf16.msra.mxu0 0
    %1974 = vmatprep.subr.bf16.mxu0 0
    %1975 = vmatpush1.bf16.msra.mxu0 0
    %1976 = vmatprep.subr.bf16.mxu0 0
    %1977 = vmatpush1.bf16.msra.mxu0 0
    %1978 = vmatprep.subr.bf16.mxu0 0
    %1979 = vmatpush1.bf16.msra.mxu0 0
    %1980 = vmatprep.subr.bf16.mxu0 0
    %1981 = vmatpush1.bf16.msra.mxu0 0
    %1982 = vmatprep.subr.bf16.mxu0 0
    %1983 = vmatpush1.bf16.msra.mxu0 0
    %1984 = vmatprep.subr.bf16.mxu0 0
    %1985 = vmatpush1.bf16.msra.mxu0 0
    %1986 = vmatprep.subr.bf16.mxu0 0
    %1987 = vmatpush1.bf16.msra.mxu0 0
    %1988 = vmatprep.mubr.bf16.mxu0 0
    %1989 = vmatmul.mubr.bf16.gmra.mrb[0].mxu0 %v1786
    %v1990 = vpop.f32.mrb[0].mxu0
    %v1991 = vadd.f32 0.0, %v1990
    %v1992 = vpop.f32.mrb[0].mxu0
    %v1993 = vpop.f32.mrb[0].mxu0
    %v1994 = vpop.f32.mrb[0].mxu0
    %1995 = vdwg.mxu0
    %v2028 = vunpack.c.l.b16 %v1721
    %v2029 = vunpack.c.h.b16 %v1721
    %v2030 = vunpack.c.l.b16 %v1722
    %v2031 = vunpack.c.l.b16 %v1723
    %v2032 = vunpack.c.h.b16 %v1723
    %v2033 = vunpack.c.l.b16 %v1724
    %v2034 = vunpack.c.l.b16 %v1725
    %v2035 = vunpack.c.h.b16 %v1725
    %v2036 = vunpack.c.l.b16 %v1726
    %v2037 = vunpack.c.l.b16 %v1727
    %v2038 = vunpack.c.h.b16 %v1727
    %v2039 = vunpack.c.l.b16 %v1728
    %v2040 = vunpack.c.l.b16 %v1729
    %v2041 = vunpack.c.h.b16 %v1729
    %v2042 = vunpack.c.l.b16 %v1730
    %v2043 = vunpack.c.l.b16 %v1731
    %v2044 = vunpack.c.h.b16 %v1731
    %v2045 = vunpack.c.l.b16 %v1732
    %v2046 = vunpack.c.l.b16 %v1733
    %v2047 = vunpack.c.h.b16 %v1733
    %v2048 = vunpack.c.l.b16 %v1734
    %v2049 = vunpack.c.l.b16 %v1735
    %v2050 = vunpack.c.h.b16 %v1735
    %v2051 = vunpack.c.l.b16 %v1736
    %v2052 = vunpack.c.l.b16 %v1737
    %v2053 = vunpack.c.h.b16 %v1737
    %v2054 = vunpack.c.l.b16 %v1738
    %v2055 = vunpack.c.l.b16 %v1739
    %v2056 = vunpack.c.h.b16 %v1739
    %v2057 = vunpack.c.l.b16 %v1740
    %v2058 = vunpack.c.l.b16 %v1741
    %v2059 = vunpack.c.h.b16 %v1741
    %v2060 = vunpack.c.l.b16 %v1742
    %v2061 = vunpack.c.l.b16 %v1743
    %v2062 = vunpack.c.h.b16 %v1743
    %v2063 = vunpack.c.l.b16 %v1744
    %v2064 = vunpack.c.l.b16 %v1745
    %v2065 = vunpack.c.h.b16 %v1745
    %v2066 = vunpack.c.l.b16 %v1746
    %v2067 = vunpack.c.l.b16 %v1747
    %v2068 = vunpack.c.h.b16 %v1747
    %v2069 = vunpack.c.l.b16 %v1748
    %v2070 = vunpack.c.l.b16 %v1749
    %v2071 = vunpack.c.h.b16 %v1749
    %v2072 = vunpack.c.l.b16 %v1750
    %v2073 = vunpack.c.l.b16 %v1751
    %v2074 = vunpack.c.h.b16 %v1751
    %v2075 = vunpack.c.l.b16 %v1752
    %v2076 = vpack.c.b16 %v2031, %v2028
    %v2077 = vpack.c.b16 %v2032, %v2029
    %v2078 = vpack.c.b16 %v2033, %v2030
    %v2079 = vpack.c.b16 %v2037, %v2034
    %v2080 = vpack.c.b16 %v2038, %v2035
    %v2081 = vpack.c.b16 %v2039, %v2036
    %v2082 = vpack.c.b16 %v2043, %v2040
    %v2083 = vpack.c.b16 %v2044, %v2041
    %v2084 = vpack.c.b16 %v2045, %v2042
    %v2085 = vpack.c.b16 %v2049, %v2046
    %v2086 = vpack.c.b16 %v2050, %v2047
    %v2087 = vpack.c.b16 %v2051, %v2048
    %v2088 = vpack.c.b16 %v2055, %v2052
    %v2089 = vpack.c.b16 %v2056, %v2053
    %v2090 = vpack.c.b16 %v2057, %v2054
    %v2091 = vpack.c.b16 %v2061, %v2058
    %v2092 = vpack.c.b16 %v2062, %v2059
    %v2093 = vpack.c.b16 %v2063, %v2060
    %v2094 = vpack.c.b16 %v2067, %v2064
    %v2095 = vpack.c.b16 %v2068, %v2065
    %v2096 = vpack.c.b16 %v2069, %v2066
    %v2097 = vpack.c.b16 %v2073, %v2070
    %v2098 = vpack.c.b16 %v2074, %v2071
    %v2099 = vpack.c.b16 %v2075, %v2072
    %2124 = vmatprep.subr.bf16.mxu0 %v2077
    %2125 = vmatpush1.bf16.msra.mxu0 %v2076
    %2126 = vmatprep.subr.bf16.mxu0 %v2080
    %2127 = vmatpush1.bf16.msra.mxu0 %v2079
    %2128 = vmatprep.subr.bf16.mxu0 %v2083
    %2129 = vmatpush1.bf16.msra.mxu0 %v2082
    %2130 = vmatprep.subr.bf16.mxu0 %v2086
    %2131 = vmatpush1.bf16.msra.mxu0 %v2085
    %2132 = vmatprep.subr.bf16.mxu0 %v2089
    %2133 = vmatpush1.bf16.msra.mxu0 %v2088
    %2134 = vmatprep.subr.bf16.mxu0 %v2092
    %2135 = vmatpush1.bf16.msra.mxu0 %v2091
    %2136 = vmatprep.subr.bf16.mxu0 %v2095
    %2137 = vmatpush1.bf16.msra.mxu0 %v2094
    %2138 = vmatprep.subr.bf16.mxu0 %v2098
    %2139 = vmatpush1.bf16.msra.mxu0 %v2097
    %2140 = vmatprep.subr.bf16.mxu0 0
    %2141 = vmatpush1.bf16.msra.mxu0 0
    %2142 = vmatprep.subr.bf16.mxu0 0
    %2143 = vmatpush1.bf16.msra.mxu0 0
    %2144 = vmatprep.subr.bf16.mxu0 0
    %2145 = vmatpush1.bf16.msra.mxu0 0
    %2146 = vmatprep.subr.bf16.mxu0 0
    %2147 = vmatpush1.bf16.msra.mxu0 0
    %2148 = vmatprep.subr.bf16.mxu0 0
    %2149 = vmatpush1.bf16.msra.mxu0 0
    %2150 = vmatprep.subr.bf16.mxu0 0
    %2151 = vmatpush1.bf16.msra.mxu0 0
    %2152 = vmatprep.subr.bf16.mxu0 0
    %2153 = vmatpush1.bf16.msra.mxu0 0
    %2154 = vmatprep.subr.bf16.mxu0 0
    %2155 = vmatpush1.bf16.msra.mxu0 0
    %2156 = vmatprep.mubr.bf16.mxu0 0
    %2157 = vmatmul.mubr.bf16.gmra.mrb[0].mxu0 %v1753
    %v2158 = vpop.f32.mrb[0].mxu0
    %v2159 = vadd.f32 %v1950, %v2158
    %v2160 = vpop.f32.mrb[0].mxu0
    %v2161 = vadd.f32 %v1952, %v2160
    %v2162 = vpop.f32.mrb[0].mxu0
    %v2163 = vpop.f32.mrb[0].mxu0
    %2164 = vdwg.mxu0
    %2165 = vmatprep.subr.bf16.mxu0 0
    %2166 = vmatpush1.bf16.msra.mxu0 %v2078
    %2167 = vmatprep.subr.bf16.mxu0 0
    %2168 = vmatpush1.bf16.msra.mxu0 %v2081
    %2169 = vmatprep.subr.bf16.mxu0 0
    %2170 = vmatpush1.bf16.msra.mxu0 %v2084
    %2171 = vmatprep.subr.bf16.mxu0 0
    %2172 = vmatpush1.bf16.msra.mxu0 %v2087
    %2173 = vmatprep.subr.bf16.mxu0 0
    %2174 = vmatpush1.bf16.msra.mxu0 %v2090
    %2175 = vmatprep.subr.bf16.mxu0 0
    %2176 = vmatpush1.bf16.msra.mxu0 %v2093
    %2177 = vmatprep.subr.bf16.mxu0 0
    %2178 = vmatpush1.bf16.msra.mxu0 %v2096
    %2179 = vmatprep.subr.bf16.mxu0 0
    %2180 = vmatpush1.bf16.msra.mxu0 %v2099
    %2181 = vmatprep.subr.bf16.mxu0 0
    %2182 = vmatpush1.bf16.msra.mxu0 0
    %2183 = vmatprep.subr.bf16.mxu0 0
    %2184 = vmatpush1.bf16.msra.mxu0 0
    %2185 = vmatprep.subr.bf16.mxu0 0
    %2186 = vmatpush1.bf16.msra.mxu0 0
    %2187 = vmatprep.subr.bf16.mxu0 0
    %2188 = vmatpush1.bf16.msra.mxu0 0
    %2189 = vmatprep.subr.bf16.mxu0 0
    %2190 = vmatpush1.bf16.msra.mxu0 0
    %2191 = vmatprep.subr.bf16.mxu0 0
    %2192 = vmatpush1.bf16.msra.mxu0 0
    %2193 = vmatprep.subr.bf16.mxu0 0
    %2194 = vmatpush1.bf16.msra.mxu0 0
    %2195 = vmatprep.subr.bf16.mxu0 0
    %2196 = vmatpush1.bf16.msra.mxu0 0
    %2197 = vmatprep.mubr.bf16.mxu0 0
    %2198 = vmatmul.mubr.bf16.gmra.mrb[0].mxu0 %v1753
    %v2199 = vpop.f32.mrb[0].mxu0
    %v2200 = vadd.f32 %v1991, %v2199
    %v2201 = vpop.f32.mrb[0].mxu0
    %v2202 = vpop.f32.mrb[0].mxu0
    %v2203 = vpop.f32.mrb[0].mxu0
    %2204 = vdwg.mxu0
    %v2205 = vld [vmem:[%s9 + $0x180] sm:$0xff]
    %v2206 = vld [vmem:[%s9 + $0x188] sm:$0xf]
    %v2207 = vld [vmem:[%s9 + $0x18c] sm:$0xff]
    %v2208 = vld [vmem:[%s9 + $0x194] sm:$0xf]
    %v2209 = vld [vmem:[%s9 + $0x198] sm:$0xff]
    %v2210 = vld [vmem:[%s9 + $0x1a0] sm:$0xf]
    %v2211 = vld [vmem:[%s9 + $0x1a4] sm:$0xff]
    %v2212 = vld [vmem:[%s9 + $0x1ac] sm:$0xf]
    %v2213 = vld [vmem:[%s9 + $0x1b0] sm:$0xff]
    %v2214 = vld [vmem:[%s9 + $0x1b8] sm:$0xf]
    %v2215 = vld [vmem:[%s9 + $0x1bc] sm:$0xff]
    %v2216 = vld [vmem:[%s9 + $0x1c4] sm:$0xf]
    %v2217 = vld [vmem:[%s9 + $0x1c8] sm:$0xff]
    %v2218 = vld [vmem:[%s9 + $0x1d0] sm:$0xf]
    %v2219 = vld [vmem:[%s9 + $0x1d4] sm:$0xff]
    %v2220 = vld [vmem:[%s9 + $0x1dc] sm:$0xf]
    %v2221 = vld [vmem:[%s9 + $0x1e0] sm:$0xff]
    %v2222 = vld [vmem:[%s9 + $0x1e8] sm:$0xf]
    %v2223 = vld [vmem:[%s9 + $0x1ec] sm:$0xff]
    %v2224 = vld [vmem:[%s9 + $0x1f4] sm:$0xf]
    %v2225 = vld [vmem:[%s9 + $0x1f8] sm:$0xff]
    %v2226 = vld [vmem:[%s9 + $0x200] sm:$0xf]
    %v2227 = vld [vmem:[%s9 + $0x204] sm:$0xff]
    %v2228 = vld [vmem:[%s9 + $0x20c] sm:$0xf]
    %v2229 = vld [vmem:[%s9 + $0x210] sm:$0xff]
    %v2230 = vld [vmem:[%s9 + $0x218] sm:$0xf]
    %v2231 = vld [vmem:[%s9 + $0x21c] sm:$0xff]
    %v2232 = vld [vmem:[%s9 + $0x224] sm:$0xf]
    %v2233 = vld [vmem:[%s9 + $0x228] sm:$0xff]
    %v2234 = vld [vmem:[%s9 + $0x230] sm:$0xf]
    %v2235 = vld [vmem:[%s9 + $0x234] sm:$0xff]
    %v2236 = vld [vmem:[%s9 + $0x23c] sm:$0xf]
    %v2237 = vpack.c.bf16 %v1720, %v1720
    %v2270 = vunpack.c.l.b16 %v2205
    %v2271 = vunpack.c.h.b16 %v2205
    %v2272 = vunpack.c.l.b16 %v2206
    %v2273 = vunpack.c.l.b16 %v2207
    %v2274 = vunpack.c.h.b16 %v2207
    %v2275 = vunpack.c.l.b16 %v2208
    %v2276 = vunpack.c.l.b16 %v2209
    %v2277 = vunpack.c.h.b16 %v2209
    %v2278 = vunpack.c.l.b16 %v2210
    %v2279 = vunpack.c.l.b16 %v2211
    %v2280 = vunpack.c.h.b16 %v2211
    %v2281 = vunpack.c.l.b16 %v2212
    %v2282 = vunpack.c.l.b16 %v2213
    %v2283 = vunpack.c.h.b16 %v2213
    %v2284 = vunpack.c.l.b16 %v2214
    %v2285 = vunpack.c.l.b16 %v2215
    %v2286 = vunpack.c.h.b16 %v2215
    %v2287 = vunpack.c.l.b16 %v2216
    %v2288 = vunpack.c.l.b16 %v2217
    %v2289 = vunpack.c.h.b16 %v2217
    %v2290 = vunpack.c.l.b16 %v2218
    %v2291 = vunpack.c.l.b16 %v2219
    %v2292 = vunpack.c.h.b16 %v2219
    %v2293 = vunpack.c.l.b16 %v2220
    %v2294 = vunpack.c.l.b16 %v2221
    %v2295 = vunpack.c.h.b16 %v2221
    %v2296 = vunpack.c.l.b16 %v2222
    %v2297 = vunpack.c.l.b16 %v2223
    %v2298 = vunpack.c.h.b16 %v2223
    %v2299 = vunpack.c.l.b16 %v2224
    %v2300 = vunpack.c.l.b16 %v2225
    %v2301 = vunpack.c.h.b16 %v2225
    %v2302 = vunpack.c.l.b16 %v2226
    %v2303 = vunpack.c.l.b16 %v2227
    %v2304 = vunpack.c.h.b16 %v2227
    %v2305 = vunpack.c.l.b16 %v2228
    %v2306 = vunpack.c.l.b16 %v2229
    %v2307 = vunpack.c.h.b16 %v2229
    %v2308 = vunpack.c.l.b16 %v2230
    %v2309 = vunpack.c.l.b16 %v2231
    %v2310 = vunpack.c.h.b16 %v2231
    %v2311 = vunpack.c.l.b16 %v2232
    %v2312 = vunpack.c.l.b16 %v2233
    %v2313 = vunpack.c.h.b16 %v2233
    %v2314 = vunpack.c.l.b16 %v2234
    %v2315 = vunpack.c.l.b16 %v2235
    %v2316 = vunpack.c.h.b16 %v2235
    %v2317 = vunpack.c.l.b16 %v2236
    %v2318 = vpack.c.b16 %v2273, %v2270
    %v2319 = vpack.c.b16 %v2274, %v2271
    %v2320 = vpack.c.b16 %v2275, %v2272
    %v2321 = vpack.c.b16 %v2279, %v2276
    %v2322 = vpack.c.b16 %v2280, %v2277
    %v2323 = vpack.c.b16 %v2281, %v2278
    %v2324 = vpack.c.b16 %v2285, %v2282
    %v2325 = vpack.c.b16 %v2286, %v2283
    %v2326 = vpack.c.b16 %v2287, %v2284
    %v2327 = vpack.c.b16 %v2291, %v2288
    %v2328 = vpack.c.b16 %v2292, %v2289
    %v2329 = vpack.c.b16 %v2293, %v2290
    %v2330 = vpack.c.b16 %v2297, %v2294
    %v2331 = vpack.c.b16 %v2298, %v2295
    %v2332 = vpack.c.b16 %v2299, %v2296
    %v2333 = vpack.c.b16 %v2303, %v2300
    %v2334 = vpack.c.b16 %v2304, %v2301
    %v2335 = vpack.c.b16 %v2305, %v2302
    %v2336 = vpack.c.b16 %v2309, %v2306
    %v2337 = vpack.c.b16 %v2310, %v2307
    %v2338 = vpack.c.b16 %v2311, %v2308
    %v2339 = vpack.c.b16 %v2315, %v2312
    %v2340 = vpack.c.b16 %v2316, %v2313
    %v2341 = vpack.c.b16 %v2317, %v2314
    %2366 = vmatprep.subr.bf16.mxu0 %v2319
    %2367 = vmatpush1.bf16.msra.mxu0 %v2318
    %2368 = vmatprep.subr.bf16.mxu0 %v2322
    %2369 = vmatpush1.bf16.msra.mxu0 %v2321
    %2370 = vmatprep.subr.bf16.mxu0 %v2325
    %2371 = vmatpush1.bf16.msra.mxu0 %v2324
    %2372 = vmatprep.subr.bf16.mxu0 %v2328
    %2373 = vmatpush1.bf16.msra.mxu0 %v2327
    %2374 = vmatprep.subr.bf16.mxu0 %v2331
    %2375 = vmatpush1.bf16.msra.mxu0 %v2330
    %2376 = vmatprep.subr.bf16.mxu0 %v2334
    %2377 = vmatpush1.bf16.msra.mxu0 %v2333
    %2378 = vmatprep.subr.bf16.mxu0 %v2337
    %2379 = vmatpush1.bf16.msra.mxu0 %v2336
    %2380 = vmatprep.subr.bf16.mxu0 %v2340
    %2381 = vmatpush1.bf16.msra.mxu0 %v2339
    %2382 = vmatprep.subr.bf16.mxu0 0
    %2383 = vmatpush1.bf16.msra.mxu0 0
    %2384 = vmatprep.subr.bf16.mxu0 0
    %2385 = vmatpush1.bf16.msra.mxu0 0
    %2386 = vmatprep.subr.bf16.mxu0 0
    %2387 = vmatpush1.bf16.msra.mxu0 0
    %2388 = vmatprep.subr.bf16.mxu0 0
    %2389 = vmatpush1.bf16.msra.mxu0 0
    %2390 = vmatprep.subr.bf16.mxu0 0
    %2391 = vmatpush1.bf16.msra.mxu0 0
    %2392 = vmatprep.subr.bf16.mxu0 0
    %2393 = vmatpush1.bf16.msra.mxu0 0
    %2394 = vmatprep.subr.bf16.mxu0 0
    %2395 = vmatpush1.bf16.msra.mxu0 0
    %2396 = vmatprep.subr.bf16.mxu0 0
    %2397 = vmatpush1.bf16.msra.mxu0 0
    %2398 = vmatprep.mubr.bf16.mxu0 0
    %2399 = vmatmul.mubr.bf16.gmra.mrb[0].mxu0 %v2237
    %v2400 = vpop.f32.mrb[0].mxu0
    %v2401 = vadd.f32 0.0, %v2400
    %v2402 = vpop.f32.mrb[0].mxu0
    %v2403 = vadd.f32 0.0, %v2402
    %v2404 = vpop.f32.mrb[0].mxu0
    %v2405 = vpop.f32.mrb[0].mxu0
    %2406 = vdwg.mxu0
    %2407 = vmatprep.subr.bf16.mxu0 0
    %2408 = vmatpush1.bf16.msra.mxu0 %v2320
    %2409 = vmatprep.subr.bf16.mxu0 0
    %2410 = vmatpush1.bf16.msra.mxu0 %v2323
    %2411 = vmatprep.subr.bf16.mxu0 0
    %2412 = vmatpush1.bf16.msra.mxu0 %v2326
    %2413 = vmatprep.subr.bf16.mxu0 0
    %2414 = vmatpush1.bf16.msra.mxu0 %v2329
    %2415 = vmatprep.subr.bf16.mxu0 0
    %2416 = vmatpush1.bf16.msra.mxu0 %v2332
    %2417 = vmatprep.subr.bf16.mxu0 0
    %2418 = vmatpush1.bf16.msra.mxu0 %v2335
    %2419 = vmatprep.subr.bf16.mxu0 0
    %2420 = vmatpush1.bf16.msra.mxu0 %v2338
    %2421 = vmatprep.subr.bf16.mxu0 0
    %2422 = vmatpush1.bf16.msra.mxu0 %v2341
    %2423 = vmatprep.subr.bf16.mxu0 0
    %2424 = vmatpush1.bf16.msra.mxu0 0
    %2425 = vmatprep.subr.bf16.mxu0 0
    %2426 = vmatpush1.bf16.msra.mxu0 0
    %2427 = vmatprep.subr.bf16.mxu0 0
    %2428 = vmatpush1.bf16.msra.mxu0 0
    %2429 = vmatprep.subr.bf16.mxu0 0
    %2430 = vmatpush1.bf16.msra.mxu0 0
    %2431 = vmatprep.subr.bf16.mxu0 0
    %2432 = vmatpush1.bf16.msra.mxu0 0
    %2433 = vmatprep.subr.bf16.mxu0 0
    %2434 = vmatpush1.bf16.msra.mxu0 0
    %2435 = vmatprep.subr.bf16.mxu0 0
    %2436 = vmatpush1.bf16.msra.mxu0 0
    %2437 = vmatprep.subr.bf16.mxu0 0
    %2438 = vmatpush1.bf16.msra.mxu0 0
    %2439 = vmatprep.mubr.bf16.mxu0 0
    %2440 = vmatmul.mubr.bf16.gmra.mrb[0].mxu0 %v2237
    %v2441 = vpop.f32.mrb[0].mxu0
    %v2442 = vadd.f32 0.0, %v2441
    %v2443 = vpop.f32.mrb[0].mxu0
    %v2444 = vpop.f32.mrb[0].mxu0
    %v2445 = vpop.f32.mrb[0].mxu0
    %2446 = vdwg.mxu0
    %v2447 = vadd.f32 %v2159, %v2401
    %v2448 = vadd.f32 %v2161, %v2403
    %v2449 = vadd.f32 %v2200, %v2442
    %s2450 = scalar_lea.vmem [#allocation11], 6
    %v2451 = vld [vmem:[%s2450] ss:$8 sm:$0x7]
    %v2453 = vlaneseq
    %v2454 = vshrl.u32 %v2453, 7
    %v2455 = vsub.s32 0, %v2454
    %v2456 = vrot.slane %v2451, %v2455
    %v2457 = vlaneseq
    %v2458 = vshrl.u32 %v2457, 7
    %v2459 = vsub.s32 1, %v2458
    %v2460 = vrot.slane %v2451, %v2459
    %v2461 = vlaneseq
    %v2462 = vshrl.u32 %v2461, 7
    %v2463 = vsub.s32 2, %v2462
    %v2464 = vrot.slane %v2451, %v2463
    %v2468 = vadd.f32 %v2447, %v2456
    %v2469 = vadd.f32 %v2448, %v2460
    %v2470 = vadd.f32 %v2449, %v2464
    %s2471 = scalar_lea.vmem [#allocation11], 7
    %v2472 = vld [vmem:[%s2471] ss:$8 sm:$0x7]
    %s2473 = scalar_lea.vmem [#allocation11], 24
    %v2474 = vld [vmem:[%s2473] ss:$8 sm:$0x7]
    %v2475 = vsel %vm807, %v2468, 0.0
    %v2476 = vsel %vm807, %v2469, 0.0
    %v2477 = vadd.f32 %v2475, %v2476
    %v2478 = vsel %vm807, %v2470, 0.0
    %v2479 = vadd.f32 %v2477, %v2478
    %2480 = vadd.xlane.f32.xlu0 %v2479
    %v2481 = vpop.xlane.xlu0 %2480
    %v2482 = vrcp.pop 384.0
    %v2483 = vmul.f32 %v2481, %v2482
    %v2484 = vsub.f32 %v2468, %v2483
    %v2485 = vsub.f32 %v2469, %v2483
    %v2486 = vsub.f32 %v2470, %v2483
    %v2487 = vmul.f32 %v2484, %v2484
    %v2488 = vmul.f32 %v2485, %v2485
    %v2489 = vmul.f32 %v2486, %v2486
    %v2490 = vsel %vm807, %v2487, 0.0
    %v2491 = vsel %vm807, %v2488, 0.0
    %v2492 = vadd.f32 %v2490, %v2491
    %v2493 = vsel %vm807, %v2489, 0.0
    %v2494 = vadd.f32 %v2492, %v2493
    %2495 = vadd.xlane.f32.xlu0 %v2494
    %v2496 = vpop.xlane.xlu0 %2495
    %v2497 = vmul.f32 %v2496, %v2482
    %v2498 = vadd.f32 %v2497, 1e-05
    %v2499 = vrsqrt.pop %v2498
    %v2500 = vmul.f32 %v2484, %v2499
    %v2501 = vmul.f32 %v2485, %v2499
    %v2502 = vmul.f32 %v2486, %v2499
    %v2504 = vlaneseq
    %v2505 = vshrl.u32 %v2504, 7
    %v2506 = vsub.s32 0, %v2505
    %v2507 = vrot.slane %v2472, %v2506
    %v2508 = vlaneseq
    %v2509 = vshrl.u32 %v2508, 7
    %v2510 = vsub.s32 1, %v2509
    %v2511 = vrot.slane %v2472, %v2510
    %v2512 = vlaneseq
    %v2513 = vshrl.u32 %v2512, 7
    %v2514 = vsub.s32 2, %v2513
    %v2515 = vrot.slane %v2472, %v2514
    %v2519 = vmul.f32 %v2500, %v2507
    %v2520 = vmul.f32 %v2501, %v2511
    %v2521 = vmul.f32 %v2502, %v2515
    %v2523 = vlaneseq
    %v2524 = vshrl.u32 %v2523, 7
    %v2525 = vsub.s32 0, %v2524
    %v2526 = vrot.slane %v2474, %v2525
    %v2527 = vlaneseq
    %v2528 = vshrl.u32 %v2527, 7
    %v2529 = vsub.s32 1, %v2528
    %v2530 = vrot.slane %v2474, %v2529
    %v2531 = vlaneseq
    %v2532 = vshrl.u32 %v2531, 7
    %v2533 = vsub.s32 2, %v2532
    %v2534 = vrot.slane %v2474, %v2533
    %v2538 = vadd.f32 %v2519, %v2526
    %v2539 = vadd.f32 %v2520, %v2530
    %v2540 = vadd.f32 %v2521, %v2534
    %v2541 = vmax.f32 %v2538, 0.0
    %v2542 = vmax.f32 %v2539, 0.0
    %v2543 = vmax.f32 %v2540, 0.0
    %v2544 = vld [vmem:[%s10] sm:$0xff]
    %v2545 = vld [vmem:[%s10 + $0x8] sm:$0xff]
    %v2546 = vld [vmem:[%s10 + $0x10] sm:$0xff]
    %v2547 = vld [vmem:[%s10 + $0x18] sm:$0xff]
    %v2548 = vld [vmem:[%s10 + $0x20] sm:$0xff]
    %v2549 = vld [vmem:[%s10 + $0x28] sm:$0xff]
    %v2550 = vld [vmem:[%s10 + $0x30] sm:$0xff]
    %v2551 = vld [vmem:[%s10 + $0x38] sm:$0xff]
    %v2552 = vld [vmem:[%s10 + $0x40] sm:$0xff]
    %v2553 = vld [vmem:[%s10 + $0x48] sm:$0xff]
    %v2554 = vld [vmem:[%s10 + $0x50] sm:$0xff]
    %v2555 = vld [vmem:[%s10 + $0x58] sm:$0xff]
    %v2556 = vld [vmem:[%s10 + $0x60] sm:$0xff]
    %v2557 = vld [vmem:[%s10 + $0x68] sm:$0xff]
    %v2558 = vld [vmem:[%s10 + $0x70] sm:$0xff]
    %v2559 = vld [vmem:[%s10 + $0x78] sm:$0xff]
    %v2560 = vld [vmem:[%s10 + $0x80] sm:$0xff]
    %v2561 = vld [vmem:[%s10 + $0x88] sm:$0xff]
    %v2562 = vld [vmem:[%s10 + $0x90] sm:$0xff]
    %v2563 = vld [vmem:[%s10 + $0x98] sm:$0xff]
    %v2564 = vld [vmem:[%s10 + $0xa0] sm:$0xff]
    %v2565 = vld [vmem:[%s10 + $0xa8] sm:$0xff]
    %v2566 = vld [vmem:[%s10 + $0xb0] sm:$0xff]
    %v2567 = vld [vmem:[%s10 + $0xb8] sm:$0xff]
    %v2568 = vld [vmem:[%s10 + $0xc0] sm:$0xff]
    %v2569 = vld [vmem:[%s10 + $0xc8] sm:$0xff]
    %v2570 = vld [vmem:[%s10 + $0xd0] sm:$0xff]
    %v2571 = vld [vmem:[%s10 + $0xd8] sm:$0xff]
    %v2572 = vld [vmem:[%s10 + $0xe0] sm:$0xff]
    %v2573 = vld [vmem:[%s10 + $0xe8] sm:$0xff]
    %v2574 = vld [vmem:[%s10 + $0xf0] sm:$0xff]
    %v2575 = vld [vmem:[%s10 + $0xf8] sm:$0xff]
    %v2576 = vld [vmem:[%s10 + $0x100] sm:$0xff]
    %v2577 = vld [vmem:[%s10 + $0x108] sm:$0xff]
    %v2578 = vld [vmem:[%s10 + $0x110] sm:$0xff]
    %v2579 = vld [vmem:[%s10 + $0x118] sm:$0xff]
    %v2580 = vld [vmem:[%s10 + $0x120] sm:$0xff]
    %v2581 = vld [vmem:[%s10 + $0x128] sm:$0xff]
    %v2582 = vld [vmem:[%s10 + $0x130] sm:$0xff]
    %v2583 = vld [vmem:[%s10 + $0x138] sm:$0xff]
    %v2584 = vld [vmem:[%s10 + $0x140] sm:$0xff]
    %v2585 = vld [vmem:[%s10 + $0x148] sm:$0xff]
    %v2586 = vld [vmem:[%s10 + $0x150] sm:$0xff]
    %v2587 = vld [vmem:[%s10 + $0x158] sm:$0xff]
    %v2588 = vld [vmem:[%s10 + $0x160] sm:$0xff]
    %v2589 = vld [vmem:[%s10 + $0x168] sm:$0xff]
    %v2590 = vld [vmem:[%s10 + $0x170] sm:$0xff]
    %v2591 = vld [vmem:[%s10 + $0x178] sm:$0xff]
    %v2592 = vpack.c.bf16 %v2541, %v2541
    %v2593 = vpack.c.bf16 %v2542, %v2542
    %v2594 = vpack.c.bf16 %v2543, %v2543
    %s2595 = scalar_lea.vmem [#allocation11], 29
    %v2596 = vld [vmem:[%s2595] ss:$8 sm:$0x3]
    %v2598 = vlaneseq
    %v2599 = vshrl.u32 %v2598, 7
    %v2600 = vsub.s32 0, %v2599
    %v2601 = vrot.slane %v2596, %v2600
    %v2602 = vlaneseq
    %v2603 = vshrl.u32 %v2602, 7
    %v2604 = vsub.s32 1, %v2603
    %v2605 = vrot.slane %v2596, %v2604
    %v2656 = vunpack.c.l.b16 %v2544
    %v2657 = vunpack.c.h.b16 %v2544
    %v2658 = vunpack.c.l.b16 %v2545
    %v2659 = vunpack.c.h.b16 %v2545
    %v2660 = vunpack.c.l.b16 %v2546
    %v2661 = vunpack.c.h.b16 %v2546
    %v2662 = vunpack.c.l.b16 %v2547
    %v2663 = vunpack.c.h.b16 %v2547
    %v2664 = vunpack.c.l.b16 %v2548
    %v2665 = vunpack.c.h.b16 %v2548
    %v2666 = vunpack.c.l.b16 %v2549
    %v2667 = vunpack.c.h.b16 %v2549
    %v2668 = vunpack.c.l.b16 %v2550
    %v2669 = vunpack.c.h.b16 %v2550
    %v2670 = vunpack.c.l.b16 %v2551
    %v2671 = vunpack.c.h.b16 %v2551
    %v2672 = vunpack.c.l.b16 %v2552
    %v2673 = vunpack.c.h.b16 %v2552
    %v2674 = vunpack.c.l.b16 %v2553
    %v2675 = vunpack.c.h.b16 %v2553
    %v2676 = vunpack.c.l.b16 %v2554
    %v2677 = vunpack.c.h.b16 %v2554
    %v2678 = vunpack.c.l.b16 %v2555
    %v2679 = vunpack.c.h.b16 %v2555
    %v2680 = vunpack.c.l.b16 %v2556
    %v2681 = vunpack.c.h.b16 %v2556
    %v2682 = vunpack.c.l.b16 %v2557
    %v2683 = vunpack.c.h.b16 %v2557
    %v2684 = vunpack.c.l.b16 %v2558
    %v2685 = vunpack.c.h.b16 %v2558
    %v2686 = vunpack.c.l.b16 %v2559
    %v2687 = vunpack.c.h.b16 %v2559
    %v2688 = vunpack.c.l.b16 %v2560
    %v2689 = vunpack.c.h.b16 %v2560
    %v2690 = vunpack.c.l.b16 %v2561
    %v2691 = vunpack.c.h.b16 %v2561
    %v2692 = vunpack.c.l.b16 %v2562
    %v2693 = vunpack.c.h.b16 %v2562
    %v2694 = vunpack.c.l.b16 %v2563
    %v2695 = vunpack.c.h.b16 %v2563
    %v2696 = vunpack.c.l.b16 %v2564
    %v2697 = vunpack.c.h.b16 %v2564
    %v2698 = vunpack.c.l.b16 %v2565
    %v2699 = vunpack.c.h.b16 %v2565
    %v2700 = vunpack.c.l.b16 %v2566
    %v2701 = vunpack.c.h.b16 %v2566
    %v2702 = vunpack.c.l.b16 %v2567
    %v2703 = vunpack.c.h.b16 %v2567
    %v2704 = vunpack.c.l.b16 %v2568
    %v2705 = vunpack.c.h.b16 %v2568
    %v2706 = vunpack.c.l.b16 %v2569
    %v2707 = vunpack.c.h.b16 %v2569
    %v2708 = vunpack.c.l.b16 %v2570
    %v2709 = vunpack.c.h.b16 %v2570
    %v2710 = vunpack.c.l.b16 %v2571
    %v2711 = vunpack.c.h.b16 %v2571
    %v2712 = vunpack.c.l.b16 %v2572
    %v2713 = vunpack.c.h.b16 %v2572
    %v2714 = vunpack.c.l.b16 %v2573
    %v2715 = vunpack.c.h.b16 %v2573
    %v2716 = vunpack.c.l.b16 %v2574
    %v2717 = vunpack.c.h.b16 %v2574
    %v2718 = vunpack.c.l.b16 %v2575
    %v2719 = vunpack.c.h.b16 %v2575
    %v2720 = vunpack.c.l.b16 %v2576
    %v2721 = vunpack.c.h.b16 %v2576
    %v2722 = vunpack.c.l.b16 %v2577
    %v2723 = vunpack.c.h.b16 %v2577
    %v2724 = vunpack.c.l.b16 %v2578
    %v2725 = vunpack.c.h.b16 %v2578
    %v2726 = vunpack.c.l.b16 %v2579
    %v2727 = vunpack.c.h.b16 %v2579
    %v2728 = vunpack.c.l.b16 %v2580
    %v2729 = vunpack.c.h.b16 %v2580
    %v2730 = vunpack.c.l.b16 %v2581
    %v2731 = vunpack.c.h.b16 %v2581
    %v2732 = vunpack.c.l.b16 %v2582
    %v2733 = vunpack.c.h.b16 %v2582
    %v2734 = vunpack.c.l.b16 %v2583
    %v2735 = vunpack.c.h.b16 %v2583
    %v2736 = vunpack.c.l.b16 %v2584
    %v2737 = vunpack.c.h.b16 %v2584
    %v2738 = vunpack.c.l.b16 %v2585
    %v2739 = vunpack.c.h.b16 %v2585
    %v2740 = vunpack.c.l.b16 %v2586
    %v2741 = vunpack.c.h.b16 %v2586
    %v2742 = vunpack.c.l.b16 %v2587
    %v2743 = vunpack.c.h.b16 %v2587
    %v2744 = vunpack.c.l.b16 %v2588
    %v2745 = vunpack.c.h.b16 %v2588
    %v2746 = vunpack.c.l.b16 %v2589
    %v2747 = vunpack.c.h.b16 %v2589
    %v2748 = vunpack.c.l.b16 %v2590
    %v2749 = vunpack.c.h.b16 %v2590
    %v2750 = vunpack.c.l.b16 %v2591
    %v2751 = vunpack.c.h.b16 %v2591
    %v2752 = vpack.c.b16 %v2658, %v2656
    %v2753 = vpack.c.b16 %v2659, %v2657
    %v2754 = vpack.c.b16 %v2662, %v2660
    %v2755 = vpack.c.b16 %v2663, %v2661
    %v2756 = vpack.c.b16 %v2666, %v2664
    %v2757 = vpack.c.b16 %v2667, %v2665
    %v2758 = vpack.c.b16 %v2670, %v2668
    %v2759 = vpack.c.b16 %v2671, %v2669
    %v2760 = vpack.c.b16 %v2674, %v2672
    %v2761 = vpack.c.b16 %v2675, %v2673
    %v2762 = vpack.c.b16 %v2678, %v2676
    %v2763 = vpack.c.b16 %v2679, %v2677
    %v2764 = vpack.c.b16 %v2682, %v2680
    %v2765 = vpack.c.b16 %v2683, %v2681
    %v2766 = vpack.c.b16 %v2686, %v2684
    %v2767 = vpack.c.b16 %v2687, %v2685
    %v2768 = vpack.c.b16 %v2690, %v2688
    %v2769 = vpack.c.b16 %v2691, %v2689
    %v2770 = vpack.c.b16 %v2694, %v2692
    %v2771 = vpack.c.b16 %v2695, %v2693
    %v2772 = vpack.c.b16 %v2698, %v2696
    %v2773 = vpack.c.b16 %v2699, %v2697
    %v2774 = vpack.c.b16 %v2702, %v2700
    %v2775 = vpack.c.b16 %v2703, %v2701
    %v2776 = vpack.c.b16 %v2706, %v2704
    %v2777 = vpack.c.b16 %v2707, %v2705
    %v2778 = vpack.c.b16 %v2710, %v2708
    %v2779 = vpack.c.b16 %v2711, %v2709
    %v2780 = vpack.c.b16 %v2714, %v2712
    %v2781 = vpack.c.b16 %v2715, %v2713
    %v2782 = vpack.c.b16 %v2718, %v2716
    %v2783 = vpack.c.b16 %v2719, %v2717
    %v2784 = vpack.c.b16 %v2722, %v2720
    %v2785 = vpack.c.b16 %v2723, %v2721
    %v2786 = vpack.c.b16 %v2726, %v2724
    %v2787 = vpack.c.b16 %v2727, %v2725
    %v2788 = vpack.c.b16 %v2730, %v2728
    %v2789 = vpack.c.b16 %v2731, %v2729
    %v2790 = vpack.c.b16 %v2734, %v2732
    %v2791 = vpack.c.b16 %v2735, %v2733
    %v2792 = vpack.c.b16 %v2738, %v2736
    %v2793 = vpack.c.b16 %v2739, %v2737
    %v2794 = vpack.c.b16 %v2742, %v2740
    %v2795 = vpack.c.b16 %v2743, %v2741
    %v2796 = vpack.c.b16 %v2746, %v2744
    %v2797 = vpack.c.b16 %v2747, %v2745
    %v2798 = vpack.c.b16 %v2750, %v2748
    %v2799 = vpack.c.b16 %v2751, %v2749
    %2848 = vmatprep.subr.bf16.mxu0 %v2753
    %2849 = vmatpush1.bf16.msra.mxu0 %v2752
    %2850 = vmatprep.subr.bf16.mxu0 %v2755
    %2851 = vmatpush1.bf16.msra.mxu0 %v2754
    %2852 = vmatprep.subr.bf16.mxu0 %v2757
    %2853 = vmatpush1.bf16.msra.mxu0 %v2756
    %2854 = vmatprep.subr.bf16.mxu0 %v2759
    %2855 = vmatpush1.bf16.msra.mxu0 %v2758
    %2856 = vmatprep.subr.bf16.mxu0 %v2761
    %2857 = vmatpush1.bf16.msra.mxu0 %v2760
    %2858 = vmatprep.subr.bf16.mxu0 %v2763
    %2859 = vmatpush1.bf16.msra.mxu0 %v2762
    %2860 = vmatprep.subr.bf16.mxu0 %v2765
    %2861 = vmatpush1.bf16.msra.mxu0 %v2764
    %2862 = vmatprep.subr.bf16.mxu0 %v2767
    %2863 = vmatpush1.bf16.msra.mxu0 %v2766
    %2864 = vmatprep.subr.bf16.mxu0 %v2769
    %2865 = vmatpush1.bf16.msra.mxu0 %v2768
    %2866 = vmatprep.subr.bf16.mxu0 %v2771
    %2867 = vmatpush1.bf16.msra.mxu0 %v2770
    %2868 = vmatprep.subr.bf16.mxu0 %v2773
    %2869 = vmatpush1.bf16.msra.mxu0 %v2772
    %2870 = vmatprep.subr.bf16.mxu0 %v2775
    %2871 = vmatpush1.bf16.msra.mxu0 %v2774
    %2872 = vmatprep.subr.bf16.mxu0 %v2777
    %2873 = vmatpush1.bf16.msra.mxu0 %v2776
    %2874 = vmatprep.subr.bf16.mxu0 %v2779
    %2875 = vmatpush1.bf16.msra.mxu0 %v2778
    %2876 = vmatprep.subr.bf16.mxu0 %v2781
    %2877 = vmatpush1.bf16.msra.mxu0 %v2780
    %2878 = vmatprep.subr.bf16.mxu0 %v2783
    %2879 = vmatpush1.bf16.msra.mxu0 %v2782
    %2880 = vmatprep.mubr.bf16.mxu0 %v2593
    %2881 = vmatmul.mubr.bf16.gmra.mrb[0].mxu0 %v2592
    %v2882 = vpop.f32.mrb[0].mxu0
    %v2883 = vadd.f32 %v2601, %v2882
    %v2884 = vpop.f32.mrb[0].mxu0
    %v2885 = vadd.f32 %v2605, %v2884
    %v2886 = vpop.f32.mrb[0].mxu0
    %v2887 = vpop.f32.mrb[0].mxu0
    %2888 = vdwg.mxu0
    %2889 = vmatprep.subr.bf16.mxu0 %v2785
    %2890 = vmatpush1.bf16.msra.mxu0 %v2784
    %2891 = vmatprep.subr.bf16.mxu0 %v2787
    %2892 = vmatpush1.bf16.msra.mxu0 %v2786
    %2893 = vmatprep.subr.bf16.mxu0 %v2789
    %2894 = vmatpush1.bf16.msra.mxu0 %v2788
    %2895 = vmatprep.subr.bf16.mxu0 %v2791
    %2896 = vmatpush1.bf16.msra.mxu0 %v2790
    %2897 = vmatprep.subr.bf16.mxu0 %v2793
    %2898 = vmatpush1.bf16.msra.mxu0 %v2792
    %2899 = vmatprep.subr.bf16.mxu0 %v2795
    %2900 = vmatpush1.bf16.msra.mxu0 %v2794
    %2901 = vmatprep.subr.bf16.mxu0 %v2797
    %2902 = vmatpush1.bf16.msra.mxu0 %v2796
    %2903 = vmatprep.subr.bf16.mxu0 %v2799
    %2904 = vmatpush1.bf16.msra.mxu0 %v2798
    %2905 = vmatprep.subr.bf16.mxu0 0
    %2906 = vmatpush1.bf16.msra.mxu0 0
    %2907 = vmatprep.subr.bf16.mxu0 0
    %2908 = vmatpush1.bf16.msra.mxu0 0
    %2909 = vmatprep.subr.bf16.mxu0 0
    %2910 = vmatpush1.bf16.msra.mxu0 0
    %2911 = vmatprep.subr.bf16.mxu0 0
    %2912 = vmatpush1.bf16.msra.mxu0 0
    %2913 = vmatprep.subr.bf16.mxu0 0
    %2914 = vmatpush1.bf16.msra.mxu0 0
    %2915 = vmatprep.subr.bf16.mxu0 0
    %2916 = vmatpush1.bf16.msra.mxu0 0
    %2917 = vmatprep.subr.bf16.mxu0 0
    %2918 = vmatpush1.bf16.msra.mxu0 0
    %2919 = vmatprep.subr.bf16.mxu0 0
    %2920 = vmatpush1.bf16.msra.mxu0 0
    %2921 = vmatprep.mubr.bf16.mxu0 0
    %2922 = vmatmul.mubr.bf16.gmra.mrb[0].mxu0 %v2594
    %v2923 = vpop.f32.mrb[0].mxu0
    %v2924 = vadd.f32 %v2883, %v2923
    %v2925 = vpop.f32.mrb[0].mxu0
    %v2926 = vadd.f32 %v2885, %v2925
    %v2927 = vpop.f32.mrb[0].mxu0
    %v2928 = vpop.f32.mrb[0].mxu0
    %2929 = vdwg.mxu0
    %v2930 = vadd.f32 %v386, %v2924
    %v2931 = vadd.f32 %v388, %v2926
    %v2932 = vld [vmem:[#allocation8] sm:$0xff]
    %v2933 = vld [vmem:[#allocation8 + $0x8] sm:$0xff]
    %v2934 = vld [vmem:[#allocation8 + $0x10] sm:$0xff]
    %v2935 = vld [vmem:[#allocation8 + $0x18] sm:$0xff]
    %v2936 = vld [vmem:[#allocation8 + $0x20] sm:$0xff]
    %v2937 = vld [vmem:[#allocation8 + $0x28] sm:$0xff]
    %v2938 = vld [vmem:[#allocation8 + $0x30] sm:$0xff]
    %v2939 = vld [vmem:[#allocation8 + $0x38] sm:$0xff]
    %v2940 = vld [vmem:[#allocation8 + $0x40] sm:$0xff]
    %v2941 = vld [vmem:[#allocation8 + $0x48] sm:$0xff]
    %v2942 = vld [vmem:[#allocation8 + $0x50] sm:$0xff]
    %v2943 = vld [vmem:[#allocation8 + $0x58] sm:$0xff]
    %v2944 = vld [vmem:[#allocation8 + $0x60] sm:$0xff]
    %v2945 = vld [vmem:[#allocation8 + $0x68] sm:$0xff]
    %v2946 = vld [vmem:[#allocation8 + $0x70] sm:$0xff]
    %v2947 = vld [vmem:[#allocation8 + $0x78] sm:$0xff]
    %v2948 = vld [vmem:[#allocation8 + $0x80] sm:$0xff]
    %v2949 = vld [vmem:[#allocation8 + $0x88] sm:$0xff]
    %v2950 = vld [vmem:[#allocation8 + $0x90] sm:$0xff]
    %v2951 = vld [vmem:[#allocation8 + $0x98] sm:$0xff]
    %v2952 = vld [vmem:[#allocation8 + $0xa0] sm:$0xff]
    %v2953 = vld [vmem:[#allocation8 + $0xa8] sm:$0xff]
    %v2954 = vld [vmem:[#allocation8 + $0xb0] sm:$0xff]
    %v2955 = vld [vmem:[#allocation8 + $0xb8] sm:$0xff]
    %v2956 = vpack.c.bf16 %v2930, %v2930
    %v2957 = vpack.c.bf16 %v2931, %v2931
    %s2958 = scalar_lea.vmem [#allocation11], 25
    %v2959 = vld [vmem:[%s2958] ss:$8 sm:$0x3]
    %v2961 = vlaneseq
    %v2962 = vshrl.u32 %v2961, 7
    %v2963 = vsub.s32 0, %v2962
    %v2964 = vrot.slane %v2959, %v2963
    %v2965 = vlaneseq
    %v2966 = vshrl.u32 %v2965, 7
    %v2967 = vsub.s32 1, %v2966
    %v2968 = vrot.slane %v2959, %v2967
    %v2995 = vunpack.c.l.b16 %v2932
    %v2996 = vunpack.c.h.b16 %v2932
    %v2997 = vunpack.c.l.b16 %v2933
    %v2998 = vunpack.c.h.b16 %v2933
    %v2999 = vunpack.c.l.b16 %v2934
    %v3000 = vunpack.c.h.b16 %v2934
    %v3001 = vunpack.c.l.b16 %v2935
    %v3002 = vunpack.c.h.b16 %v2935
    %v3003 = vunpack.c.l.b16 %v2936
    %v3004 = vunpack.c.h.b16 %v2936
    %v3005 = vunpack.c.l.b16 %v2937
    %v3006 = vunpack.c.h.b16 %v2937
    %v3007 = vunpack.c.l.b16 %v2938
    %v3008 = vunpack.c.h.b16 %v2938
    %v3009 = vunpack.c.l.b16 %v2939
    %v3010 = vunpack.c.h.b16 %v2939
    %v3011 = vunpack.c.l.b16 %v2940
    %v3012 = vunpack.c.h.b16 %v2940
    %v3013 = vunpack.c.l.b16 %v2941
    %v3014 = vunpack.c.h.b16 %v2941
    %v3015 = vunpack.c.l.b16 %v2942
    %v3016 = vunpack.c.h.b16 %v2942
    %v3017 = vunpack.c.l.b16 %v2943
    %v3018 = vunpack.c.h.b16 %v2943
    %v3019 = vunpack.c.l.b16 %v2944
    %v3020 = vunpack.c.h.b16 %v2944
    %v3021 = vunpack.c.l.b16 %v2945
    %v3022 = vunpack.c.h.b16 %v2945
    %v3023 = vunpack.c.l.b16 %v2946
    %v3024 = vunpack.c.h.b16 %v2946
    %v3025 = vunpack.c.l.b16 %v2947
    %v3026 = vunpack.c.h.b16 %v2947
    %v3027 = vunpack.c.l.b16 %v2948
    %v3028 = vunpack.c.h.b16 %v2948
    %v3029 = vunpack.c.l.b16 %v2949
    %v3030 = vunpack.c.h.b16 %v2949
    %v3031 = vunpack.c.l.b16 %v2950
    %v3032 = vunpack.c.h.b16 %v2950
    %v3033 = vunpack.c.l.b16 %v2951
    %v3034 = vunpack.c.h.b16 %v2951
    %v3035 = vunpack.c.l.b16 %v2952
    %v3036 = vunpack.c.h.b16 %v2952
    %v3037 = vunpack.c.l.b16 %v2953
    %v3038 = vunpack.c.h.b16 %v2953
    %v3039 = vunpack.c.l.b16 %v2954
    %v3040 = vunpack.c.h.b16 %v2954
    %v3041 = vunpack.c.l.b16 %v2955
    %v3042 = vunpack.c.h.b16 %v2955
    %v3043 = vpack.c.b16 %v2997, %v2995
    %v3044 = vpack.c.b16 %v2998, %v2996
    %v3045 = vpack.c.b16 %v3001, %v2999
    %v3046 = vpack.c.b16 %v3002, %v3000
    %v3047 = vpack.c.b16 %v3005, %v3003
    %v3048 = vpack.c.b16 %v3006, %v3004
    %v3049 = vpack.c.b16 %v3009, %v3007
    %v3050 = vpack.c.b16 %v3010, %v3008
    %v3051 = vpack.c.b16 %v3013, %v3011
    %v3052 = vpack.c.b16 %v3014, %v3012
    %v3053 = vpack.c.b16 %v3017, %v3015
    %v3054 = vpack.c.b16 %v3018, %v3016
    %v3055 = vpack.c.b16 %v3021, %v3019
    %v3056 = vpack.c.b16 %v3022, %v3020
    %v3057 = vpack.c.b16 %v3025, %v3023
    %v3058 = vpack.c.b16 %v3026, %v3024
    %v3059 = vpack.c.b16 %v3029, %v3027
    %v3060 = vpack.c.b16 %v3030, %v3028
    %v3061 = vpack.c.b16 %v3033, %v3031
    %v3062 = vpack.c.b16 %v3034, %v3032
    %v3063 = vpack.c.b16 %v3037, %v3035
    %v3064 = vpack.c.b16 %v3038, %v3036
    %v3065 = vpack.c.b16 %v3041, %v3039
    %v3066 = vpack.c.b16 %v3042, %v3040
    %v3092 = vsel %vm1424, %v2957, 0
    %3094 = vmatprep.subr.bf16.mxu0 %v3044
    %3095 = vmatpush1.bf16.msra.mxu0 %v3043
    %3096 = vmatprep.subr.bf16.mxu0 %v3046
    %3097 = vmatpush1.bf16.msra.mxu0 %v3045
    %3098 = vmatprep.subr.bf16.mxu0 %v3048
    %3099 = vmatpush1.bf16.msra.mxu0 %v3047
    %3100 = vmatprep.subr.bf16.mxu0 %v3050
    %3101 = vmatpush1.bf16.msra.mxu0 %v3049
    %3102 = vmatprep.subr.bf16.mxu0 %v3052
    %3103 = vmatpush1.bf16.msra.mxu0 %v3051
    %3104 = vmatprep.subr.bf16.mxu0 %v3054
    %3105 = vmatpush1.bf16.msra.mxu0 %v3053
    %3106 = vmatprep.subr.bf16.mxu0 %v3056
    %3107 = vmatpush1.bf16.msra.mxu0 %v3055
    %3108 = vmatprep.subr.bf16.mxu0 %v3058
    %3109 = vmatpush1.bf16.msra.mxu0 %v3057
    %3110 = vmatprep.subr.bf16.mxu0 %v3060
    %3111 = vmatpush1.bf16.msra.mxu0 %v3059
    %3112 = vmatprep.subr.bf16.mxu0 %v3062
    %3113 = vmatpush1.bf16.msra.mxu0 %v3061
    %3114 = vmatprep.subr.bf16.mxu0 %v3064
    %3115 = vmatpush1.bf16.msra.mxu0 %v3063
    %3116 = vmatprep.subr.bf16.mxu0 %v3066
    %3117 = vmatpush1.bf16.msra.mxu0 %v3065
    %3118 = vmatprep.subr.bf16.mxu0 0
    %3119 = vmatpush1.bf16.msra.mxu0 0
    %3120 = vmatprep.subr.bf16.mxu0 0
    %3121 = vmatpush1.bf16.msra.mxu0 0
    %3122 = vmatprep.subr.bf16.mxu0 0
    %3123 = vmatpush1.bf16.msra.mxu0 0
    %3124 = vmatprep.subr.bf16.mxu0 0
    %3125 = vmatpush1.bf16.msra.mxu0 0
    %3126 = vmatprep.mubr.bf16.mxu0 %v3092
    %3127 = vmatmul.mubr.bf16.gmra.mrb[0].mxu0 %v2956
    %v3128 = vpop.f32.mrb[0].mxu0
    %v3129 = vadd.f32 %v2964, %v3128
    %v3130 = vpop.f32.mrb[0].mxu0
    %v3131 = vadd.f32 %v2968, %v3130
    %v3132 = vpop.f32.mrb[0].mxu0
    %v3133 = vpop.f32.mrb[0].mxu0
    %3134 = vdwg.mxu0
    %s3135 = scalar_lea.vmem [#allocation11], 26
    %v3136 = vld [vmem:[%s3135] ss:$8 sm:$0x3]
    %s3137 = scalar_lea.vmem [#allocation11], 27
    %v3138 = vld [vmem:[%s3137] ss:$8 sm:$0x3]
    %v3139 = vsel %vm807, %v3129, 0.0
    %v3140 = vsel %vm1529, %v3131, 0.0
    %v3141 = vadd.f32 %v3139, %v3140
    %3142 = vadd.xlane.f32.xlu0 %v3141
    %v3143 = vpop.xlane.xlu0 %3142
    %v3144 = vmul.f32 %v3143, %v1534
    %v3145 = vsub.f32 %v3129, %v3144
    %v3146 = vsub.f32 %v3131, %v3144
    %v3147 = vmul.f32 %v3145, %v3145
    %v3148 = vmul.f32 %v3146, %v3146
    %v3149 = vsel %vm807, %v3147, 0.0
    %v3150 = vsel %vm1529, %v3148, 0.0
    %v3151 = vadd.f32 %v3149, %v3150
    %3152 = vadd.xlane.f32.xlu0 %v3151
    %v3153 = vpop.xlane.xlu0 %3152
    %v3154 = vmul.f32 %v3153, %v1534
    %v3155 = vadd.f32 %v3154, 1e-05
    %v3156 = vrsqrt.pop %v3155
    %v3157 = vmul.f32 %v3145, %v3156
    %v3158 = vmul.f32 %v3146, %v3156
    %v3160 = vlaneseq
    %v3161 = vshrl.u32 %v3160, 7
    %v3162 = vsub.s32 0, %v3161
    %v3163 = vrot.slane %v3136, %v3162
    %v3164 = vlaneseq
    %v3165 = vshrl.u32 %v3164, 7
    %v3166 = vsub.s32 1, %v3165
    %v3167 = vrot.slane %v3136, %v3166
    %v3170 = vmul.f32 %v3157, %v3163
    %v3171 = vmul.f32 %v3158, %v3167
    %v3173 = vlaneseq
    %v3174 = vshrl.u32 %v3173, 7
    %v3175 = vsub.s32 0, %v3174
    %v3176 = vrot.slane %v3138, %v3175
    %v3177 = vlaneseq
    %v3178 = vshrl.u32 %v3177, 7
    %v3179 = vsub.s32 1, %v3178
    %v3180 = vrot.slane %v3138, %v3179
    %v3183 = vadd.f32 %v3170, %v3176
    %v3184 = vadd.f32 %v3171, %v3180
    %v3185 = vmax.f32 %v3183, 0.0
    %v3186 = vmax.f32 %v3184, 0.0
    %v3187 = vld [vmem:[#allocation9] sm:$0xff]
    %v3188 = vld [vmem:[#allocation9 + $0x8] sm:$0xff]
    %v3189 = vld [vmem:[#allocation9 + $0x10] sm:$0xff]
    %v3190 = vld [vmem:[#allocation9 + $0x18] sm:$0xff]
    %v3191 = vld [vmem:[#allocation9 + $0x20] sm:$0xff]
    %v3192 = vld [vmem:[#allocation9 + $0x28] sm:$0xff]
    %v3193 = vld [vmem:[#allocation9 + $0x30] sm:$0xff]
    %v3194 = vld [vmem:[#allocation9 + $0x38] sm:$0xff]
    %v3195 = vld [vmem:[#allocation9 + $0x40] sm:$0xff]
    %v3196 = vld [vmem:[#allocation9 + $0x48] sm:$0xff]
    %v3197 = vld [vmem:[#allocation9 + $0x50] sm:$0xff]
    %v3198 = vld [vmem:[#allocation9 + $0x58] sm:$0xff]
    %v3199 = vld [vmem:[#allocation9 + $0x60] sm:$0xff]
    %v3200 = vld [vmem:[#allocation9 + $0x68] sm:$0xff]
    %v3201 = vld [vmem:[#allocation9 + $0x70] sm:$0xff]
    %v3202 = vld [vmem:[#allocation9 + $0x78] sm:$0xff]
    %v3203 = vld [vmem:[#allocation9 + $0x80] sm:$0xff]
    %v3204 = vld [vmem:[#allocation9 + $0x88] sm:$0xff]
    %v3205 = vld [vmem:[#allocation9 + $0x90] sm:$0xff]
    %v3206 = vld [vmem:[#allocation9 + $0x98] sm:$0xff]
    %v3207 = vld [vmem:[#allocation9 + $0xa0] sm:$0xff]
    %v3208 = vld [vmem:[#allocation9 + $0xa8] sm:$0xff]
    %v3209 = vld [vmem:[#allocation9 + $0xb0] sm:$0xff]
    %v3210 = vld [vmem:[#allocation9 + $0xb8] sm:$0xff]
    %v3211 = vpack.c.bf16 %v3185, %v3185
    %v3212 = vpack.c.bf16 %v3186, %v3186
    %s3213 = scalar_lea.vmem [#allocation11], 30
    %v3214 = vld [vmem:[%s3213] ss:$8 sm:$0x3]
    %v3216 = vlaneseq
    %v3217 = vshrl.u32 %v3216, 7
    %v3218 = vsub.s32 0, %v3217
    %v3219 = vrot.slane %v3214, %v3218
    %v3220 = vlaneseq
    %v3221 = vshrl.u32 %v3220, 7
    %v3222 = vsub.s32 1, %v3221
    %v3223 = vrot.slane %v3214, %v3222
    %v3250 = vunpack.c.l.b16 %v3187
    %v3251 = vunpack.c.h.b16 %v3187
    %v3252 = vunpack.c.l.b16 %v3188
    %v3253 = vunpack.c.h.b16 %v3188
    %v3254 = vunpack.c.l.b16 %v3189
    %v3255 = vunpack.c.h.b16 %v3189
    %v3256 = vunpack.c.l.b16 %v3190
    %v3257 = vunpack.c.h.b16 %v3190
    %v3258 = vunpack.c.l.b16 %v3191
    %v3259 = vunpack.c.h.b16 %v3191
    %v3260 = vunpack.c.l.b16 %v3192
    %v3261 = vunpack.c.h.b16 %v3192
    %v3262 = vunpack.c.l.b16 %v3193
    %v3263 = vunpack.c.h.b16 %v3193
    %v3264 = vunpack.c.l.b16 %v3194
    %v3265 = vunpack.c.h.b16 %v3194
    %v3266 = vunpack.c.l.b16 %v3195
    %v3267 = vunpack.c.h.b16 %v3195
    %v3268 = vunpack.c.l.b16 %v3196
    %v3269 = vunpack.c.h.b16 %v3196
    %v3270 = vunpack.c.l.b16 %v3197
    %v3271 = vunpack.c.h.b16 %v3197
    %v3272 = vunpack.c.l.b16 %v3198
    %v3273 = vunpack.c.h.b16 %v3198
    %v3274 = vunpack.c.l.b16 %v3199
    %v3275 = vunpack.c.h.b16 %v3199
    %v3276 = vunpack.c.l.b16 %v3200
    %v3277 = vunpack.c.h.b16 %v3200
    %v3278 = vunpack.c.l.b16 %v3201
    %v3279 = vunpack.c.h.b16 %v3201
    %v3280 = vunpack.c.l.b16 %v3202
    %v3281 = vunpack.c.h.b16 %v3202
    %v3282 = vunpack.c.l.b16 %v3203
    %v3283 = vunpack.c.h.b16 %v3203
    %v3284 = vunpack.c.l.b16 %v3204
    %v3285 = vunpack.c.h.b16 %v3204
    %v3286 = vunpack.c.l.b16 %v3205
    %v3287 = vunpack.c.h.b16 %v3205
    %v3288 = vunpack.c.l.b16 %v3206
    %v3289 = vunpack.c.h.b16 %v3206
    %v3290 = vunpack.c.l.b16 %v3207
    %v3291 = vunpack.c.h.b16 %v3207
    %v3292 = vunpack.c.l.b16 %v3208
    %v3293 = vunpack.c.h.b16 %v3208
    %v3294 = vunpack.c.l.b16 %v3209
    %v3295 = vunpack.c.h.b16 %v3209
    %v3296 = vunpack.c.l.b16 %v3210
    %v3297 = vunpack.c.h.b16 %v3210
    %v3298 = vpack.c.b16 %v3252, %v3250
    %v3299 = vpack.c.b16 %v3253, %v3251
    %v3300 = vpack.c.b16 %v3256, %v3254
    %v3301 = vpack.c.b16 %v3257, %v3255
    %v3302 = vpack.c.b16 %v3260, %v3258
    %v3303 = vpack.c.b16 %v3261, %v3259
    %v3304 = vpack.c.b16 %v3264, %v3262
    %v3305 = vpack.c.b16 %v3265, %v3263
    %v3306 = vpack.c.b16 %v3268, %v3266
    %v3307 = vpack.c.b16 %v3269, %v3267
    %v3308 = vpack.c.b16 %v3272, %v3270
    %v3309 = vpack.c.b16 %v3273, %v3271
    %v3310 = vpack.c.b16 %v3276, %v3274
    %v3311 = vpack.c.b16 %v3277, %v3275
    %v3312 = vpack.c.b16 %v3280, %v3278
    %v3313 = vpack.c.b16 %v3281, %v3279
    %v3314 = vpack.c.b16 %v3284, %v3282
    %v3315 = vpack.c.b16 %v3285, %v3283
    %v3316 = vpack.c.b16 %v3288, %v3286
    %v3317 = vpack.c.b16 %v3289, %v3287
    %v3318 = vpack.c.b16 %v3292, %v3290
    %v3319 = vpack.c.b16 %v3293, %v3291
    %v3320 = vpack.c.b16 %v3296, %v3294
    %v3321 = vpack.c.b16 %v3297, %v3295
    %v3347 = vsel %vm1424, %v3212, 0
    %3349 = vmatprep.subr.bf16.mxu0 %v3299
    %3350 = vmatpush1.bf16.msra.mxu0 %v3298
    %3351 = vmatprep.subr.bf16.mxu0 %v3301
    %3352 = vmatpush1.bf16.msra.mxu0 %v3300
    %3353 = vmatprep.subr.bf16.mxu0 %v3303
    %3354 = vmatpush1.bf16.msra.mxu0 %v3302
    %3355 = vmatprep.subr.bf16.mxu0 %v3305
    %3356 = vmatpush1.bf16.msra.mxu0 %v3304
    %3357 = vmatprep.subr.bf16.mxu0 %v3307
    %3358 = vmatpush1.bf16.msra.mxu0 %v3306
    %3359 = vmatprep.subr.bf16.mxu0 %v3309
    %3360 = vmatpush1.bf16.msra.mxu0 %v3308
    %3361 = vmatprep.subr.bf16.mxu0 %v3311
    %3362 = vmatpush1.bf16.msra.mxu0 %v3310
    %3363 = vmatprep.subr.bf16.mxu0 %v3313
    %3364 = vmatpush1.bf16.msra.mxu0 %v3312
    %3365 = vmatprep.subr.bf16.mxu0 %v3315
    %3366 = vmatpush1.bf16.msra.mxu0 %v3314
    %3367 = vmatprep.subr.bf16.mxu0 %v3317
    %3368 = vmatpush1.bf16.msra.mxu0 %v3316
    %3369 = vmatprep.subr.bf16.mxu0 %v3319
    %3370 = vmatpush1.bf16.msra.mxu0 %v3318
    %3371 = vmatprep.subr.bf16.mxu0 %v3321
    %3372 = vmatpush1.bf16.msra.mxu0 %v3320
    %3373 = vmatprep.subr.bf16.mxu0 0
    %3374 = vmatpush1.bf16.msra.mxu0 0
    %3375 = vmatprep.subr.bf16.mxu0 0
    %3376 = vmatpush1.bf16.msra.mxu0 0
    %3377 = vmatprep.subr.bf16.mxu0 0
    %3378 = vmatpush1.bf16.msra.mxu0 0
    %3379 = vmatprep.subr.bf16.mxu0 0
    %3380 = vmatpush1.bf16.msra.mxu0 0
    %3381 = vmatprep.mubr.bf16.mxu0 %v3347
    %3382 = vmatmul.mubr.bf16.gmra.mrb[0].mxu0 %v3211
    %v3383 = vpop.f32.mrb[0].mxu0
    %v3384 = vadd.f32 %v3219, %v3383
    %v3385 = vpop.f32.mrb[0].mxu0
    %v3386 = vadd.f32 %v3223, %v3385
    %v3387 = vpop.f32.mrb[0].mxu0
    %v3388 = vpop.f32.mrb[0].mxu0
    %3389 = vdwg.mxu0
    %v3392 = vcombine.low %v3384, %v3386
    %v3394 = vunpack.c.l.s4 1983009808
    %v3395 = vunpack.c.0.s8 %v3394
    %v3396 = vlaneseq
    %v3397 = vshrl.u32 %v3396, 7
    %v3398 = vsub.s32 %v3395, %v3397
    %v3399 = vrot.slane %v3392, %v3398
    %vm3401 = vcmask 519170
    %vm3402 = vmor %vm3401, %vm807
    %3403 = vst.msk [vmem:[#allocation14] sm:$0xf] %vm3402, %v3399
    %v3404 = vsub.f32 %v140, %v3399
    %v3405 = vmul.f32 %v3404, %v3404
    %v3408 = vunpack.c.l.s4 1983009808
    %v3409 = vunpack.c.0.s8 %v3408
    %v3410 = vlaneseq
    %v3411 = vshrl.u32 %v3410, 7
    %v3412 = vsub.s32 %v3409, %v3411
    %v3413 = vrot.slane %v3405, %v3412
    %v3414 = vcombine.high %v3413, %v3413
    %v3417 = vsel %vm807, %v3413, 0.0
    %v3418 = vsel %vm1529, %v3414, 0.0
    %v3419 = vadd.f32 %v3417, %v3418
    %3420 = vadd.xlane.f32.xlu0 %v3419
    %v3421 = vpop.xlane.xlu0 %3420
    %v3422 = vrot.slane %v3421, 4
    %v3423 = vadd.f32 %v3421, %v3422
    %v3424 = vrot.slane %v3423, 2
    %v3425 = vadd.f32 %v3423, %v3424
    %v3426 = vrot.slane %v3425, 1
    %v3427 = vadd.f32 %v3425, %v3426
    %s3428 = vtos %v3427
    %s3429 = smul.f32 %s3428, 0.0026041667
    %s3430 = scalar_lea.smem [#allocation15], 0
    %3431 = sst [smem:[%s3430]] %s3429
    // Predicated region
    $region86: #{model_forward.1} parent=1 // pred_check
      _
    $region87: #{model_forward.1} parent=1 // pred_check_branch
      %3433 = sbr.rel (0) target = $region89
    $region88: #{model_forward.1} parent=1 // pred_region
      %s3435 = ssub.s32 64, 64
      %3436 = vsyncadd [#allocation4], %s3435
      %s3438 = sshll.u32 [#allocation14], 4
      %s3439 = int_to_ptr.vmem [resolvable:$true] %s3438
      %3441 = dma.vmem_to_hbm [thread:$0]  %s3439, 64, %s15, [#allocation4]
    $region89: #{model_forward.1} parent=1 // pred_fallthru
      _
    // Predicated region
    $region90: #{model_forward.1} parent=1 // pred_check
      _
    $region91: #{model_forward.1} parent=1 // pred_check_branch
      %3443 = sbr.rel (0) target = $region93
    $region92: #{model_forward.1} parent=1 // pred_region
      %s3445 = ssub.s32 16, 16
      %3446 = vsyncadd [#allocation5], %s3445
      %3449 = dma.smem_to_hbm [#allocation15], 16, %s16, [#allocation5]
    $region93: #{model_forward.1} parent=1 // pred_fallthru
      _
    // Predicated region
    $region94: #{model_forward.1} parent=1 // pred_check
      _
    $region95: #{model_forward.1} parent=1 // pred_check_branch
      %3451 = sbr.rel (0) target = $region97
    $region96: #{model_forward.1} parent=1 // pred_region
      %3452 = dma.done [#allocation4], 64
    $region97: #{model_forward.1} parent=1 // pred_fallthru
      _
    // Predicated region
    $region98: #{model_forward.1} parent=1 // pred_check
      _
    $region99: #{model_forward.1} parent=1 // pred_check_branch
      %3454 = sbr.rel (0) target = $region101
    $region100: #{model_forward.1} parent=1 // pred_region
      %3455 = dma.done [#allocation5], 16
    $region101: #{model_forward.1} parent=1 // pred_fallthru
      _
    %3456 = sfence
    %3457 = vsyncpa [#allocation3], 1
    %3458 = vsyncpa [#allocation7], 1
    %3459 = vsyncpa [#allocation10], 1
    %3460 = vsyncpa [#allocation13], 1
    %3461 = vsyncpa [#allocation4], 1
    %3462 = vsyncpa [#allocation5], 1

</llo_original>
